<compile_context>
chip_gen: v5e
topology: v5e:2x2
jax: 0.10.0
libtpu: 0.0.40
codegen_flags: <defaults>
</compile_context>

<pallas_src>
import functools

import jax
import jax.numpy as jnp
from jax.experimental import pallas as pl
from jax.experimental.pallas import tpu as pltpu


def _round_up(x, m):
    return (x + m - 1) // m * m


# ------------------------------ fused kernel --------------------------------
def _gru_cell(gi, h_prev, w_hh_ref, b_hn_ref, H):
    """One GRU cell update.

    gi already contains x @ W_ih + (b_ih + b_hh) for the r/z gates and
    x @ W_in + b_in for the n gate (bias folding done at param-prep time).
    The only matmul here (h @ W_hh) is the unavoidable serial dependency.
    """
    gh = jnp.dot(h_prev.astype(w_hh_ref.dtype), w_hh_ref[...],
                 preferred_element_type=jnp.float32)
    r = jax.nn.sigmoid(gi[:, 0 * H:1 * H] + gh[:, 0 * H:1 * H])
    z = jax.nn.sigmoid(gi[:, 1 * H:2 * H] + gh[:, 1 * H:2 * H])
    n = jnp.tanh(gi[:, 2 * H:3 * H] + r * (gh[:, 2 * H:3 * H] + b_hn_ref[...]))
    return (1.0 - z) * n + z * h_prev


def _fused_gru_kernel(T, B, H,
                      x_ref,
                      wih1_ref, whh1_ref, b1_ref, bhn1_ref,
                      wih2_ref, whh2_ref, b2_ref, bhn2_ref,
                      fcw_ref, fcb_ref,
                      out_ref,
                      gi1_scr, h1_scr, gi2_scr):
    """Whole RNN_GRU forward for one batch, single grid step.

    x_ref   : (T*B, Din)  time-major, batch-padded, flattened input
    wih*    : (Din|H, 3H) input->gates weights (gate order [r, z, n])
    whh*    : (H, 3H)     hidden->gates weights
    b*      : (1, 3H)     folded bias (b_ih + b_hh for r/z slots, b_in for n)
    bhn*    : (1, H)      hidden n-gate bias (stays inside the r*(.) term)
    fcw_ref : (T, H, Cp)  FC weight reshaped per time step (Cp lane-padded)
    fcb_ref : (1, Cp)     FC bias (lane-padded)
    out_ref : (B, Cp)     logits
    """
    # Stage 1: layer-1 input projection for ALL time steps in one MXU pass
    # (M = T*B instead of T serialized M=B matmuls).
    gi1_scr[...] = (
        jnp.dot(x_ref[...].astype(wih1_ref.dtype), wih1_ref[...],
                preferred_element_type=jnp.float32) + b1_ref[...])

    # Stage 2: layer-1 recurrence (T static -> fully unrolled, one basic block).
    h1 = jnp.zeros((B, H), jnp.float32)
    for t in range(T):
        gi = gi1_scr[pl.ds(t * B, B), :]
        h1 = _gru_cell(gi, h1, whh1_ref, bhn1_ref, H)
        h1_scr[pl.ds(t * B, B), :] = h1

    # Stage 3: layer-2 input projection, batched over all time steps
    # (off layer-2's recurrence critical path).
    gi2_scr[...] = (
        jnp.dot(h1_scr[...].astype(wih2_ref.dtype), wih2_ref[...],
                preferred_element_type=jnp.float32) + b2_ref[...])

    # Stage 4: layer-2 recurrence fused with the FC head accumulation
    # (acc += h2_t @ fc_w[t]  <=>  fc(out.reshape(B, T*H))).
    h2 = jnp.zeros((B, H), jnp.float32)
    acc = jnp.zeros((B, fcw_ref.shape[-1]), jnp.float32)
    for t in range(T):
        gi = gi2_scr[pl.ds(t * B, B), :]
        h2 = _gru_cell(gi, h2, whh2_ref, bhn2_ref, H)
        acc = acc + jnp.dot(h2.astype(fcw_ref.dtype), fcw_ref[t],
                            preferred_element_type=jnp.float32)

    out_ref[...] = (acc + fcb_ref[...]).astype(out_ref.dtype)


def _full_spec(arr):
    nd = arr.ndim
    return pl.BlockSpec(arr.shape, lambda i, nd=nd: (0,) * nd)


def rnn_gru_fused(x_btd, kp):
    """x_btd: (B, T, Din) batch_first. Returns padded logits (Bp, Cp)."""
    B0, T, Din = x_btd.shape
    H = kp["w_hh1"].shape[0]
    Cp = kp["fc_w3"].shape[-1]
    Bp = _round_up(max(B0, 8), 8)

    # batch_first -> time-major, pad batch to a sublane multiple, flatten.
    x = jnp.transpose(x_btd, (1, 0, 2))                 # (T, B0, Din)
    x = jnp.pad(x, ((0, 0), (0, Bp - B0), (0, 0)))      # (T, Bp, Din)
    x2d = x.reshape(T * Bp, Din)                        # (T*Bp, Din)

    operands = (x2d,
                kp["w_ih1"], kp["w_hh1"], kp["b1"], kp["b_hn1"],
                kp["w_ih2"], kp["w_hh2"], kp["b2"], kp["b_hn2"],
                kp["fc_w3"], kp["fc_b"])

    return pl.pallas_call(
        functools.partial(_fused_gru_kernel, T, Bp, H),
        out_shape=jax.ShapeDtypeStruct((Bp, Cp), jnp.float32),
        grid_spec=pltpu.PrefetchScalarGridSpec(
            num_scalar_prefetch=0,
            grid=(1,),                       # single step: weights DMA'd once
            in_specs=[_full_spec(a) for a in operands],
            out_specs=pl.BlockSpec((Bp, Cp), lambda i: (0, 0)),
            scratch_shapes=[
                pltpu.VMEM((T * Bp, 3 * H), jnp.float32),  # gi1 (all steps)
                pltpu.VMEM((T * Bp, H), jnp.float32),      # h1  (all steps)
                pltpu.VMEM((T * Bp, 3 * H), jnp.float32),  # gi2 (all steps)
            ],
        ),
        compiler_params=pltpu.CompilerParams(
            dimension_semantics=("arbitrary",),
            vmem_limit_bytes=64 << 20),
    )(*operands)


@functools.partial(jax.jit, static_argnames=("num_classes",))
def rnn_gru_forward(x_btd, kparams, num_classes):
    B0 = x_btd.shape[0]
    logits_full = rnn_gru_fused(x_btd, kparams)
    return logits_full[:B0, :num_classes]


# ------------------------------ param handling -------------------------------
def init_params(key, input_size, hidden_size, num_layers, num_classes, seq_len):
    """PyTorch-shaped parameters (stored transposed for x @ W)."""
    params = {"gru_layers": []}
    bound = 1.0 / jnp.sqrt(hidden_size)
    for layer in range(num_layers):
        din = input_size if layer == 0 else hidden_size
        key, k1, k2, k3, k4 = jax.random.split(key, 5)
        w_ih = jax.random.uniform(k1, (3 * hidden_size, din), jnp.float32,
                                  -bound, bound).T            # (Din, 3H)
        w_hh = jax.random.uniform(k2, (3 * hidden_size, hidden_size),
                                  jnp.float32, -bound, bound).T  # (H, 3H)
        b_ih = jax.random.uniform(k3, (1, 3 * hidden_size), jnp.float32,
                                  -bound, bound)
        b_hh = jax.random.uniform(k4, (1, 3 * hidden_size), jnp.float32,
                                  -bound, bound)
        params["gru_layers"].append(
            {"w_ih": w_ih, "w_hh": w_hh, "b_ih": b_ih, "b_hh": b_hh})

    feat = hidden_size * seq_len
    fbound = 1.0 / jnp.sqrt(feat)
    key, k1, k2 = jax.random.split(key, 3)
    params["fc_w"] = jax.random.uniform(k1, (num_classes, feat), jnp.float32,
                                        -fbound, fbound).T    # (T*H, C)
    params["fc_b"] = jax.random.uniform(k2, (1, num_classes), jnp.float32,
                                        -fbound, fbound)
    return params


def pack_params(params, hidden_size, num_classes, seq_len,
                weight_dtype=jnp.float32):
    """One-time prep: bias folding, FC reshape/lane-padding, optional bf16 cast.

    weight_dtype=jnp.bfloat16 is recommended on v6e/v7x (MXU bf16 path, f32
    accumulation kept via preferred_element_type); default f32 for exact check.
    """
    assert len(params["gru_layers"]) == 2, "fused kernel is written for 2 layers"
    H = hidden_size
    Cp = _round_up(max(num_classes, 128), 128)
    kp = {}
    for li, lp in enumerate(params["gru_layers"], start=1):
        b_ih, b_hh = lp["b_ih"], lp["b_hh"]
        # r/z gates: fold b_ih + b_hh; n gate keeps only b_in here (b_hn stays
        # inside the r*(.) term to match PyTorch exactly).
        b_comb = b_ih + jnp.concatenate(
            [b_hh[:, :2 * H], jnp.zeros((1, H), b_hh.dtype)], axis=1)
        kp[f"w_ih{li}"] = lp["w_ih"].astype(weight_dtype)
        kp[f"w_hh{li}"] = lp["w_hh"].astype(weight_dtype)
        kp[f"b{li}"] = b_comb
        kp[f"b_hn{li}"] = b_hh[:, 2 * H:]
    fc_w3 = params["fc_w"].reshape(seq_len, H, num_classes)       # (T, H, C)
    fc_w3 = jnp.pad(fc_w3, ((0, 0), (0, 0), (0, Cp - num_classes)))
    kp["fc_w3"] = fc_w3.astype(weight_dtype)
    kp["fc_b"] = jnp.pad(params["fc_b"], ((0, 0), (0, Cp - num_classes)))
    return kp


# -------------------------- pure-JAX reference (check) -----------------------
def gru_layer_ref(x_tbd, w_ih, w_hh, b_ih, b_hh):
    H = w_hh.shape[0]

    def step(h, x_t):
        gi = x_t @ w_ih + b_ih
        gh = h @ w_hh + b_hh
        r = jax.nn.sigmoid(gi[:, :H] + gh[:, :H])
        z = jax.nn.sigmoid(gi[:, H:2 * H] + gh[:, H:2 * H])
        n = jnp.tanh(gi[:, 2 * H:] + r * gh[:, 2 * H:])
        h_new = (1.0 - z) * n + z * h
        return h_new, h_new

    h0 = jnp.zeros((x_tbd.shape[1], H), jnp.float32)
    _, ys = jax.lax.scan(step, h0, x_tbd)
    return ys


def rnn_gru_ref(x_btd, params):
    x = jnp.transpose(x_btd, (1, 0, 2))
    h = x
    for lp in params["gru_layers"]:
        h = gru_layer_ref(h, lp["w_ih"], lp["w_hh"], lp["b_ih"], lp["b_hh"])
    out_bth = jnp.transpose(h, (1, 0, 2))
    flat = out_bth.reshape(out_bth.shape[0], -1)
    return flat @ params["fc_w"] + params["fc_b"]


# ---------------------------------- main -------------------------------------
if __name__ == "__main__":
    # Small shapes consistent with the module's forward.
    batch = 4
    seq_len = 8          # sequence_length (kept small; kernel is seq-agnostic)
    input_size = 28
    hidden_size = 128
    num_layers = 2
    num_classes = 10

    key = jax.random.PRNGKey(0)
    key, xkey, pkey = jax.random.split(key, 3)
    x = jax.random.normal(xkey, (batch, seq_len, input_size), jnp.float32)
    params = init_params(pkey, input_size, hidden_size, num_layers,
                         num_classes, seq_len)
    kparams = pack_params(params, hidden_size, num_classes, seq_len)

    out = rnn_gru_forward(x, kparams, num_classes=num_classes)
    out = jax.block_until_ready(out)

    ref = jax.block_until_ready(rnn_gru_ref(x, params))
    assert out.shape == (batch, num_classes)
    assert jnp.allclose(out, ref, atol=1e-4, rtol=1e-4), "mismatch vs reference"

    print("KERNEL_OK")
</pallas_src>

<mosaic_0001>
module attributes {stable_mosaic.version = 11 : i64} {
  func.func @_fused_gru_kernel(%arg0: i32, %arg1: memref<64x28xf32, #tpu.memory_space<vmem>>, %arg2: memref<28x384xf32, #tpu.memory_space<vmem>>, %arg3: memref<128x384xf32, #tpu.memory_space<vmem>>, %arg4: memref<1x384xf32, #tpu.memory_space<vmem>>, %arg5: memref<1x128xf32, #tpu.memory_space<vmem>>, %arg6: memref<128x384xf32, #tpu.memory_space<vmem>>, %arg7: memref<128x384xf32, #tpu.memory_space<vmem>>, %arg8: memref<1x384xf32, #tpu.memory_space<vmem>>, %arg9: memref<1x128xf32, #tpu.memory_space<vmem>>, %arg10: memref<8x128x128xf32, #tpu.memory_space<vmem>>, %arg11: memref<1x128xf32, #tpu.memory_space<vmem>>, %arg12: memref<8x128xf32, #tpu.memory_space<vmem>>, %arg13: memref<64x384xf32, #tpu.memory_space<vmem>>, %arg14: memref<64x128xf32, #tpu.memory_space<vmem>>, %arg15: memref<64x384xf32, #tpu.memory_space<vmem>>) attributes {dimension_semantics = [#tpu.dimension_semantics<arbitrary>], iteration_bounds = array<i64: 1>, scalar_prefetch = 0 : i64, scratch_operands = 3 : i64, tpu.core_type = #tpu.core_type<tc>, window_params = [{pipeline_mode = #tpu.pipeline_mode<synchronous>, transform_indices = @transform_0, window_bounds = array<i64: 64, 28>}, {pipeline_mode = #tpu.pipeline_mode<synchronous>, transform_indices = @transform_1, window_bounds = array<i64: 28, 384>}, {pipeline_mode = #tpu.pipeline_mode<synchronous>, transform_indices = @transform_2, window_bounds = array<i64: 128, 384>}, {pipeline_mode = #tpu.pipeline_mode<synchronous>, transform_indices = @transform_3, window_bounds = array<i64: 1, 384>}, {pipeline_mode = #tpu.pipeline_mode<synchronous>, transform_indices = @transform_4, window_bounds = array<i64: 1, 128>}, {pipeline_mode = #tpu.pipeline_mode<synchronous>, transform_indices = @transform_5, window_bounds = array<i64: 128, 384>}, {pipeline_mode = #tpu.pipeline_mode<synchronous>, transform_indices = @transform_6, window_bounds = array<i64: 128, 384>}, {pipeline_mode = #tpu.pipeline_mode<synchronous>, transform_indices = @transform_7, window_bounds = array<i64: 1, 384>}, {pipeline_mode = #tpu.pipeline_mode<synchronous>, transform_indices = @transform_8, window_bounds = array<i64: 1, 128>}, {pipeline_mode = #tpu.pipeline_mode<synchronous>, transform_indices = @transform_9, window_bounds = array<i64: 8, 128, 128>}, {pipeline_mode = #tpu.pipeline_mode<synchronous>, transform_indices = @transform_10, window_bounds = array<i64: 1, 128>}, {pipeline_mode = #tpu.pipeline_mode<synchronous>, transform_indices = @transform_11, window_bounds = array<i64: 8, 128>}]} {
    %c0 = arith.constant 0 : index
    %c0_0 = arith.constant 0 : index
    %0 = vector.load %arg1[%c0, %c0_0] : memref<64x28xf32, #tpu.memory_space<vmem>>, vector<64x28xf32>
    %c0_1 = arith.constant 0 : index
    %c0_2 = arith.constant 0 : index
    %1 = vector.load %arg2[%c0_1, %c0_2] : memref<28x384xf32, #tpu.memory_space<vmem>>, vector<28x384xf32>
    %cst = arith.constant dense<0.000000e+00> : vector<64x384xf32>
    %2 = tpu.matmul %0, %1, %cst {dimension_numbers = #tpu.dot_dimension_numbers<[1], [0], [0], [1], [0, 0, 1, 1], [], []>} : vector<64x28xf32>, vector<28x384xf32>, vector<64x384xf32> -> vector<64x384xf32>
    %c0_3 = arith.constant 0 : index
    %c0_4 = arith.constant 0 : index
    %3 = vector.load %arg4[%c0_3, %c0_4] : memref<1x384xf32, #tpu.memory_space<vmem>>, vector<1x384xf32>
    %4 = vector.broadcast %3 : vector<1x384xf32> to vector<64x384xf32>
    %5 = arith.addf %2, %4 : vector<64x384xf32>
    %c0_5 = arith.constant 0 : index
    %c0_6 = arith.constant 0 : index
    %6 = vector.load %arg13[%c0_5, %c0_6] : memref<64x384xf32, #tpu.memory_space<vmem>>, vector<64x384xf32>
    tpu.vector_store %arg13[%c0_5, %c0_6], %5 {strides = array<i32>} : memref<64x384xf32, #tpu.memory_space<vmem>>, vector<64x384xf32>,
    %cst_7 = arith.constant 0.000000e+00 : f32
    %7 = vector.broadcast %cst_7 : f32 to vector<8x128xf32>
    %c0_8 = arith.constant 0 : index
    %c0_9 = arith.constant 0 : index
    %8 = vector.load %arg13[%c0_8, %c0_9] : memref<64x384xf32, #tpu.memory_space<vmem>>, vector<8x384xf32>
    %c0_10 = arith.constant 0 : index
    %c0_11 = arith.constant 0 : index
    %9 = vector.load %arg3[%c0_10, %c0_11] : memref<128x384xf32, #tpu.memory_space<vmem>>, vector<128x384xf32>
    %cst_12 = arith.constant dense<0.000000e+00> : vector<8x384xf32>
    %10 = tpu.matmul %7, %9, %cst_12 {dimension_numbers = #tpu.dot_dimension_numbers<[1], [0], [0], [1], [0, 0, 1, 1], [], []>} : vector<8x128xf32>, vector<128x384xf32>, vector<8x384xf32> -> vector<8x384xf32>
    %11 = vector.extract_strided_slice %8 {offsets = [0, 0], sizes = [8, 128], strides = [1, 1]} : vector<8x384xf32> to vector<8x128xf32>
    %12 = vector.extract_strided_slice %10 {offsets = [0, 0], sizes = [8, 128], strides = [1, 1]} : vector<8x384xf32> to vector<8x128xf32>
    %13 = arith.addf %11, %12 : vector<8x128xf32>
    %14 = arith.negf %13 : vector<8x128xf32>
    %15 = math.exp %14 : vector<8x128xf32>
    %cst_13 = arith.constant 1.000000e+00 : f32
    %16 = vector.broadcast %cst_13 : f32 to vector<8x128xf32>
    %17 = arith.addf %16, %15 : vector<8x128xf32>
    %18 = arith.divf %16, %17 : vector<8x128xf32>
    %19 = vector.extract_strided_slice %8 {offsets = [0, 128], sizes = [8, 128], strides = [1, 1]} : vector<8x384xf32> to vector<8x128xf32>
    %20 = vector.extract_strided_slice %10 {offsets = [0, 128], sizes = [8, 128], strides = [1, 1]} : vector<8x384xf32> to vector<8x128xf32>
    %21 = arith.addf %19, %20 : vector<8x128xf32>
    %22 = arith.negf %21 : vector<8x128xf32>
    %23 = math.exp %22 : vector<8x128xf32>
    %cst_14 = arith.constant 1.000000e+00 : f32
    %24 = vector.broadcast %cst_14 : f32 to vector<8x128xf32>
    %25 = arith.addf %24, %23 : vector<8x128xf32>
    %26 = arith.divf %24, %25 : vector<8x128xf32>
    %27 = vector.extract_strided_slice %8 {offsets = [0, 256], sizes = [8, 128], strides = [1, 1]} : vector<8x384xf32> to vector<8x128xf32>
    %28 = vector.extract_strided_slice %10 {offsets = [0, 256], sizes = [8, 128], strides = [1, 1]} : vector<8x384xf32> to vector<8x128xf32>
    %c0_15 = arith.constant 0 : index
    %c0_16 = arith.constant 0 : index
    %29 = vector.load %arg5[%c0_15, %c0_16] : memref<1x128xf32, #tpu.memory_space<vmem>>, vector<1x128xf32>
    %30 = vector.broadcast %29 : vector<1x128xf32> to vector<8x128xf32>
    %31 = arith.addf %28, %30 : vector<8x128xf32>
    %32 = arith.mulf %18, %31 : vector<8x128xf32>
    %33 = arith.addf %27, %32 : vector<8x128xf32>
    %34 = math.tanh %33 : vector<8x128xf32>
    %cst_17 = arith.constant 1.000000e+00 : f32
    %35 = vector.broadcast %cst_17 : f32 to vector<8x128xf32>
    %36 = arith.subf %35, %26 : vector<8x128xf32>
    %37 = arith.mulf %36, %34 : vector<8x128xf32>
    %38 = arith.mulf %26, %7 : vector<8x128xf32>
    %39 = arith.addf %37, %38 : vector<8x128xf32>
    %c0_18 = arith.constant 0 : index
    %c0_19 = arith.constant 0 : index
    %40 = vector.load %arg14[%c0_18, %c0_19] : memref<64x128xf32, #tpu.memory_space<vmem>>, vector<8x128xf32>
    tpu.vector_store %arg14[%c0_18, %c0_19], %39 {strides = array<i32>} : memref<64x128xf32, #tpu.memory_space<vmem>>, vector<8x128xf32>,
    %c8 = arith.constant 8 : index
    %c0_20 = arith.constant 0 : index
    %41 = vector.load %arg13[%c8, %c0_20] : memref<64x384xf32, #tpu.memory_space<vmem>>, vector<8x384xf32>
    %c0_21 = arith.constant 0 : index
    %c0_22 = arith.constant 0 : index
    %42 = vector.load %arg3[%c0_21, %c0_22] : memref<128x384xf32, #tpu.memory_space<vmem>>, vector<128x384xf32>
    %cst_23 = arith.constant dense<0.000000e+00> : vector<8x384xf32>
    %43 = tpu.matmul %39, %42, %cst_23 {dimension_numbers = #tpu.dot_dimension_numbers<[1], [0], [0], [1], [0, 0, 1, 1], [], []>} : vector<8x128xf32>, vector<128x384xf32>, vector<8x384xf32> -> vector<8x384xf32>
    %44 = vector.extract_strided_slice %41 {offsets = [0, 0], sizes = [8, 128], strides = [1, 1]} : vector<8x384xf32> to vector<8x128xf32>
    %45 = vector.extract_strided_slice %43 {offsets = [0, 0], sizes = [8, 128], strides = [1, 1]} : vector<8x384xf32> to vector<8x128xf32>
    %46 = arith.addf %44, %45 : vector<8x128xf32>
    %47 = arith.negf %46 : vector<8x128xf32>
    %48 = math.exp %47 : vector<8x128xf32>
    %cst_24 = arith.constant 1.000000e+00 : f32
    %49 = vector.broadcast %cst_24 : f32 to vector<8x128xf32>
    %50 = arith.addf %49, %48 : vector<8x128xf32>
    %51 = arith.divf %49, %50 : vector<8x128xf32>
    %52 = vector.extract_strided_slice %41 {offsets = [0, 128], sizes = [8, 128], strides = [1, 1]} : vector<8x384xf32> to vector<8x128xf32>
    %53 = vector.extract_strided_slice %43 {offsets = [0, 128], sizes = [8, 128], strides = [1, 1]} : vector<8x384xf32> to vector<8x128xf32>
    %54 = arith.addf %52, %53 : vector<8x128xf32>
    %55 = arith.negf %54 : vector<8x128xf32>
    %56 = math.exp %55 : vector<8x128xf32>
    %cst_25 = arith.constant 1.000000e+00 : f32
    %57 = vector.broadcast %cst_25 : f32 to vector<8x128xf32>
    %58 = arith.addf %57, %56 : vector<8x128xf32>
    %59 = arith.divf %57, %58 : vector<8x128xf32>
    %60 = vector.extract_strided_slice %41 {offsets = [0, 256], sizes = [8, 128], strides = [1, 1]} : vector<8x384xf32> to vector<8x128xf32>
    %61 = vector.extract_strided_slice %43 {offsets = [0, 256], sizes = [8, 128], strides = [1, 1]} : vector<8x384xf32> to vector<8x128xf32>
    %c0_26 = arith.constant 0 : index
    %c0_27 = arith.constant 0 : index
    %62 = vector.load %arg5[%c0_26, %c0_27] : memref<1x128xf32, #tpu.memory_space<vmem>>, vector<1x128xf32>
    %63 = vector.broadcast %62 : vector<1x128xf32> to vector<8x128xf32>
    %64 = arith.addf %61, %63 : vector<8x128xf32>
    %65 = arith.mulf %51, %64 : vector<8x128xf32>
    %66 = arith.addf %60, %65 : vector<8x128xf32>
    %67 = math.tanh %66 : vector<8x128xf32>
    %cst_28 = arith.constant 1.000000e+00 : f32
    %68 = vector.broadcast %cst_28 : f32 to vector<8x128xf32>
    %69 = arith.subf %68, %59 : vector<8x128xf32>
    %70 = arith.mulf %69, %67 : vector<8x128xf32>
    %71 = arith.mulf %59, %39 : vector<8x128xf32>
    %72 = arith.addf %70, %71 : vector<8x128xf32>
    %c8_29 = arith.constant 8 : index
    %c0_30 = arith.constant 0 : index
    %73 = vector.load %arg14[%c8_29, %c0_30] : memref<64x128xf32, #tpu.memory_space<vmem>>, vector<8x128xf32>
    tpu.vector_store %arg14[%c8_29, %c0_30], %72 {strides = array<i32>} : memref<64x128xf32, #tpu.memory_space<vmem>>, vector<8x128xf32>,
    %c16 = arith.constant 16 : index
    %c0_31 = arith.constant 0 : index
    %74 = vector.load %arg13[%c16, %c0_31] : memref<64x384xf32, #tpu.memory_space<vmem>>, vector<8x384xf32>
    %c0_32 = arith.constant 0 : index
    %c0_33 = arith.constant 0 : index
    %75 = vector.load %arg3[%c0_32, %c0_33] : memref<128x384xf32, #tpu.memory_space<vmem>>, vector<128x384xf32>
    %cst_34 = arith.constant dense<0.000000e+00> : vector<8x384xf32>
    %76 = tpu.matmul %72, %75, %cst_34 {dimension_numbers = #tpu.dot_dimension_numbers<[1], [0], [0], [1], [0, 0, 1, 1], [], []>} : vector<8x128xf32>, vector<128x384xf32>, vector<8x384xf32> -> vector<8x384xf32>
    %77 = vector.extract_strided_slice %74 {offsets = [0, 0], sizes = [8, 128], strides = [1, 1]} : vector<8x384xf32> to vector<8x128xf32>
    %78 = vector.extract_strided_slice %76 {offsets = [0, 0], sizes = [8, 128], strides = [1, 1]} : vector<8x384xf32> to vector<8x128xf32>
    %79 = arith.addf %77, %78 : vector<8x128xf32>
    %80 = arith.negf %79 : vector<8x128xf32>
    %81 = math.exp %80 : vector<8x128xf32>
    %cst_35 = arith.constant 1.000000e+00 : f32
    %82 = vector.broadcast %cst_35 : f32 to vector<8x128xf32>
    %83 = arith.addf %82, %81 : vector<8x128xf32>
    %84 = arith.divf %82, %83 : vector<8x128xf32>
    %85 = vector.extract_strided_slice %74 {offsets = [0, 128], sizes = [8, 128], strides = [1, 1]} : vector<8x384xf32> to vector<8x128xf32>
    %86 = vector.extract_strided_slice %76 {offsets = [0, 128], sizes = [8, 128], strides = [1, 1]} : vector<8x384xf32> to vector<8x128xf32>
    %87 = arith.addf %85, %86 : vector<8x128xf32>
    %88 = arith.negf %87 : vector<8x128xf32>
    %89 = math.exp %88 : vector<8x128xf32>
    %cst_36 = arith.constant 1.000000e+00 : f32
    %90 = vector.broadcast %cst_36 : f32 to vector<8x128xf32>
    %91 = arith.addf %90, %89 : vector<8x128xf32>
    %92 = arith.divf %90, %91 : vector<8x128xf32>
    %93 = vector.extract_strided_slice %74 {offsets = [0, 256], sizes = [8, 128], strides = [1, 1]} : vector<8x384xf32> to vector<8x128xf32>
    %94 = vector.extract_strided_slice %76 {offsets = [0, 256], sizes = [8, 128], strides = [1, 1]} : vector<8x384xf32> to vector<8x128xf32>
    %c0_37 = arith.constant 0 : index
    %c0_38 = arith.constant 0 : index
    %95 = vector.load %arg5[%c0_37, %c0_38] : memref<1x128xf32, #tpu.memory_space<vmem>>, vector<1x128xf32>
    %96 = vector.broadcast %95 : vector<1x128xf32> to vector<8x128xf32>
    %97 = arith.addf %94, %96 : vector<8x128xf32>
    %98 = arith.mulf %84, %97 : vector<8x128xf32>
    %99 = arith.addf %93, %98 : vector<8x128xf32>
    %100 = math.tanh %99 : vector<8x128xf32>
    %cst_39 = arith.constant 1.000000e+00 : f32
    %101 = vector.broadcast %cst_39 : f32 to vector<8x128xf32>
    %102 = arith.subf %101, %92 : vector<8x128xf32>
    %103 = arith.mulf %102, %100 : vector<8x128xf32>
    %104 = arith.mulf %92, %72 : vector<8x128xf32>
    %105 = arith.addf %103, %104 : vector<8x128xf32>
    %c16_40 = arith.constant 16 : index
    %c0_41 = arith.constant 0 : index
    %106 = vector.load %arg14[%c16_40, %c0_41] : memref<64x128xf32, #tpu.memory_space<vmem>>, vector<8x128xf32>
    tpu.vector_store %arg14[%c16_40, %c0_41], %105 {strides = array<i32>} : memref<64x128xf32, #tpu.memory_space<vmem>>, vector<8x128xf32>,
    %c24 = arith.constant 24 : index
    %c0_42 = arith.constant 0 : index
    %107 = vector.load %arg13[%c24, %c0_42] : memref<64x384xf32, #tpu.memory_space<vmem>>, vector<8x384xf32>
    %c0_43 = arith.constant 0 : index
    %c0_44 = arith.constant 0 : index
    %108 = vector.load %arg3[%c0_43, %c0_44] : memref<128x384xf32, #tpu.memory_space<vmem>>, vector<128x384xf32>
    %cst_45 = arith.constant dense<0.000000e+00> : vector<8x384xf32>
    %109 = tpu.matmul %105, %108, %cst_45 {dimension_numbers = #tpu.dot_dimension_numbers<[1], [0], [0], [1], [0, 0, 1, 1], [], []>} : vector<8x128xf32>, vector<128x384xf32>, vector<8x384xf32> -> vector<8x384xf32>
    %110 = vector.extract_strided_slice %107 {offsets = [0, 0], sizes = [8, 128], strides = [1, 1]} : vector<8x384xf32> to vector<8x128xf32>
    %111 = vector.extract_strided_slice %109 {offsets = [0, 0], sizes = [8, 128], strides = [1, 1]} : vector<8x384xf32> to vector<8x128xf32>
    %112 = arith.addf %110, %111 : vector<8x128xf32>
    %113 = arith.negf %112 : vector<8x128xf32>
    %114 = math.exp %113 : vector<8x128xf32>
    %cst_46 = arith.constant 1.000000e+00 : f32
    %115 = vector.broadcast %cst_46 : f32 to vector<8x128xf32>
    %116 = arith.addf %115, %114 : vector<8x128xf32>
    %117 = arith.divf %115, %116 : vector<8x128xf32>
    %118 = vector.extract_strided_slice %107 {offsets = [0, 128], sizes = [8, 128], strides = [1, 1]} : vector<8x384xf32> to vector<8x128xf32>
    %119 = vector.extract_strided_slice %109 {offsets = [0, 128], sizes = [8, 128], strides = [1, 1]} : vector<8x384xf32> to vector<8x128xf32>
    %120 = arith.addf %118, %119 : vector<8x128xf32>
    %121 = arith.negf %120 : vector<8x128xf32>
    %122 = math.exp %121 : vector<8x128xf32>
    %cst_47 = arith.constant 1.000000e+00 : f32
    %123 = vector.broadcast %cst_47 : f32 to vector<8x128xf32>
    %124 = arith.addf %123, %122 : vector<8x128xf32>
    %125 = arith.divf %123, %124 : vector<8x128xf32>
    %126 = vector.extract_strided_slice %107 {offsets = [0, 256], sizes = [8, 128], strides = [1, 1]} : vector<8x384xf32> to vector<8x128xf32>
    %127 = vector.extract_strided_slice %109 {offsets = [0, 256], sizes = [8, 128], strides = [1, 1]} : vector<8x384xf32> to vector<8x128xf32>
    %c0_48 = arith.constant 0 : index
    %c0_49 = arith.constant 0 : index
    %128 = vector.load %arg5[%c0_48, %c0_49] : memref<1x128xf32, #tpu.memory_space<vmem>>, vector<1x128xf32>
    %129 = vector.broadcast %128 : vector<1x128xf32> to vector<8x128xf32>
    %130 = arith.addf %127, %129 : vector<8x128xf32>
    %131 = arith.mulf %117, %130 : vector<8x128xf32>
    %132 = arith.addf %126, %131 : vector<8x128xf32>
    %133 = math.tanh %132 : vector<8x128xf32>
    %cst_50 = arith.constant 1.000000e+00 : f32
    %134 = vector.broadcast %cst_50 : f32 to vector<8x128xf32>
    %135 = arith.subf %134, %125 : vector<8x128xf32>
    %136 = arith.mulf %135, %133 : vector<8x128xf32>
    %137 = arith.mulf %125, %105 : vector<8x128xf32>
    %138 = arith.addf %136, %137 : vector<8x128xf32>
    %c24_51 = arith.constant 24 : index
    %c0_52 = arith.constant 0 : index
    %139 = vector.load %arg14[%c24_51, %c0_52] : memref<64x128xf32, #tpu.memory_space<vmem>>, vector<8x128xf32>
    tpu.vector_store %arg14[%c24_51, %c0_52], %138 {strides = array<i32>} : memref<64x128xf32, #tpu.memory_space<vmem>>, vector<8x128xf32>,
    %c32 = arith.constant 32 : index
    %c0_53 = arith.constant 0 : index
    %140 = vector.load %arg13[%c32, %c0_53] : memref<64x384xf32, #tpu.memory_space<vmem>>, vector<8x384xf32>
    %c0_54 = arith.constant 0 : index
    %c0_55 = arith.constant 0 : index
    %141 = vector.load %arg3[%c0_54, %c0_55] : memref<128x384xf32, #tpu.memory_space<vmem>>, vector<128x384xf32>
    %cst_56 = arith.constant dense<0.000000e+00> : vector<8x384xf32>
    %142 = tpu.matmul %138, %141, %cst_56 {dimension_numbers = #tpu.dot_dimension_numbers<[1], [0], [0], [1], [0, 0, 1, 1], [], []>} : vector<8x128xf32>, vector<128x384xf32>, vector<8x384xf32> -> vector<8x384xf32>
    %143 = vector.extract_strided_slice %140 {offsets = [0, 0], sizes = [8, 128], strides = [1, 1]} : vector<8x384xf32> to vector<8x128xf32>
    %144 = vector.extract_strided_slice %142 {offsets = [0, 0], sizes = [8, 128], strides = [1, 1]} : vector<8x384xf32> to vector<8x128xf32>
    %145 = arith.addf %143, %144 : vector<8x128xf32>
    %146 = arith.negf %145 : vector<8x128xf32>
    %147 = math.exp %146 : vector<8x128xf32>
    %cst_57 = arith.constant 1.000000e+00 : f32
    %148 = vector.broadcast %cst_57 : f32 to vector<8x128xf32>
    %149 = arith.addf %148, %147 : vector<8x128xf32>
    %150 = arith.divf %148, %149 : vector<8x128xf32>
    %151 = vector.extract_strided_slice %140 {offsets = [0, 128], sizes = [8, 128], strides = [1, 1]} : vector<8x384xf32> to vector<8x128xf32>
    %152 = vector.extract_strided_slice %142 {offsets = [0, 128], sizes = [8, 128], strides = [1, 1]} : vector<8x384xf32> to vector<8x128xf32>
    %153 = arith.addf %151, %152 : vector<8x128xf32>
    %154 = arith.negf %153 : vector<8x128xf32>
    %155 = math.exp %154 : vector<8x128xf32>
    %cst_58 = arith.constant 1.000000e+00 : f32
    %156 = vector.broadcast %cst_58 : f32 to vector<8x128xf32>
    %157 = arith.addf %156, %155 : vector<8x128xf32>
    %158 = arith.divf %156, %157 : vector<8x128xf32>
    %159 = vector.extract_strided_slice %140 {offsets = [0, 256], sizes = [8, 128], strides = [1, 1]} : vector<8x384xf32> to vector<8x128xf32>
    %160 = vector.extract_strided_slice %142 {offsets = [0, 256], sizes = [8, 128], strides = [1, 1]} : vector<8x384xf32> to vector<8x128xf32>
    %c0_59 = arith.constant 0 : index
    %c0_60 = arith.constant 0 : index
    %161 = vector.load %arg5[%c0_59, %c0_60] : memref<1x128xf32, #tpu.memory_space<vmem>>, vector<1x128xf32>
    %162 = vector.broadcast %161 : vector<1x128xf32> to vector<8x128xf32>
    %163 = arith.addf %160, %162 : vector<8x128xf32>
    %164 = arith.mulf %150, %163 : vector<8x128xf32>
    %165 = arith.addf %159, %164 : vector<8x128xf32>
    %166 = math.tanh %165 : vector<8x128xf32>
    %cst_61 = arith.constant 1.000000e+00 : f32
    %167 = vector.broadcast %cst_61 : f32 to vector<8x128xf32>
    %168 = arith.subf %167, %158 : vector<8x128xf32>
    %169 = arith.mulf %168, %166 : vector<8x128xf32>
    %170 = arith.mulf %158, %138 : vector<8x128xf32>
    %171 = arith.addf %169, %170 : vector<8x128xf32>
    %c32_62 = arith.constant 32 : index
    %c0_63 = arith.constant 0 : index
    %172 = vector.load %arg14[%c32_62, %c0_63] : memref<64x128xf32, #tpu.memory_space<vmem>>, vector<8x128xf32>
    tpu.vector_store %arg14[%c32_62, %c0_63], %171 {strides = array<i32>} : memref<64x128xf32, #tpu.memory_space<vmem>>, vector<8x128xf32>,
    %c40 = arith.constant 40 : index
    %c0_64 = arith.constant 0 : index
    %173 = vector.load %arg13[%c40, %c0_64] : memref<64x384xf32, #tpu.memory_space<vmem>>, vector<8x384xf32>
    %c0_65 = arith.constant 0 : index
    %c0_66 = arith.constant 0 : index
    %174 = vector.load %arg3[%c0_65, %c0_66] : memref<128x384xf32, #tpu.memory_space<vmem>>, vector<128x384xf32>
    %cst_67 = arith.constant dense<0.000000e+00> : vector<8x384xf32>
    %175 = tpu.matmul %171, %174, %cst_67 {dimension_numbers = #tpu.dot_dimension_numbers<[1], [0], [0], [1], [0, 0, 1, 1], [], []>} : vector<8x128xf32>, vector<128x384xf32>, vector<8x384xf32> -> vector<8x384xf32>
    %176 = vector.extract_strided_slice %173 {offsets = [0, 0], sizes = [8, 128], strides = [1, 1]} : vector<8x384xf32> to vector<8x128xf32>
    %177 = vector.extract_strided_slice %175 {offsets = [0, 0], sizes = [8, 128], strides = [1, 1]} : vector<8x384xf32> to vector<8x128xf32>
    %178 = arith.addf %176, %177 : vector<8x128xf32>
    %179 = arith.negf %178 : vector<8x128xf32>
    %180 = math.exp %179 : vector<8x128xf32>
    %cst_68 = arith.constant 1.000000e+00 : f32
    %181 = vector.broadcast %cst_68 : f32 to vector<8x128xf32>
    %182 = arith.addf %181, %180 : vector<8x128xf32>
    %183 = arith.divf %181, %182 : vector<8x128xf32>
    %184 = vector.extract_strided_slice %173 {offsets = [0, 128], sizes = [8, 128], strides = [1, 1]} : vector<8x384xf32> to vector<8x128xf32>
    %185 = vector.extract_strided_slice %175 {offsets = [0, 128], sizes = [8, 128], strides = [1, 1]} : vector<8x384xf32> to vector<8x128xf32>
    %186 = arith.addf %184, %185 : vector<8x128xf32>
    %187 = arith.negf %186 : vector<8x128xf32>
    %188 = math.exp %187 : vector<8x128xf32>
    %cst_69 = arith.constant 1.000000e+00 : f32
    %189 = vector.broadcast %cst_69 : f32 to vector<8x128xf32>
    %190 = arith.addf %189, %188 : vector<8x128xf32>
    %191 = arith.divf %189, %190 : vector<8x128xf32>
    %192 = vector.extract_strided_slice %173 {offsets = [0, 256], sizes = [8, 128], strides = [1, 1]} : vector<8x384xf32> to vector<8x128xf32>
    %193 = vector.extract_strided_slice %175 {offsets = [0, 256], sizes = [8, 128], strides = [1, 1]} : vector<8x384xf32> to vector<8x128xf32>
    %c0_70 = arith.constant 0 : index
    %c0_71 = arith.constant 0 : index
    %194 = vector.load %arg5[%c0_70, %c0_71] : memref<1x128xf32, #tpu.memory_space<vmem>>, vector<1x128xf32>
    %195 = vector.broadcast %194 : vector<1x128xf32> to vector<8x128xf32>
    %196 = arith.addf %193, %195 : vector<8x128xf32>
    %197 = arith.mulf %183, %196 : vector<8x128xf32>
    %198 = arith.addf %192, %197 : vector<8x128xf32>
    %199 = math.tanh %198 : vector<8x128xf32>
    %cst_72 = arith.constant 1.000000e+00 : f32
    %200 = vector.broadcast %cst_72 : f32 to vector<8x128xf32>
    %201 = arith.subf %200, %191 : vector<8x128xf32>
    %202 = arith.mulf %201, %199 : vector<8x128xf32>
    %203 = arith.mulf %191, %171 : vector<8x128xf32>
    %204 = arith.addf %202, %203 : vector<8x128xf32>
    %c40_73 = arith.constant 40 : index
    %c0_74 = arith.constant 0 : index
    %205 = vector.load %arg14[%c40_73, %c0_74] : memref<64x128xf32, #tpu.memory_space<vmem>>, vector<8x128xf32>
    tpu.vector_store %arg14[%c40_73, %c0_74], %204 {strides = array<i32>} : memref<64x128xf32, #tpu.memory_space<vmem>>, vector<8x128xf32>,
    %c48 = arith.constant 48 : index
    %c0_75 = arith.constant 0 : index
    %206 = vector.load %arg13[%c48, %c0_75] : memref<64x384xf32, #tpu.memory_space<vmem>>, vector<8x384xf32>
    %c0_76 = arith.constant 0 : index
    %c0_77 = arith.constant 0 : index
    %207 = vector.load %arg3[%c0_76, %c0_77] : memref<128x384xf32, #tpu.memory_space<vmem>>, vector<128x384xf32>
    %cst_78 = arith.constant dense<0.000000e+00> : vector<8x384xf32>
    %208 = tpu.matmul %204, %207, %cst_78 {dimension_numbers = #tpu.dot_dimension_numbers<[1], [0], [0], [1], [0, 0, 1, 1], [], []>} : vector<8x128xf32>, vector<128x384xf32>, vector<8x384xf32> -> vector<8x384xf32>
    %209 = vector.extract_strided_slice %206 {offsets = [0, 0], sizes = [8, 128], strides = [1, 1]} : vector<8x384xf32> to vector<8x128xf32>
    %210 = vector.extract_strided_slice %208 {offsets = [0, 0], sizes = [8, 128], strides = [1, 1]} : vector<8x384xf32> to vector<8x128xf32>
    %211 = arith.addf %209, %210 : vector<8x128xf32>
    %212 = arith.negf %211 : vector<8x128xf32>
    %213 = math.exp %212 : vector<8x128xf32>
    %cst_79 = arith.constant 1.000000e+00 : f32
    %214 = vector.broadcast %cst_79 : f32 to vector<8x128xf32>
    %215 = arith.addf %214, %213 : vector<8x128xf32>
    %216 = arith.divf %214, %215 : vector<8x128xf32>
    %217 = vector.extract_strided_slice %206 {offsets = [0, 128], sizes = [8, 128], strides = [1, 1]} : vector<8x384xf32> to vector<8x128xf32>
    %218 = vector.extract_strided_slice %208 {offsets = [0, 128], sizes = [8, 128], strides = [1, 1]} : vector<8x384xf32> to vector<8x128xf32>
    %219 = arith.addf %217, %218 : vector<8x128xf32>
    %220 = arith.negf %219 : vector<8x128xf32>
    %221 = math.exp %220 : vector<8x128xf32>
    %cst_80 = arith.constant 1.000000e+00 : f32
    %222 = vector.broadcast %cst_80 : f32 to vector<8x128xf32>
    %223 = arith.addf %222, %221 : vector<8x128xf32>
    %224 = arith.divf %222, %223 : vector<8x128xf32>
    %225 = vector.extract_strided_slice %206 {offsets = [0, 256], sizes = [8, 128], strides = [1, 1]} : vector<8x384xf32> to vector<8x128xf32>
    %226 = vector.extract_strided_slice %208 {offsets = [0, 256], sizes = [8, 128], strides = [1, 1]} : vector<8x384xf32> to vector<8x128xf32>
    %c0_81 = arith.constant 0 : index
    %c0_82 = arith.constant 0 : index
    %227 = vector.load %arg5[%c0_81, %c0_82] : memref<1x128xf32, #tpu.memory_space<vmem>>, vector<1x128xf32>
    %228 = vector.broadcast %227 : vector<1x128xf32> to vector<8x128xf32>
    %229 = arith.addf %226, %228 : vector<8x128xf32>
    %230 = arith.mulf %216, %229 : vector<8x128xf32>
    %231 = arith.addf %225, %230 : vector<8x128xf32>
    %232 = math.tanh %231 : vector<8x128xf32>
    %cst_83 = arith.constant 1.000000e+00 : f32
    %233 = vector.broadcast %cst_83 : f32 to vector<8x128xf32>
    %234 = arith.subf %233, %224 : vector<8x128xf32>
    %235 = arith.mulf %234, %232 : vector<8x128xf32>
    %236 = arith.mulf %224, %204 : vector<8x128xf32>
    %237 = arith.addf %235, %236 : vector<8x128xf32>
    %c48_84 = arith.constant 48 : index
    %c0_85 = arith.constant 0 : index
    %238 = vector.load %arg14[%c48_84, %c0_85] : memref<64x128xf32, #tpu.memory_space<vmem>>, vector<8x128xf32>
    tpu.vector_store %arg14[%c48_84, %c0_85], %237 {strides = array<i32>} : memref<64x128xf32, #tpu.memory_space<vmem>>, vector<8x128xf32>,
    %c56 = arith.constant 56 : index
    %c0_86 = arith.constant 0 : index
    %239 = vector.load %arg13[%c56, %c0_86] : memref<64x384xf32, #tpu.memory_space<vmem>>, vector<8x384xf32>
    %c0_87 = arith.constant 0 : index
    %c0_88 = arith.constant 0 : index
    %240 = vector.load %arg3[%c0_87, %c0_88] : memref<128x384xf32, #tpu.memory_space<vmem>>, vector<128x384xf32>
    %cst_89 = arith.constant dense<0.000000e+00> : vector<8x384xf32>
    %241 = tpu.matmul %237, %240, %cst_89 {dimension_numbers = #tpu.dot_dimension_numbers<[1], [0], [0], [1], [0, 0, 1, 1], [], []>} : vector<8x128xf32>, vector<128x384xf32>, vector<8x384xf32> -> vector<8x384xf32>
    %242 = vector.extract_strided_slice %239 {offsets = [0, 0], sizes = [8, 128], strides = [1, 1]} : vector<8x384xf32> to vector<8x128xf32>
    %243 = vector.extract_strided_slice %241 {offsets = [0, 0], sizes = [8, 128], strides = [1, 1]} : vector<8x384xf32> to vector<8x128xf32>
    %244 = arith.addf %242, %243 : vector<8x128xf32>
    %245 = arith.negf %244 : vector<8x128xf32>
    %246 = math.exp %245 : vector<8x128xf32>
    %cst_90 = arith.constant 1.000000e+00 : f32
    %247 = vector.broadcast %cst_90 : f32 to vector<8x128xf32>
    %248 = arith.addf %247, %246 : vector<8x128xf32>
    %249 = arith.divf %247, %248 : vector<8x128xf32>
    %250 = vector.extract_strided_slice %239 {offsets = [0, 128], sizes = [8, 128], strides = [1, 1]} : vector<8x384xf32> to vector<8x128xf32>
    %251 = vector.extract_strided_slice %241 {offsets = [0, 128], sizes = [8, 128], strides = [1, 1]} : vector<8x384xf32> to vector<8x128xf32>
    %252 = arith.addf %250, %251 : vector<8x128xf32>
    %253 = arith.negf %252 : vector<8x128xf32>
    %254 = math.exp %253 : vector<8x128xf32>
    %cst_91 = arith.constant 1.000000e+00 : f32
    %255 = vector.broadcast %cst_91 : f32 to vector<8x128xf32>
    %256 = arith.addf %255, %254 : vector<8x128xf32>
    %257 = arith.divf %255, %256 : vector<8x128xf32>
    %258 = vector.extract_strided_slice %239 {offsets = [0, 256], sizes = [8, 128], strides = [1, 1]} : vector<8x384xf32> to vector<8x128xf32>
    %259 = vector.extract_strided_slice %241 {offsets = [0, 256], sizes = [8, 128], strides = [1, 1]} : vector<8x384xf32> to vector<8x128xf32>
    %c0_92 = arith.constant 0 : index
    %c0_93 = arith.constant 0 : index
    %260 = vector.load %arg5[%c0_92, %c0_93] : memref<1x128xf32, #tpu.memory_space<vmem>>, vector<1x128xf32>
    %261 = vector.broadcast %260 : vector<1x128xf32> to vector<8x128xf32>
    %262 = arith.addf %259, %261 : vector<8x128xf32>
    %263 = arith.mulf %249, %262 : vector<8x128xf32>
    %264 = arith.addf %258, %263 : vector<8x128xf32>
    %265 = math.tanh %264 : vector<8x128xf32>
    %cst_94 = arith.constant 1.000000e+00 : f32
    %266 = vector.broadcast %cst_94 : f32 to vector<8x128xf32>
    %267 = arith.subf %266, %257 : vector<8x128xf32>
    %268 = arith.mulf %267, %265 : vector<8x128xf32>
    %269 = arith.mulf %257, %237 : vector<8x128xf32>
    %270 = arith.addf %268, %269 : vector<8x128xf32>
    %c56_95 = arith.constant 56 : index
    %c0_96 = arith.constant 0 : index
    %271 = vector.load %arg14[%c56_95, %c0_96] : memref<64x128xf32, #tpu.memory_space<vmem>>, vector<8x128xf32>
    tpu.vector_store %arg14[%c56_95, %c0_96], %270 {strides = array<i32>} : memref<64x128xf32, #tpu.memory_space<vmem>>, vector<8x128xf32>,
    %c0_97 = arith.constant 0 : index
    %c0_98 = arith.constant 0 : index
    %272 = vector.load %arg14[%c0_97, %c0_98] : memref<64x128xf32, #tpu.memory_space<vmem>>, vector<64x128xf32>
    %c0_99 = arith.constant 0 : index
    %c0_100 = arith.constant 0 : index
    %273 = vector.load %arg6[%c0_99, %c0_100] : memref<128x384xf32, #tpu.memory_space<vmem>>, vector<128x384xf32>
    %cst_101 = arith.constant dense<0.000000e+00> : vector<64x384xf32>
    %274 = tpu.matmul %272, %273, %cst_101 {dimension_numbers = #tpu.dot_dimension_numbers<[1], [0], [0], [1], [0, 0, 1, 1], [], []>} : vector<64x128xf32>, vector<128x384xf32>, vector<64x384xf32> -> vector<64x384xf32>
    %c0_102 = arith.constant 0 : index
    %c0_103 = arith.constant 0 : index
    %275 = vector.load %arg8[%c0_102, %c0_103] : memref<1x384xf32, #tpu.memory_space<vmem>>, vector<1x384xf32>
    %276 = vector.broadcast %275 : vector<1x384xf32> to vector<64x384xf32>
    %277 = arith.addf %274, %276 : vector<64x384xf32>
    %c0_104 = arith.constant 0 : index
    %c0_105 = arith.constant 0 : index
    %278 = vector.load %arg15[%c0_104, %c0_105] : memref<64x384xf32, #tpu.memory_space<vmem>>, vector<64x384xf32>
    tpu.vector_store %arg15[%c0_104, %c0_105], %277 {strides = array<i32>} : memref<64x384xf32, #tpu.memory_space<vmem>>, vector<64x384xf32>,
    %cst_106 = arith.constant 0.000000e+00 : f32
    %279 = vector.broadcast %cst_106 : f32 to vector<8x128xf32>
    %cst_107 = arith.constant 0.000000e+00 : f32
    %280 = vector.broadcast %cst_107 : f32 to vector<8x128xf32>
    %c0_108 = arith.constant 0 : index
    %c0_109 = arith.constant 0 : index
    %281 = vector.load %arg15[%c0_108, %c0_109] : memref<64x384xf32, #tpu.memory_space<vmem>>, vector<8x384xf32>
    %c0_110 = arith.constant 0 : index
    %c0_111 = arith.constant 0 : index
    %282 = vector.load %arg7[%c0_110, %c0_111] : memref<128x384xf32, #tpu.memory_space<vmem>>, vector<128x384xf32>
    %cst_112 = arith.constant dense<0.000000e+00> : vector<8x384xf32>
    %283 = tpu.matmul %279, %282, %cst_112 {dimension_numbers = #tpu.dot_dimension_numbers<[1], [0], [0], [1], [0, 0, 1, 1], [], []>} : vector<8x128xf32>, vector<128x384xf32>, vector<8x384xf32> -> vector<8x384xf32>
    %284 = vector.extract_strided_slice %281 {offsets = [0, 0], sizes = [8, 128], strides = [1, 1]} : vector<8x384xf32> to vector<8x128xf32>
    %285 = vector.extract_strided_slice %283 {offsets = [0, 0], sizes = [8, 128], strides = [1, 1]} : vector<8x384xf32> to vector<8x128xf32>
    %286 = arith.addf %284, %285 : vector<8x128xf32>
    %287 = arith.negf %286 : vector<8x128xf32>
    %288 = math.exp %287 : vector<8x128xf32>
    %cst_113 = arith.constant 1.000000e+00 : f32
    %289 = vector.broadcast %cst_113 : f32 to vector<8x128xf32>
    %290 = arith.addf %289, %288 : vector<8x128xf32>
    %291 = arith.divf %289, %290 : vector<8x128xf32>
    %292 = vector.extract_strided_slice %281 {offsets = [0, 128], sizes = [8, 128], strides = [1, 1]} : vector<8x384xf32> to vector<8x128xf32>
    %293 = vector.extract_strided_slice %283 {offsets = [0, 128], sizes = [8, 128], strides = [1, 1]} : vector<8x384xf32> to vector<8x128xf32>
    %294 = arith.addf %292, %293 : vector<8x128xf32>
    %295 = arith.negf %294 : vector<8x128xf32>
    %296 = math.exp %295 : vector<8x128xf32>
    %cst_114 = arith.constant 1.000000e+00 : f32
    %297 = vector.broadcast %cst_114 : f32 to vector<8x128xf32>
    %298 = arith.addf %297, %296 : vector<8x128xf32>
    %299 = arith.divf %297, %298 : vector<8x128xf32>
    %300 = vector.extract_strided_slice %281 {offsets = [0, 256], sizes = [8, 128], strides = [1, 1]} : vector<8x384xf32> to vector<8x128xf32>
    %301 = vector.extract_strided_slice %283 {offsets = [0, 256], sizes = [8, 128], strides = [1, 1]} : vector<8x384xf32> to vector<8x128xf32>
    %c0_115 = arith.constant 0 : index
    %c0_116 = arith.constant 0 : index
    %302 = vector.load %arg9[%c0_115, %c0_116] : memref<1x128xf32, #tpu.memory_space<vmem>>, vector<1x128xf32>
    %303 = vector.broadcast %302 : vector<1x128xf32> to vector<8x128xf32>
    %304 = arith.addf %301, %303 : vector<8x128xf32>
    %305 = arith.mulf %291, %304 : vector<8x128xf32>
    %306 = arith.addf %300, %305 : vector<8x128xf32>
    %307 = math.tanh %306 : vector<8x128xf32>
    %cst_117 = arith.constant 1.000000e+00 : f32
    %308 = vector.broadcast %cst_117 : f32 to vector<8x128xf32>
    %309 = arith.subf %308, %299 : vector<8x128xf32>
    %310 = arith.mulf %309, %307 : vector<8x128xf32>
    %311 = arith.mulf %299, %279 : vector<8x128xf32>
    %312 = arith.addf %310, %311 : vector<8x128xf32>
    %c0_118 = arith.constant 0 : index
    %c0_119 = arith.constant 0 : index
    %c0_120 = arith.constant 0 : index
    %313 = vector.load %arg10[%c0_118, %c0_119, %c0_120] : memref<8x128x128xf32, #tpu.memory_space<vmem>>, vector<1x128x128xf32>
    %314 = vector.shape_cast %313 : vector<1x128x128xf32> to vector<128x128xf32>
    %cst_121 = arith.constant dense<0.000000e+00> : vector<8x128xf32>
    %315 = tpu.matmul %312, %314, %cst_121 {dimension_numbers = #tpu.dot_dimension_numbers<[1], [0], [0], [1], [0, 0, 1, 1], [], []>} : vector<8x128xf32>, vector<128x128xf32>, vector<8x128xf32> -> vector<8x128xf32>
    %316 = arith.addf %280, %315 : vector<8x128xf32>
    %c8_122 = arith.constant 8 : index
    %c0_123 = arith.constant 0 : index
    %317 = vector.load %arg15[%c8_122, %c0_123] : memref<64x384xf32, #tpu.memory_space<vmem>>, vector<8x384xf32>
    %c0_124 = arith.constant 0 : index
    %c0_125 = arith.constant 0 : index
    %318 = vector.load %arg7[%c0_124, %c0_125] : memref<128x384xf32, #tpu.memory_space<vmem>>, vector<128x384xf32>
    %cst_126 = arith.constant dense<0.000000e+00> : vector<8x384xf32>
    %319 = tpu.matmul %312, %318, %cst_126 {dimension_numbers = #tpu.dot_dimension_numbers<[1], [0], [0], [1], [0, 0, 1, 1], [], []>} : vector<8x128xf32>, vector<128x384xf32>, vector<8x384xf32> -> vector<8x384xf32>
    %320 = vector.extract_strided_slice %317 {offsets = [0, 0], sizes = [8, 128], strides = [1, 1]} : vector<8x384xf32> to vector<8x128xf32>
    %321 = vector.extract_strided_slice %319 {offsets = [0, 0], sizes = [8, 128], strides = [1, 1]} : vector<8x384xf32> to vector<8x128xf32>
    %322 = arith.addf %320, %321 : vector<8x128xf32>
    %323 = arith.negf %322 : vector<8x128xf32>
    %324 = math.exp %323 : vector<8x128xf32>
    %cst_127 = arith.constant 1.000000e+00 : f32
    %325 = vector.broadcast %cst_127 : f32 to vector<8x128xf32>
    %326 = arith.addf %325, %324 : vector<8x128xf32>
    %327 = arith.divf %325, %326 : vector<8x128xf32>
    %328 = vector.extract_strided_slice %317 {offsets = [0, 128], sizes = [8, 128], strides = [1, 1]} : vector<8x384xf32> to vector<8x128xf32>
    %329 = vector.extract_strided_slice %319 {offsets = [0, 128], sizes = [8, 128], strides = [1, 1]} : vector<8x384xf32> to vector<8x128xf32>
    %330 = arith.addf %328, %329 : vector<8x128xf32>
    %331 = arith.negf %330 : vector<8x128xf32>
    %332 = math.exp %331 : vector<8x128xf32>
    %cst_128 = arith.constant 1.000000e+00 : f32
    %333 = vector.broadcast %cst_128 : f32 to vector<8x128xf32>
    %334 = arith.addf %333, %332 : vector<8x128xf32>
    %335 = arith.divf %333, %334 : vector<8x128xf32>
    %336 = vector.extract_strided_slice %317 {offsets = [0, 256], sizes = [8, 128], strides = [1, 1]} : vector<8x384xf32> to vector<8x128xf32>
    %337 = vector.extract_strided_slice %319 {offsets = [0, 256], sizes = [8, 128], strides = [1, 1]} : vector<8x384xf32> to vector<8x128xf32>
    %c0_129 = arith.constant 0 : index
    %c0_130 = arith.constant 0 : index
    %338 = vector.load %arg9[%c0_129, %c0_130] : memref<1x128xf32, #tpu.memory_space<vmem>>, vector<1x128xf32>
    %339 = vector.broadcast %338 : vector<1x128xf32> to vector<8x128xf32>
    %340 = arith.addf %337, %339 : vector<8x128xf32>
    %341 = arith.mulf %327, %340 : vector<8x128xf32>
    %342 = arith.addf %336, %341 : vector<8x128xf32>
    %343 = math.tanh %342 : vector<8x128xf32>
    %cst_131 = arith.constant 1.000000e+00 : f32
    %344 = vector.broadcast %cst_131 : f32 to vector<8x128xf32>
    %345 = arith.subf %344, %335 : vector<8x128xf32>
    %346 = arith.mulf %345, %343 : vector<8x128xf32>
    %347 = arith.mulf %335, %312 : vector<8x128xf32>
    %348 = arith.addf %346, %347 : vector<8x128xf32>
    %c1 = arith.constant 1 : index
    %c0_132 = arith.constant 0 : index
    %c0_133 = arith.constant 0 : index
    %349 = vector.load %arg10[%c1, %c0_132, %c0_133] : memref<8x128x128xf32, #tpu.memory_space<vmem>>, vector<1x128x128xf32>
    %350 = vector.shape_cast %349 : vector<1x128x128xf32> to vector<128x128xf32>
    %cst_134 = arith.constant dense<0.000000e+00> : vector<8x128xf32>
    %351 = tpu.matmul %348, %350, %cst_134 {dimension_numbers = #tpu.dot_dimension_numbers<[1], [0], [0], [1], [0, 0, 1, 1], [], []>} : vector<8x128xf32>, vector<128x128xf32>, vector<8x128xf32> -> vector<8x128xf32>
    %352 = arith.addf %316, %351 : vector<8x128xf32>
    %c16_135 = arith.constant 16 : index
    %c0_136 = arith.constant 0 : index
    %353 = vector.load %arg15[%c16_135, %c0_136] : memref<64x384xf32, #tpu.memory_space<vmem>>, vector<8x384xf32>
    %c0_137 = arith.constant 0 : index
    %c0_138 = arith.constant 0 : index
    %354 = vector.load %arg7[%c0_137, %c0_138] : memref<128x384xf32, #tpu.memory_space<vmem>>, vector<128x384xf32>
    %cst_139 = arith.constant dense<0.000000e+00> : vector<8x384xf32>
    %355 = tpu.matmul %348, %354, %cst_139 {dimension_numbers = #tpu.dot_dimension_numbers<[1], [0], [0], [1], [0, 0, 1, 1], [], []>} : vector<8x128xf32>, vector<128x384xf32>, vector<8x384xf32> -> vector<8x384xf32>
    %356 = vector.extract_strided_slice %353 {offsets = [0, 0], sizes = [8, 128], strides = [1, 1]} : vector<8x384xf32> to vector<8x128xf32>
    %357 = vector.extract_strided_slice %355 {offsets = [0, 0], sizes = [8, 128], strides = [1, 1]} : vector<8x384xf32> to vector<8x128xf32>
    %358 = arith.addf %356, %357 : vector<8x128xf32>
    %359 = arith.negf %358 : vector<8x128xf32>
    %360 = math.exp %359 : vector<8x128xf32>
    %cst_140 = arith.constant 1.000000e+00 : f32
    %361 = vector.broadcast %cst_140 : f32 to vector<8x128xf32>
    %362 = arith.addf %361, %360 : vector<8x128xf32>
    %363 = arith.divf %361, %362 : vector<8x128xf32>
    %364 = vector.extract_strided_slice %353 {offsets = [0, 128], sizes = [8, 128], strides = [1, 1]} : vector<8x384xf32> to vector<8x128xf32>
    %365 = vector.extract_strided_slice %355 {offsets = [0, 128], sizes = [8, 128], strides = [1, 1]} : vector<8x384xf32> to vector<8x128xf32>
    %366 = arith.addf %364, %365 : vector<8x128xf32>
    %367 = arith.negf %366 : vector<8x128xf32>
    %368 = math.exp %367 : vector<8x128xf32>
    %cst_141 = arith.constant 1.000000e+00 : f32
    %369 = vector.broadcast %cst_141 : f32 to vector<8x128xf32>
    %370 = arith.addf %369, %368 : vector<8x128xf32>
    %371 = arith.divf %369, %370 : vector<8x128xf32>
    %372 = vector.extract_strided_slice %353 {offsets = [0, 256], sizes = [8, 128], strides = [1, 1]} : vector<8x384xf32> to vector<8x128xf32>
    %373 = vector.extract_strided_slice %355 {offsets = [0, 256], sizes = [8, 128], strides = [1, 1]} : vector<8x384xf32> to vector<8x128xf32>
    %c0_142 = arith.constant 0 : index
    %c0_143 = arith.constant 0 : index
    %374 = vector.load %arg9[%c0_142, %c0_143] : memref<1x128xf32, #tpu.memory_space<vmem>>, vector<1x128xf32>
    %375 = vector.broadcast %374 : vector<1x128xf32> to vector<8x128xf32>
    %376 = arith.addf %373, %375 : vector<8x128xf32>
    %377 = arith.mulf %363, %376 : vector<8x128xf32>
    %378 = arith.addf %372, %377 : vector<8x128xf32>
    %379 = math.tanh %378 : vector<8x128xf32>
    %cst_144 = arith.constant 1.000000e+00 : f32
    %380 = vector.broadcast %cst_144 : f32 to vector<8x128xf32>
    %381 = arith.subf %380, %371 : vector<8x128xf32>
    %382 = arith.mulf %381, %379 : vector<8x128xf32>
    %383 = arith.mulf %371, %348 : vector<8x128xf32>
    %384 = arith.addf %382, %383 : vector<8x128xf32>
    %c2 = arith.constant 2 : index
    %c0_145 = arith.constant 0 : index
    %c0_146 = arith.constant 0 : index
    %385 = vector.load %arg10[%c2, %c0_145, %c0_146] : memref<8x128x128xf32, #tpu.memory_space<vmem>>, vector<1x128x128xf32>
    %386 = vector.shape_cast %385 : vector<1x128x128xf32> to vector<128x128xf32>
    %cst_147 = arith.constant dense<0.000000e+00> : vector<8x128xf32>
    %387 = tpu.matmul %384, %386, %cst_147 {dimension_numbers = #tpu.dot_dimension_numbers<[1], [0], [0], [1], [0, 0, 1, 1], [], []>} : vector<8x128xf32>, vector<128x128xf32>, vector<8x128xf32> -> vector<8x128xf32>
    %388 = arith.addf %352, %387 : vector<8x128xf32>
    %c24_148 = arith.constant 24 : index
    %c0_149 = arith.constant 0 : index
    %389 = vector.load %arg15[%c24_148, %c0_149] : memref<64x384xf32, #tpu.memory_space<vmem>>, vector<8x384xf32>
    %c0_150 = arith.constant 0 : index
    %c0_151 = arith.constant 0 : index
    %390 = vector.load %arg7[%c0_150, %c0_151] : memref<128x384xf32, #tpu.memory_space<vmem>>, vector<128x384xf32>
    %cst_152 = arith.constant dense<0.000000e+00> : vector<8x384xf32>
    %391 = tpu.matmul %384, %390, %cst_152 {dimension_numbers = #tpu.dot_dimension_numbers<[1], [0], [0], [1], [0, 0, 1, 1], [], []>} : vector<8x128xf32>, vector<128x384xf32>, vector<8x384xf32> -> vector<8x384xf32>
    %392 = vector.extract_strided_slice %389 {offsets = [0, 0], sizes = [8, 128], strides = [1, 1]} : vector<8x384xf32> to vector<8x128xf32>
    %393 = vector.extract_strided_slice %391 {offsets = [0, 0], sizes = [8, 128], strides = [1, 1]} : vector<8x384xf32> to vector<8x128xf32>
    %394 = arith.addf %392, %393 : vector<8x128xf32>
    %395 = arith.negf %394 : vector<8x128xf32>
    %396 = math.exp %395 : vector<8x128xf32>
    %cst_153 = arith.constant 1.000000e+00 : f32
    %397 = vector.broadcast %cst_153 : f32 to vector<8x128xf32>
    %398 = arith.addf %397, %396 : vector<8x128xf32>
    %399 = arith.divf %397, %398 : vector<8x128xf32>
    %400 = vector.extract_strided_slice %389 {offsets = [0, 128], sizes = [8, 128], strides = [1, 1]} : vector<8x384xf32> to vector<8x128xf32>
    %401 = vector.extract_strided_slice %391 {offsets = [0, 128], sizes = [8, 128], strides = [1, 1]} : vector<8x384xf32> to vector<8x128xf32>
    %402 = arith.addf %400, %401 : vector<8x128xf32>
    %403 = arith.negf %402 : vector<8x128xf32>
    %404 = math.exp %403 : vector<8x128xf32>
    %cst_154 = arith.constant 1.000000e+00 : f32
    %405 = vector.broadcast %cst_154 : f32 to vector<8x128xf32>
    %406 = arith.addf %405, %404 : vector<8x128xf32>
    %407 = arith.divf %405, %406 : vector<8x128xf32>
    %408 = vector.extract_strided_slice %389 {offsets = [0, 256], sizes = [8, 128], strides = [1, 1]} : vector<8x384xf32> to vector<8x128xf32>
    %409 = vector.extract_strided_slice %391 {offsets = [0, 256], sizes = [8, 128], strides = [1, 1]} : vector<8x384xf32> to vector<8x128xf32>
    %c0_155 = arith.constant 0 : index
    %c0_156 = arith.constant 0 : index
    %410 = vector.load %arg9[%c0_155, %c0_156] : memref<1x128xf32, #tpu.memory_space<vmem>>, vector<1x128xf32>
    %411 = vector.broadcast %410 : vector<1x128xf32> to vector<8x128xf32>
    %412 = arith.addf %409, %411 : vector<8x128xf32>
    %413 = arith.mulf %399, %412 : vector<8x128xf32>
    %414 = arith.addf %408, %413 : vector<8x128xf32>
    %415 = math.tanh %414 : vector<8x128xf32>
    %cst_157 = arith.constant 1.000000e+00 : f32
    %416 = vector.broadcast %cst_157 : f32 to vector<8x128xf32>
    %417 = arith.subf %416, %407 : vector<8x128xf32>
    %418 = arith.mulf %417, %415 : vector<8x128xf32>
    %419 = arith.mulf %407, %384 : vector<8x128xf32>
    %420 = arith.addf %418, %419 : vector<8x128xf32>
    %c3 = arith.constant 3 : index
    %c0_158 = arith.constant 0 : index
    %c0_159 = arith.constant 0 : index
    %421 = vector.load %arg10[%c3, %c0_158, %c0_159] : memref<8x128x128xf32, #tpu.memory_space<vmem>>, vector<1x128x128xf32>
    %422 = vector.shape_cast %421 : vector<1x128x128xf32> to vector<128x128xf32>
    %cst_160 = arith.constant dense<0.000000e+00> : vector<8x128xf32>
    %423 = tpu.matmul %420, %422, %cst_160 {dimension_numbers = #tpu.dot_dimension_numbers<[1], [0], [0], [1], [0, 0, 1, 1], [], []>} : vector<8x128xf32>, vector<128x128xf32>, vector<8x128xf32> -> vector<8x128xf32>
    %424 = arith.addf %388, %423 : vector<8x128xf32>
    %c32_161 = arith.constant 32 : index
    %c0_162 = arith.constant 0 : index
    %425 = vector.load %arg15[%c32_161, %c0_162] : memref<64x384xf32, #tpu.memory_space<vmem>>, vector<8x384xf32>
    %c0_163 = arith.constant 0 : index
    %c0_164 = arith.constant 0 : index
    %426 = vector.load %arg7[%c0_163, %c0_164] : memref<128x384xf32, #tpu.memory_space<vmem>>, vector<128x384xf32>
    %cst_165 = arith.constant dense<0.000000e+00> : vector<8x384xf32>
    %427 = tpu.matmul %420, %426, %cst_165 {dimension_numbers = #tpu.dot_dimension_numbers<[1], [0], [0], [1], [0, 0, 1, 1], [], []>} : vector<8x128xf32>, vector<128x384xf32>, vector<8x384xf32> -> vector<8x384xf32>
    %428 = vector.extract_strided_slice %425 {offsets = [0, 0], sizes = [8, 128], strides = [1, 1]} : vector<8x384xf32> to vector<8x128xf32>
    %429 = vector.extract_strided_slice %427 {offsets = [0, 0], sizes = [8, 128], strides = [1, 1]} : vector<8x384xf32> to vector<8x128xf32>
    %430 = arith.addf %428, %429 : vector<8x128xf32>
    %431 = arith.negf %430 : vector<8x128xf32>
    %432 = math.exp %431 : vector<8x128xf32>
    %cst_166 = arith.constant 1.000000e+00 : f32
    %433 = vector.broadcast %cst_166 : f32 to vector<8x128xf32>
    %434 = arith.addf %433, %432 : vector<8x128xf32>
    %435 = arith.divf %433, %434 : vector<8x128xf32>
    %436 = vector.extract_strided_slice %425 {offsets = [0, 128], sizes = [8, 128], strides = [1, 1]} : vector<8x384xf32> to vector<8x128xf32>
    %437 = vector.extract_strided_slice %427 {offsets = [0, 128], sizes = [8, 128], strides = [1, 1]} : vector<8x384xf32> to vector<8x128xf32>
    %438 = arith.addf %436, %437 : vector<8x128xf32>
    %439 = arith.negf %438 : vector<8x128xf32>
    %440 = math.exp %439 : vector<8x128xf32>
    %cst_167 = arith.constant 1.000000e+00 : f32
    %441 = vector.broadcast %cst_167 : f32 to vector<8x128xf32>
    %442 = arith.addf %441, %440 : vector<8x128xf32>
    %443 = arith.divf %441, %442 : vector<8x128xf32>
    %444 = vector.extract_strided_slice %425 {offsets = [0, 256], sizes = [8, 128], strides = [1, 1]} : vector<8x384xf32> to vector<8x128xf32>
    %445 = vector.extract_strided_slice %427 {offsets = [0, 256], sizes = [8, 128], strides = [1, 1]} : vector<8x384xf32> to vector<8x128xf32>
    %c0_168 = arith.constant 0 : index
    %c0_169 = arith.constant 0 : index
    %446 = vector.load %arg9[%c0_168, %c0_169] : memref<1x128xf32, #tpu.memory_space<vmem>>, vector<1x128xf32>
    %447 = vector.broadcast %446 : vector<1x128xf32> to vector<8x128xf32>
    %448 = arith.addf %445, %447 : vector<8x128xf32>
    %449 = arith.mulf %435, %448 : vector<8x128xf32>
    %450 = arith.addf %444, %449 : vector<8x128xf32>
    %451 = math.tanh %450 : vector<8x128xf32>
    %cst_170 = arith.constant 1.000000e+00 : f32
    %452 = vector.broadcast %cst_170 : f32 to vector<8x128xf32>
    %453 = arith.subf %452, %443 : vector<8x128xf32>
    %454 = arith.mulf %453, %451 : vector<8x128xf32>
    %455 = arith.mulf %443, %420 : vector<8x128xf32>
    %456 = arith.addf %454, %455 : vector<8x128xf32>
    %c4 = arith.constant 4 : index
    %c0_171 = arith.constant 0 : index
    %c0_172 = arith.constant 0 : index
    %457 = vector.load %arg10[%c4, %c0_171, %c0_172] : memref<8x128x128xf32, #tpu.memory_space<vmem>>, vector<1x128x128xf32>
    %458 = vector.shape_cast %457 : vector<1x128x128xf32> to vector<128x128xf32>
    %cst_173 = arith.constant dense<0.000000e+00> : vector<8x128xf32>
    %459 = tpu.matmul %456, %458, %cst_173 {dimension_numbers = #tpu.dot_dimension_numbers<[1], [0], [0], [1], [0, 0, 1, 1], [], []>} : vector<8x128xf32>, vector<128x128xf32>, vector<8x128xf32> -> vector<8x128xf32>
    %460 = arith.addf %424, %459 : vector<8x128xf32>
    %c40_174 = arith.constant 40 : index
    %c0_175 = arith.constant 0 : index
    %461 = vector.load %arg15[%c40_174, %c0_175] : memref<64x384xf32, #tpu.memory_space<vmem>>, vector<8x384xf32>
    %c0_176 = arith.constant 0 : index
    %c0_177 = arith.constant 0 : index
    %462 = vector.load %arg7[%c0_176, %c0_177] : memref<128x384xf32, #tpu.memory_space<vmem>>, vector<128x384xf32>
    %cst_178 = arith.constant dense<0.000000e+00> : vector<8x384xf32>
    %463 = tpu.matmul %456, %462, %cst_178 {dimension_numbers = #tpu.dot_dimension_numbers<[1], [0], [0], [1], [0, 0, 1, 1], [], []>} : vector<8x128xf32>, vector<128x384xf32>, vector<8x384xf32> -> vector<8x384xf32>
    %464 = vector.extract_strided_slice %461 {offsets = [0, 0], sizes = [8, 128], strides = [1, 1]} : vector<8x384xf32> to vector<8x128xf32>
    %465 = vector.extract_strided_slice %463 {offsets = [0, 0], sizes = [8, 128], strides = [1, 1]} : vector<8x384xf32> to vector<8x128xf32>
    %466 = arith.addf %464, %465 : vector<8x128xf32>
    %467 = arith.negf %466 : vector<8x128xf32>
    %468 = math.exp %467 : vector<8x128xf32>
    %cst_179 = arith.constant 1.000000e+00 : f32
    %469 = vector.broadcast %cst_179 : f32 to vector<8x128xf32>
    %470 = arith.addf %469, %468 : vector<8x128xf32>
    %471 = arith.divf %469, %470 : vector<8x128xf32>
    %472 = vector.extract_strided_slice %461 {offsets = [0, 128], sizes = [8, 128], strides = [1, 1]} : vector<8x384xf32> to vector<8x128xf32>
    %473 = vector.extract_strided_slice %463 {offsets = [0, 128], sizes = [8, 128], strides = [1, 1]} : vector<8x384xf32> to vector<8x128xf32>
    %474 = arith.addf %472, %473 : vector<8x128xf32>
    %475 = arith.negf %474 : vector<8x128xf32>
    %476 = math.exp %475 : vector<8x128xf32>
    %cst_180 = arith.constant 1.000000e+00 : f32
    %477 = vector.broadcast %cst_180 : f32 to vector<8x128xf32>
    %478 = arith.addf %477, %476 : vector<8x128xf32>
    %479 = arith.divf %477, %478 : vector<8x128xf32>
    %480 = vector.extract_strided_slice %461 {offsets = [0, 256], sizes = [8, 128], strides = [1, 1]} : vector<8x384xf32> to vector<8x128xf32>
    %481 = vector.extract_strided_slice %463 {offsets = [0, 256], sizes = [8, 128], strides = [1, 1]} : vector<8x384xf32> to vector<8x128xf32>
    %c0_181 = arith.constant 0 : index
    %c0_182 = arith.constant 0 : index
    %482 = vector.load %arg9[%c0_181, %c0_182] : memref<1x128xf32, #tpu.memory_space<vmem>>, vector<1x128xf32>
    %483 = vector.broadcast %482 : vector<1x128xf32> to vector<8x128xf32>
    %484 = arith.addf %481, %483 : vector<8x128xf32>
    %485 = arith.mulf %471, %484 : vector<8x128xf32>
    %486 = arith.addf %480, %485 : vector<8x128xf32>
    %487 = math.tanh %486 : vector<8x128xf32>
    %cst_183 = arith.constant 1.000000e+00 : f32
    %488 = vector.broadcast %cst_183 : f32 to vector<8x128xf32>
    %489 = arith.subf %488, %479 : vector<8x128xf32>
    %490 = arith.mulf %489, %487 : vector<8x128xf32>
    %491 = arith.mulf %479, %456 : vector<8x128xf32>
    %492 = arith.addf %490, %491 : vector<8x128xf32>
    %c5 = arith.constant 5 : index
    %c0_184 = arith.constant 0 : index
    %c0_185 = arith.constant 0 : index
    %493 = vector.load %arg10[%c5, %c0_184, %c0_185] : memref<8x128x128xf32, #tpu.memory_space<vmem>>, vector<1x128x128xf32>
    %494 = vector.shape_cast %493 : vector<1x128x128xf32> to vector<128x128xf32>
    %cst_186 = arith.constant dense<0.000000e+00> : vector<8x128xf32>
    %495 = tpu.matmul %492, %494, %cst_186 {dimension_numbers = #tpu.dot_dimension_numbers<[1], [0], [0], [1], [0, 0, 1, 1], [], []>} : vector<8x128xf32>, vector<128x128xf32>, vector<8x128xf32> -> vector<8x128xf32>
    %496 = arith.addf %460, %495 : vector<8x128xf32>
    %c48_187 = arith.constant 48 : index
    %c0_188 = arith.constant 0 : index
    %497 = vector.load %arg15[%c48_187, %c0_188] : memref<64x384xf32, #tpu.memory_space<vmem>>, vector<8x384xf32>
    %c0_189 = arith.constant 0 : index
    %c0_190 = arith.constant 0 : index
    %498 = vector.load %arg7[%c0_189, %c0_190] : memref<128x384xf32, #tpu.memory_space<vmem>>, vector<128x384xf32>
    %cst_191 = arith.constant dense<0.000000e+00> : vector<8x384xf32>
    %499 = tpu.matmul %492, %498, %cst_191 {dimension_numbers = #tpu.dot_dimension_numbers<[1], [0], [0], [1], [0, 0, 1, 1], [], []>} : vector<8x128xf32>, vector<128x384xf32>, vector<8x384xf32> -> vector<8x384xf32>
    %500 = vector.extract_strided_slice %497 {offsets = [0, 0], sizes = [8, 128], strides = [1, 1]} : vector<8x384xf32> to vector<8x128xf32>
    %501 = vector.extract_strided_slice %499 {offsets = [0, 0], sizes = [8, 128], strides = [1, 1]} : vector<8x384xf32> to vector<8x128xf32>
    %502 = arith.addf %500, %501 : vector<8x128xf32>
    %503 = arith.negf %502 : vector<8x128xf32>
    %504 = math.exp %503 : vector<8x128xf32>
    %cst_192 = arith.constant 1.000000e+00 : f32
    %505 = vector.broadcast %cst_192 : f32 to vector<8x128xf32>
    %506 = arith.addf %505, %504 : vector<8x128xf32>
    %507 = arith.divf %505, %506 : vector<8x128xf32>
    %508 = vector.extract_strided_slice %497 {offsets = [0, 128], sizes = [8, 128], strides = [1, 1]} : vector<8x384xf32> to vector<8x128xf32>
    %509 = vector.extract_strided_slice %499 {offsets = [0, 128], sizes = [8, 128], strides = [1, 1]} : vector<8x384xf32> to vector<8x128xf32>
    %510 = arith.addf %508, %509 : vector<8x128xf32>
    %511 = arith.negf %510 : vector<8x128xf32>
    %512 = math.exp %511 : vector<8x128xf32>
    %cst_193 = arith.constant 1.000000e+00 : f32
    %513 = vector.broadcast %cst_193 : f32 to vector<8x128xf32>
    %514 = arith.addf %513, %512 : vector<8x128xf32>
    %515 = arith.divf %513, %514 : vector<8x128xf32>
    %516 = vector.extract_strided_slice %497 {offsets = [0, 256], sizes = [8, 128], strides = [1, 1]} : vector<8x384xf32> to vector<8x128xf32>
    %517 = vector.extract_strided_slice %499 {offsets = [0, 256], sizes = [8, 128], strides = [1, 1]} : vector<8x384xf32> to vector<8x128xf32>
    %c0_194 = arith.constant 0 : index
    %c0_195 = arith.constant 0 : index
    %518 = vector.load %arg9[%c0_194, %c0_195] : memref<1x128xf32, #tpu.memory_space<vmem>>, vector<1x128xf32>
    %519 = vector.broadcast %518 : vector<1x128xf32> to vector<8x128xf32>
    %520 = arith.addf %517, %519 : vector<8x128xf32>
    %521 = arith.mulf %507, %520 : vector<8x128xf32>
    %522 = arith.addf %516, %521 : vector<8x128xf32>
    %523 = math.tanh %522 : vector<8x128xf32>
    %cst_196 = arith.constant 1.000000e+00 : f32
    %524 = vector.broadcast %cst_196 : f32 to vector<8x128xf32>
    %525 = arith.subf %524, %515 : vector<8x128xf32>
    %526 = arith.mulf %525, %523 : vector<8x128xf32>
    %527 = arith.mulf %515, %492 : vector<8x128xf32>
    %528 = arith.addf %526, %527 : vector<8x128xf32>
    %c6 = arith.constant 6 : index
    %c0_197 = arith.constant 0 : index
    %c0_198 = arith.constant 0 : index
    %529 = vector.load %arg10[%c6, %c0_197, %c0_198] : memref<8x128x128xf32, #tpu.memory_space<vmem>>, vector<1x128x128xf32>
    %530 = vector.shape_cast %529 : vector<1x128x128xf32> to vector<128x128xf32>
    %cst_199 = arith.constant dense<0.000000e+00> : vector<8x128xf32>
    %531 = tpu.matmul %528, %530, %cst_199 {dimension_numbers = #tpu.dot_dimension_numbers<[1], [0], [0], [1], [0, 0, 1, 1], [], []>} : vector<8x128xf32>, vector<128x128xf32>, vector<8x128xf32> -> vector<8x128xf32>
    %532 = arith.addf %496, %531 : vector<8x128xf32>
    %c56_200 = arith.constant 56 : index
    %c0_201 = arith.constant 0 : index
    %533 = vector.load %arg15[%c56_200, %c0_201] : memref<64x384xf32, #tpu.memory_space<vmem>>, vector<8x384xf32>
    %c0_202 = arith.constant 0 : index
    %c0_203 = arith.constant 0 : index
    %534 = vector.load %arg7[%c0_202, %c0_203] : memref<128x384xf32, #tpu.memory_space<vmem>>, vector<128x384xf32>
    %cst_204 = arith.constant dense<0.000000e+00> : vector<8x384xf32>
    %535 = tpu.matmul %528, %534, %cst_204 {dimension_numbers = #tpu.dot_dimension_numbers<[1], [0], [0], [1], [0, 0, 1, 1], [], []>} : vector<8x128xf32>, vector<128x384xf32>, vector<8x384xf32> -> vector<8x384xf32>
    %536 = vector.extract_strided_slice %533 {offsets = [0, 0], sizes = [8, 128], strides = [1, 1]} : vector<8x384xf32> to vector<8x128xf32>
    %537 = vector.extract_strided_slice %535 {offsets = [0, 0], sizes = [8, 128], strides = [1, 1]} : vector<8x384xf32> to vector<8x128xf32>
    %538 = arith.addf %536, %537 : vector<8x128xf32>
    %539 = arith.negf %538 : vector<8x128xf32>
    %540 = math.exp %539 : vector<8x128xf32>
    %cst_205 = arith.constant 1.000000e+00 : f32
    %541 = vector.broadcast %cst_205 : f32 to vector<8x128xf32>
    %542 = arith.addf %541, %540 : vector<8x128xf32>
    %543 = arith.divf %541, %542 : vector<8x128xf32>
    %544 = vector.extract_strided_slice %533 {offsets = [0, 128], sizes = [8, 128], strides = [1, 1]} : vector<8x384xf32> to vector<8x128xf32>
    %545 = vector.extract_strided_slice %535 {offsets = [0, 128], sizes = [8, 128], strides = [1, 1]} : vector<8x384xf32> to vector<8x128xf32>
    %546 = arith.addf %544, %545 : vector<8x128xf32>
    %547 = arith.negf %546 : vector<8x128xf32>
    %548 = math.exp %547 : vector<8x128xf32>
    %cst_206 = arith.constant 1.000000e+00 : f32
    %549 = vector.broadcast %cst_206 : f32 to vector<8x128xf32>
    %550 = arith.addf %549, %548 : vector<8x128xf32>
    %551 = arith.divf %549, %550 : vector<8x128xf32>
    %552 = vector.extract_strided_slice %533 {offsets = [0, 256], sizes = [8, 128], strides = [1, 1]} : vector<8x384xf32> to vector<8x128xf32>
    %553 = vector.extract_strided_slice %535 {offsets = [0, 256], sizes = [8, 128], strides = [1, 1]} : vector<8x384xf32> to vector<8x128xf32>
    %c0_207 = arith.constant 0 : index
    %c0_208 = arith.constant 0 : index
    %554 = vector.load %arg9[%c0_207, %c0_208] : memref<1x128xf32, #tpu.memory_space<vmem>>, vector<1x128xf32>
    %555 = vector.broadcast %554 : vector<1x128xf32> to vector<8x128xf32>
    %556 = arith.addf %553, %555 : vector<8x128xf32>
    %557 = arith.mulf %543, %556 : vector<8x128xf32>
    %558 = arith.addf %552, %557 : vector<8x128xf32>
    %559 = math.tanh %558 : vector<8x128xf32>
    %cst_209 = arith.constant 1.000000e+00 : f32
    %560 = vector.broadcast %cst_209 : f32 to vector<8x128xf32>
    %561 = arith.subf %560, %551 : vector<8x128xf32>
    %562 = arith.mulf %561, %559 : vector<8x128xf32>
    %563 = arith.mulf %551, %528 : vector<8x128xf32>
    %564 = arith.addf %562, %563 : vector<8x128xf32>
    %c7 = arith.constant 7 : index
    %c0_210 = arith.constant 0 : index
    %c0_211 = arith.constant 0 : index
    %565 = vector.load %arg10[%c7, %c0_210, %c0_211] : memref<8x128x128xf32, #tpu.memory_space<vmem>>, vector<1x128x128xf32>
    %566 = vector.shape_cast %565 : vector<1x128x128xf32> to vector<128x128xf32>
    %cst_212 = arith.constant dense<0.000000e+00> : vector<8x128xf32>
    %567 = tpu.matmul %564, %566, %cst_212 {dimension_numbers = #tpu.dot_dimension_numbers<[1], [0], [0], [1], [0, 0, 1, 1], [], []>} : vector<8x128xf32>, vector<128x128xf32>, vector<8x128xf32> -> vector<8x128xf32>
    %568 = arith.addf %532, %567 : vector<8x128xf32>
    %c0_213 = arith.constant 0 : index
    %c0_214 = arith.constant 0 : index
    %569 = vector.load %arg11[%c0_213, %c0_214] : memref<1x128xf32, #tpu.memory_space<vmem>>, vector<1x128xf32>
    %570 = vector.broadcast %569 : vector<1x128xf32> to vector<8x128xf32>
    %571 = arith.addf %568, %570 : vector<8x128xf32>
    %c0_215 = arith.constant 0 : index
    %c0_216 = arith.constant 0 : index
    %572 = vector.load %arg12[%c0_215, %c0_216] : memref<8x128xf32, #tpu.memory_space<vmem>>, vector<8x128xf32>
    tpu.vector_store %arg12[%c0_215, %c0_216], %571 {strides = array<i32>} : memref<8x128xf32, #tpu.memory_space<vmem>>, vector<8x128xf32>,
    return
  }
  func.func @transform_0(%arg0: i32) -> (i32, i32) {
    %c0_i32 = arith.constant 0 : i32
    %c0_i32_0 = arith.constant 0 : i32
    %c0_i32_1 = arith.constant 0 : i32
    return %c0_i32, %c0_i32_0 : i32, i32
  }
  func.func @transform_1(%arg0: i32) -> (i32, i32) {
    %c0_i32 = arith.constant 0 : i32
    %c0_i32_0 = arith.constant 0 : i32
    %c0_i32_1 = arith.constant 0 : i32
    return %c0_i32, %c0_i32_0 : i32, i32
  }
  func.func @transform_2(%arg0: i32) -> (i32, i32) {
    %c0_i32 = arith.constant 0 : i32
    %c0_i32_0 = arith.constant 0 : i32
    %c0_i32_1 = arith.constant 0 : i32
    return %c0_i32, %c0_i32_0 : i32, i32
  }
  func.func @transform_3(%arg0: i32) -> (i32, i32) {
    %c0_i32 = arith.constant 0 : i32
    %c0_i32_0 = arith.constant 0 : i32
    %c0_i32_1 = arith.constant 0 : i32
    return %c0_i32, %c0_i32_0 : i32, i32
  }
  func.func @transform_4(%arg0: i32) -> (i32, i32) {
    %c0_i32 = arith.constant 0 : i32
    %c0_i32_0 = arith.constant 0 : i32
    %c0_i32_1 = arith.constant 0 : i32
    return %c0_i32, %c0_i32_0 : i32, i32
  }
  func.func @transform_5(%arg0: i32) -> (i32, i32) {
    %c0_i32 = arith.constant 0 : i32
    %c0_i32_0 = arith.constant 0 : i32
    %c0_i32_1 = arith.constant 0 : i32
    return %c0_i32, %c0_i32_0 : i32, i32
  }
  func.func @transform_6(%arg0: i32) -> (i32, i32) {
    %c0_i32 = arith.constant 0 : i32
    %c0_i32_0 = arith.constant 0 : i32
    %c0_i32_1 = arith.constant 0 : i32
    return %c0_i32, %c0_i32_0 : i32, i32
  }
  func.func @transform_7(%arg0: i32) -> (i32, i32) {
    %c0_i32 = arith.constant 0 : i32
    %c0_i32_0 = arith.constant 0 : i32
    %c0_i32_1 = arith.constant 0 : i32
    return %c0_i32, %c0_i32_0 : i32, i32
  }
  func.func @transform_8(%arg0: i32) -> (i32, i32) {
    %c0_i32 = arith.constant 0 : i32
    %c0_i32_0 = arith.constant 0 : i32
    %c0_i32_1 = arith.constant 0 : i32
    return %c0_i32, %c0_i32_0 : i32, i32
  }
  func.func @transform_9(%arg0: i32) -> (i32, i32, i32) {
    %c0_i32 = arith.constant 0 : i32
    %c0_i32_0 = arith.constant 0 : i32
    %c0_i32_1 = arith.constant 0 : i32
    %c0_i32_2 = arith.constant 0 : i32
    return %c0_i32, %c0_i32_0, %c0_i32_1 : i32, i32, i32
  }
  func.func @transform_10(%arg0: i32) -> (i32, i32) {
    %c0_i32 = arith.constant 0 : i32
    %c0_i32_0 = arith.constant 0 : i32
    %c0_i32_1 = arith.constant 0 : i32
    return %c0_i32, %c0_i32_0 : i32, i32
  }
  func.func @transform_11(%arg0: i32) -> (i32, i32) {
    %c0_i32 = arith.constant 0 : i32
    %c0_i32_0 = arith.constant 0 : i32
    %c0_i32_1 = arith.constant 0 : i32
    return %c0_i32, %c0_i32_0 : i32, i32
  }
}

</mosaic_0001>

<llo_original>
// kernel: rnn_gru_forward.1
$region0: #{rnn_gru_forward.1}
  #allocation0 [shape = 'u32[]', space=smem, size = 0x4, offset = 0x4, fixed_abs, tag = 'smem constant byte address 0x4 - core index']
  #allocation1 [shape = 'u32[72,128]{1,0:T(1,128)}', space=vmem, size = 0x9000, scoped, tag = 'internal scratch']
  #allocation2 [shape = 'f32[64,384]{1,0:T(8,128)}', space=vmem, size = 0x18000, scoped, tag = 'scratch operand']
  #allocation3 [shape = 'f32[64,128]{1,0:T(8,128)}', space=vmem, size = 0x8000, scoped, tag = 'scratch operand']
  #allocation4 [shape = 'f32[64,384]{1,0:T(8,128)}', space=vmem, size = 0x18000, scoped, tag = 'scratch operand']
  %s0 = inlined_call_operand.vmem [shape: f32[64,28], index: 0, kind: input, shape index: {}]
  %s1 = inlined_call_operand.vmem [shape: f32[28,384], index: 1, kind: input, shape index: {}]
  %s2 = inlined_call_operand.hbm [shape: f32[128,384], index: 2, kind: input, shape index: {}]
  %s3 = inlined_call_operand.vmem [shape: f32[1,384], index: 3, kind: input, shape index: {}]
  %s4 = inlined_call_operand.vmem [shape: f32[1,128], index: 4, kind: input, shape index: {}]
  %s5 = inlined_call_operand.hbm [shape: f32[128,384], index: 5, kind: input, shape index: {}]
  %s6 = inlined_call_operand.hbm [shape: f32[128,384], index: 6, kind: input, shape index: {}]
  %s7 = inlined_call_operand.vmem [shape: f32[1,384], index: 7, kind: input, shape index: {}]
  %s8 = inlined_call_operand.vmem [shape: f32[1,128], index: 8, kind: input, shape index: {}]
  %s9 = inlined_call_operand.hbm [shape: f32[8,128,128], index: 9, kind: input, shape index: {}]
  %s10 = inlined_call_operand.vmem [shape: f32[1,128], index: 10, kind: input, shape index: {}]
  %s11 = inlined_call_operand.vmem [shape: f32[8,128], index: 11, kind: output, shape index: {}]
  %s12 = sld [smem:[#allocation0]]
  $region70: #{rnn_gru_forward.1} parent=0
    _
  %s14 = ssub.s32 1, %s12
  %s15 = scalar_select 0, %s14, %s12
  $region1: #{rnn_gru_forward.1} parent=0
    #allocation5 [shape = 'u8[196608]{0}', space=vmem, size = 0x30000, scoped, tag = 'input window, operand 2, single buffered']
    #allocation6 [shape = 's32[1]{0}', space=sflag, size = 0x4, scoped, tag = 'scoped memory for rnn_gru_forward.1']
    #allocation7 [shape = 'u8[196608]{0}', space=vmem, size = 0x30000, scoped, tag = 'input window, operand 5, single buffered']
    #allocation8 [shape = 's32[1]{0}', space=sflag, size = 0x4, scoped, tag = 'scoped memory for rnn_gru_forward.1']
    #allocation9 [shape = 'u8[196608]{0}', space=vmem, size = 0x30000, scoped, tag = 'input window, operand 6, single buffered']
    #allocation10 [shape = 'u8[524288]{0}', space=vmem, size = 0x80000, scoped, tag = 'input window, operand 9, single buffered']
    #allocation11 [shape = 's32[1]{0}', space=sflag, size = 0x4, scoped, tag = 'scoped memory for rnn_gru_forward.1']
    %16 = vsyncpa [#allocation6], 0
    %17 = vsyncpa [#allocation8], 0
    %18 = vsyncpa [#allocation11], 0
    // Predicated region
    $region2: #{rnn_gru_forward.1} parent=1 // pred_check
      _
    $region3: #{rnn_gru_forward.1} parent=1 // pred_check_branch
      %20 = sbr.rel (0) target = $region5
    $region4: #{rnn_gru_forward.1} parent=1 // pred_region
      _
    $region5: #{rnn_gru_forward.1} parent=1 // pred_fallthru
      _
    // Predicated region
    $region6: #{rnn_gru_forward.1} parent=1 // pred_check
      _
    $region7: #{rnn_gru_forward.1} parent=1 // pred_check_branch
      %22 = sbr.rel (0) target = $region9
    $region8: #{rnn_gru_forward.1} parent=1 // pred_region
      _
    $region9: #{rnn_gru_forward.1} parent=1 // pred_fallthru
      _
    // Predicated region
    $region10: #{rnn_gru_forward.1} parent=1 // pred_check
      _
    $region11: #{rnn_gru_forward.1} parent=1 // pred_check_branch
      %24 = sbr.rel (0) target = $region13
    $region12: #{rnn_gru_forward.1} parent=1 // pred_region
      %26 = vsyncadd [#allocation6], 0
      %s27 = sshll.u32 %s2, 4
      %s28 = int_to_ptr.hbm [resolvable:$true] %s27
      %s29 = sshll.u32 [#allocation5], 4
      %s30 = int_to_ptr.vmem [resolvable:$true] %s29
      %35 = dma.hbm_to_vmem [thread:$0]  %s28, 6144, %s30, [#allocation6], 384, 384, 24
    $region13: #{rnn_gru_forward.1} parent=1 // pred_fallthru
      _
    // Predicated region
    $region14: #{rnn_gru_forward.1} parent=1 // pred_check
      _
    $region15: #{rnn_gru_forward.1} parent=1 // pred_check_branch
      %37 = sbr.rel (0) target = $region17
    $region16: #{rnn_gru_forward.1} parent=1 // pred_region
      _
    $region17: #{rnn_gru_forward.1} parent=1 // pred_fallthru
      _
    // Predicated region
    $region18: #{rnn_gru_forward.1} parent=1 // pred_check
      _
    $region19: #{rnn_gru_forward.1} parent=1 // pred_check_branch
      %39 = sbr.rel (0) target = $region21
    $region20: #{rnn_gru_forward.1} parent=1 // pred_region
      _
    $region21: #{rnn_gru_forward.1} parent=1 // pred_fallthru
      _
    // Predicated region
    $region22: #{rnn_gru_forward.1} parent=1 // pred_check
      _
    $region23: #{rnn_gru_forward.1} parent=1 // pred_check_branch
      %41 = sbr.rel (0) target = $region25
    $region24: #{rnn_gru_forward.1} parent=1 // pred_region
      %43 = vsyncadd [#allocation8], 0
      %s44 = sshll.u32 %s5, 4
      %s45 = int_to_ptr.hbm [resolvable:$true] %s44
      %s46 = sshll.u32 [#allocation7], 4
      %s47 = int_to_ptr.vmem [resolvable:$true] %s46
      %52 = dma.hbm_to_vmem [thread:$0]  %s45, 6144, %s47, [#allocation8], 384, 384, 24
    $region25: #{rnn_gru_forward.1} parent=1 // pred_fallthru
      _
    // Predicated region
    $region26: #{rnn_gru_forward.1} parent=1 // pred_check
      _
    $region27: #{rnn_gru_forward.1} parent=1 // pred_check_branch
      %54 = sbr.rel (0) target = $region29
    $region28: #{rnn_gru_forward.1} parent=1 // pred_region
      %56 = vsyncadd [#allocation8], 0
      %s57 = sshll.u32 %s6, 4
      %s58 = int_to_ptr.hbm [resolvable:$true] %s57
      %s59 = sshll.u32 [#allocation9], 4
      %s60 = int_to_ptr.vmem [resolvable:$true] %s59
      %65 = dma.hbm_to_vmem [thread:$0]  %s58, 6144, %s60, [#allocation8], 384, 384, 24
    $region29: #{rnn_gru_forward.1} parent=1 // pred_fallthru
      _
    // Predicated region
    $region30: #{rnn_gru_forward.1} parent=1 // pred_check
      _
    $region31: #{rnn_gru_forward.1} parent=1 // pred_check_branch
      %67 = sbr.rel (0) target = $region33
    $region32: #{rnn_gru_forward.1} parent=1 // pred_region
      _
    $region33: #{rnn_gru_forward.1} parent=1 // pred_fallthru
      _
    // Predicated region
    $region34: #{rnn_gru_forward.1} parent=1 // pred_check
      _
    $region35: #{rnn_gru_forward.1} parent=1 // pred_check_branch
      %69 = sbr.rel (0) target = $region37
    $region36: #{rnn_gru_forward.1} parent=1 // pred_region
      _
    $region37: #{rnn_gru_forward.1} parent=1 // pred_fallthru
      _
    // Predicated region
    $region38: #{rnn_gru_forward.1} parent=1 // pred_check
      _
    $region39: #{rnn_gru_forward.1} parent=1 // pred_check_branch
      %71 = sbr.rel (0) target = $region41
    $region40: #{rnn_gru_forward.1} parent=1 // pred_region
      %73 = vsyncadd [#allocation11], 0
      %s74 = sshll.u32 %s9, 4
      %s75 = int_to_ptr.hbm [resolvable:$true] %s74
      %s76 = sshll.u32 [#allocation10], 4
      %s77 = int_to_ptr.vmem [resolvable:$true] %s76
      %82 = dma.hbm_to_vmem [thread:$0]  %s75, 16384, %s77, [#allocation11], 128, 128, 8
    $region41: #{rnn_gru_forward.1} parent=1 // pred_fallthru
      _
    // Predicated region
    $region42: #{rnn_gru_forward.1} parent=1 // pred_check
      _
    $region43: #{rnn_gru_forward.1} parent=1 // pred_check_branch
      %84 = sbr.rel (0) target = $region45
    $region44: #{rnn_gru_forward.1} parent=1 // pred_region
      _
    $region45: #{rnn_gru_forward.1} parent=1 // pred_fallthru
      _
    // Predicated region
    $region46: #{rnn_gru_forward.1} parent=1 // pred_check
      _
    $region47: #{rnn_gru_forward.1} parent=1 // pred_check_branch
      %86 = sbr.rel (0) target = $region49
    $region48: #{rnn_gru_forward.1} parent=1 // pred_region
      %88 = dma.done [#allocation6], 6144
    $region49: #{rnn_gru_forward.1} parent=1 // pred_fallthru
      _
    // Predicated region
    $region50: #{rnn_gru_forward.1} parent=1 // pred_check
      _
    $region51: #{rnn_gru_forward.1} parent=1 // pred_check_branch
      %90 = sbr.rel (0) target = $region53
    $region52: #{rnn_gru_forward.1} parent=1 // pred_region
      %92 = dma.done [#allocation8], 6144
    $region53: #{rnn_gru_forward.1} parent=1 // pred_fallthru
      _
    // Predicated region
    $region54: #{rnn_gru_forward.1} parent=1 // pred_check
      _
    $region55: #{rnn_gru_forward.1} parent=1 // pred_check_branch
      %94 = sbr.rel (0) target = $region57
    $region56: #{rnn_gru_forward.1} parent=1 // pred_region
      %96 = dma.done [#allocation8], 6144
    $region57: #{rnn_gru_forward.1} parent=1 // pred_fallthru
      _
    // Predicated region
    $region58: #{rnn_gru_forward.1} parent=1 // pred_check
      _
    $region59: #{rnn_gru_forward.1} parent=1 // pred_check_branch
      %98 = sbr.rel (0) target = $region61
    $region60: #{rnn_gru_forward.1} parent=1 // pred_region
      %100 = dma.done [#allocation11], 16384
    $region61: #{rnn_gru_forward.1} parent=1 // pred_fallthru
      _
    %v101 = vld [vmem:[%s0] sm:$0xff]
    %v102 = vld [vmem:[%s0 + $0x8] sm:$0xff]
    %v103 = vld [vmem:[%s0 + $0x10] sm:$0xff]
    %v104 = vld [vmem:[%s0 + $0x18] sm:$0xff]
    %v105 = vld [vmem:[%s0 + $0x20] sm:$0xff]
    %v106 = vld [vmem:[%s0 + $0x28] sm:$0xff]
    %v107 = vld [vmem:[%s0 + $0x30] sm:$0xff]
    %v108 = vld [vmem:[%s0 + $0x38] sm:$0xff]
    %v109 = vld [vmem:[%s1] sm:$0xff]
    %v110 = vld [vmem:[%s1 + $0x8] sm:$0xff]
    %v111 = vld [vmem:[%s1 + $0x10] sm:$0xff]
    %v112 = vld [vmem:[%s1 + $0x18] sm:$0xff]
    %v113 = vld [vmem:[%s1 + $0x20] sm:$0xff]
    %v114 = vld [vmem:[%s1 + $0x28] sm:$0xff]
    %v115 = vld [vmem:[%s1 + $0x30] sm:$0xff]
    %v116 = vld [vmem:[%s1 + $0x38] sm:$0xff]
    %v117 = vld [vmem:[%s1 + $0x40] sm:$0xff]
    %v118 = vld [vmem:[%s1 + $0x48] sm:$0xf]
    %v119 = vld [vmem:[%s1 + $0x50] sm:$0xf]
    %v120 = vld [vmem:[%s1 + $0x58] sm:$0xf]
    %v121 = vld [vmem:[%s3] sm:$0x7]
    %v123 = vperm.slane %v121, 0
    %v124 = vperm.slane %v121, 1
    %v125 = vperm.slane %v121, 2
    %vm129 = vcmask 228352
    %v131 = vsel %vm129, %v101, 0
    %v134 = vsel %vm129, %v102, 0
    %v137 = vsel %vm129, %v103, 0
    %v140 = vsel %vm129, %v104, 0
    %v143 = vsel %vm129, %v105, 0
    %v146 = vsel %vm129, %v106, 0
    %v149 = vsel %vm129, %v107, 0
    %v152 = vsel %vm129, %v108, 0
    %vm154 = vcmask 1043456
    %v156 = vsel %vm154, %v118, 0
    %v159 = vsel %vm154, %v119, 0
    %v162 = vsel %vm154, %v120, 0
    %164 = vmatpush.msra.mxu0 0.0
    %165 = vmatpush.msra.mxu0 0.0
    %166 = vmatpush.msra.mxu0 0.0
    %167 = vmatpush.msra.mxu0 0.0
    %168 = vmatpush.msra.mxu0 0.0
    %169 = vmatpush.msra.mxu0 0.0
    %170 = vmatpush.msra.mxu0 0.0
    %171 = vmatpush.msra.mxu0 0.0
    %172 = vmatpush.msra.mxu0 0.0
    %173 = vmatpush.msra.mxu0 0.0
    %174 = vmatpush.msra.mxu0 0.0
    %175 = vmatpush.msra.mxu0 0.0
    %176 = vmatpush.msra.mxu0 %v156
    %177 = vmatpush.msra.mxu0 %v115
    %178 = vmatpush.msra.mxu0 %v112
    %179 = vmatpush.msra.mxu0 %v109
    %180 = vmatmul.f32.gmra.mxu0 %v131
    %v181 = vpop.f32.mrf.mxu0
    %v182 = vadd.f32 %v123, %v181
    %183 = vmatmul.f32.gmra.mxu0 %v134
    %v184 = vpop.f32.mrf.mxu0
    %v185 = vadd.f32 %v123, %v184
    %186 = vmatmul.f32.gmra.mxu0 %v137
    %v187 = vpop.f32.mrf.mxu0
    %v188 = vadd.f32 %v123, %v187
    %189 = vmatmul.f32.gmra.mxu0 %v140
    %v190 = vpop.f32.mrf.mxu0
    %v191 = vadd.f32 %v123, %v190
    %192 = vmatmul.f32.gmra.mxu0 %v143
    %v193 = vpop.f32.mrf.mxu0
    %v194 = vadd.f32 %v123, %v193
    %195 = vmatmul.f32.gmra.mxu0 %v146
    %v196 = vpop.f32.mrf.mxu0
    %v197 = vadd.f32 %v123, %v196
    %198 = vmatmul.f32.gmra.mxu0 %v149
    %v199 = vpop.f32.mrf.mxu0
    %v200 = vadd.f32 %v123, %v199
    %201 = vmatmul.f32.gmra.mxu0 %v152
    %v202 = vpop.f32.mrf.mxu0
    %v203 = vadd.f32 %v123, %v202
    %204 = vdwg.mxu0
    %205 = vmatpush.msra.mxu0 0.0
    %206 = vmatpush.msra.mxu0 0.0
    %207 = vmatpush.msra.mxu0 0.0
    %208 = vmatpush.msra.mxu0 0.0
    %209 = vmatpush.msra.mxu0 0.0
    %210 = vmatpush.msra.mxu0 0.0
    %211 = vmatpush.msra.mxu0 0.0
    %212 = vmatpush.msra.mxu0 0.0
    %213 = vmatpush.msra.mxu0 0.0
    %214 = vmatpush.msra.mxu0 0.0
    %215 = vmatpush.msra.mxu0 0.0
    %216 = vmatpush.msra.mxu0 0.0
    %217 = vmatpush.msra.mxu0 %v159
    %218 = vmatpush.msra.mxu0 %v116
    %219 = vmatpush.msra.mxu0 %v113
    %220 = vmatpush.msra.mxu0 %v110
    %221 = vmatmul.f32.gmra.mxu0 %v131
    %v222 = vpop.f32.mrf.mxu0
    %v223 = vadd.f32 %v124, %v222
    %224 = vmatmul.f32.gmra.mxu0 %v134
    %v225 = vpop.f32.mrf.mxu0
    %v226 = vadd.f32 %v124, %v225
    %227 = vmatmul.f32.gmra.mxu0 %v137
    %v228 = vpop.f32.mrf.mxu0
    %v229 = vadd.f32 %v124, %v228
    %230 = vmatmul.f32.gmra.mxu0 %v140
    %v231 = vpop.f32.mrf.mxu0
    %v232 = vadd.f32 %v124, %v231
    %233 = vmatmul.f32.gmra.mxu0 %v143
    %v234 = vpop.f32.mrf.mxu0
    %v235 = vadd.f32 %v124, %v234
    %236 = vmatmul.f32.gmra.mxu0 %v146
    %v237 = vpop.f32.mrf.mxu0
    %v238 = vadd.f32 %v124, %v237
    %239 = vmatmul.f32.gmra.mxu0 %v149
    %v240 = vpop.f32.mrf.mxu0
    %v241 = vadd.f32 %v124, %v240
    %242 = vmatmul.f32.gmra.mxu0 %v152
    %v243 = vpop.f32.mrf.mxu0
    %v244 = vadd.f32 %v124, %v243
    %245 = vdwg.mxu0
    %246 = vmatpush.msra.mxu0 0.0
    %247 = vmatpush.msra.mxu0 0.0
    %248 = vmatpush.msra.mxu0 0.0
    %249 = vmatpush.msra.mxu0 0.0
    %250 = vmatpush.msra.mxu0 0.0
    %251 = vmatpush.msra.mxu0 0.0
    %252 = vmatpush.msra.mxu0 0.0
    %253 = vmatpush.msra.mxu0 0.0
    %254 = vmatpush.msra.mxu0 0.0
    %255 = vmatpush.msra.mxu0 0.0
    %256 = vmatpush.msra.mxu0 0.0
    %257 = vmatpush.msra.mxu0 0.0
    %258 = vmatpush.msra.mxu0 %v162
    %259 = vmatpush.msra.mxu0 %v117
    %260 = vmatpush.msra.mxu0 %v114
    %261 = vmatpush.msra.mxu0 %v111
    %262 = vmatmul.f32.gmra.mxu0 %v131
    %v263 = vpop.f32.mrf.mxu0
    %v264 = vadd.f32 %v125, %v263
    %265 = vmatmul.f32.gmra.mxu0 %v134
    %v266 = vpop.f32.mrf.mxu0
    %v267 = vadd.f32 %v125, %v266
    %268 = vmatmul.f32.gmra.mxu0 %v137
    %v269 = vpop.f32.mrf.mxu0
    %v270 = vadd.f32 %v125, %v269
    %271 = vmatmul.f32.gmra.mxu0 %v140
    %v272 = vpop.f32.mrf.mxu0
    %v273 = vadd.f32 %v125, %v272
    %274 = vmatmul.f32.gmra.mxu0 %v143
    %v275 = vpop.f32.mrf.mxu0
    %v276 = vadd.f32 %v125, %v275
    %277 = vmatmul.f32.gmra.mxu0 %v146
    %v278 = vpop.f32.mrf.mxu0
    %v279 = vadd.f32 %v125, %v278
    %280 = vmatmul.f32.gmra.mxu0 %v149
    %v281 = vpop.f32.mrf.mxu0
    %v282 = vadd.f32 %v125, %v281
    %283 = vmatmul.f32.gmra.mxu0 %v152
    %v284 = vpop.f32.mrf.mxu0
    %v285 = vadd.f32 %v125, %v284
    %286 = vdwg.mxu0
    %287 = vst [vmem:[#allocation2] sm:$0xff] %v182
    %288 = vst [vmem:[#allocation2 + $0x8] sm:$0xff] %v223
    %289 = vst [vmem:[#allocation2 + $0x10] sm:$0xff] %v264
    %290 = vst [vmem:[#allocation2 + $0x18] sm:$0xff] %v185
    %291 = vst [vmem:[#allocation2 + $0x20] sm:$0xff] %v226
    %292 = vst [vmem:[#allocation2 + $0x28] sm:$0xff] %v267
    %293 = vst [vmem:[#allocation2 + $0x30] sm:$0xff] %v188
    %294 = vst [vmem:[#allocation2 + $0x38] sm:$0xff] %v229
    %295 = vst [vmem:[#allocation2 + $0x40] sm:$0xff] %v270
    %296 = vst [vmem:[#allocation2 + $0x48] sm:$0xff] %v191
    %297 = vst [vmem:[#allocation2 + $0x50] sm:$0xff] %v232
    %298 = vst [vmem:[#allocation2 + $0x58] sm:$0xff] %v273
    %299 = vst [vmem:[#allocation2 + $0x60] sm:$0xff] %v194
    %300 = vst [vmem:[#allocation2 + $0x68] sm:$0xff] %v235
    %301 = vst [vmem:[#allocation2 + $0x70] sm:$0xff] %v276
    %302 = vst [vmem:[#allocation2 + $0x78] sm:$0xff] %v197
    %303 = vst [vmem:[#allocation2 + $0x80] sm:$0xff] %v238
    %304 = vst [vmem:[#allocation2 + $0x88] sm:$0xff] %v279
    %305 = vst [vmem:[#allocation2 + $0x90] sm:$0xff] %v200
    %306 = vst [vmem:[#allocation2 + $0x98] sm:$0xff] %v241
    %307 = vst [vmem:[#allocation2 + $0xa0] sm:$0xff] %v282
    %308 = vst [vmem:[#allocation2 + $0xa8] sm:$0xff] %v203
    %309 = vst [vmem:[#allocation2 + $0xb0] sm:$0xff] %v244
    %310 = vst [vmem:[#allocation2 + $0xb8] sm:$0xff] %v285
    %v311 = vld [vmem:[#allocation2] sm:$0xff]
    %v312 = vld [vmem:[#allocation2 + $0x8] sm:$0xff]
    %v313 = vld [vmem:[#allocation2 + $0x10] sm:$0xff]
    %v314 = vld [vmem:[#allocation5] sm:$0xff]
    %v315 = vld [vmem:[#allocation5 + $0x8] sm:$0xff]
    %v316 = vld [vmem:[#allocation5 + $0x10] sm:$0xff]
    %v317 = vld [vmem:[#allocation5 + $0x18] sm:$0xff]
    %v318 = vld [vmem:[#allocation5 + $0x20] sm:$0xff]
    %v319 = vld [vmem:[#allocation5 + $0x28] sm:$0xff]
    %v320 = vld [vmem:[#allocation5 + $0x30] sm:$0xff]
    %v321 = vld [vmem:[#allocation5 + $0x38] sm:$0xff]
    %v322 = vld [vmem:[#allocation5 + $0x40] sm:$0xff]
    %v323 = vld [vmem:[#allocation5 + $0x48] sm:$0xff]
    %v324 = vld [vmem:[#allocation5 + $0x50] sm:$0xff]
    %v325 = vld [vmem:[#allocation5 + $0x58] sm:$0xff]
    %v326 = vld [vmem:[#allocation5 + $0x60] sm:$0xff]
    %v327 = vld [vmem:[#allocation5 + $0x68] sm:$0xff]
    %v328 = vld [vmem:[#allocation5 + $0x70] sm:$0xff]
    %v329 = vld [vmem:[#allocation5 + $0x78] sm:$0xff]
    %v330 = vld [vmem:[#allocation5 + $0x80] sm:$0xff]
    %v331 = vld [vmem:[#allocation5 + $0x88] sm:$0xff]
    %v332 = vld [vmem:[#allocation5 + $0x90] sm:$0xff]
    %v333 = vld [vmem:[#allocation5 + $0x98] sm:$0xff]
    %v334 = vld [vmem:[#allocation5 + $0xa0] sm:$0xff]
    %v335 = vld [vmem:[#allocation5 + $0xa8] sm:$0xff]
    %v336 = vld [vmem:[#allocation5 + $0xb0] sm:$0xff]
    %v337 = vld [vmem:[#allocation5 + $0xb8] sm:$0xff]
    %v338 = vld [vmem:[#allocation5 + $0xc0] sm:$0xff]
    %v339 = vld [vmem:[#allocation5 + $0xc8] sm:$0xff]
    %v340 = vld [vmem:[#allocation5 + $0xd0] sm:$0xff]
    %v341 = vld [vmem:[#allocation5 + $0xd8] sm:$0xff]
    %v342 = vld [vmem:[#allocation5 + $0xe0] sm:$0xff]
    %v343 = vld [vmem:[#allocation5 + $0xe8] sm:$0xff]
    %v344 = vld [vmem:[#allocation5 + $0xf0] sm:$0xff]
    %v345 = vld [vmem:[#allocation5 + $0xf8] sm:$0xff]
    %v346 = vld [vmem:[#allocation5 + $0x100] sm:$0xff]
    %v347 = vld [vmem:[#allocation5 + $0x108] sm:$0xff]
    %v348 = vld [vmem:[#allocation5 + $0x110] sm:$0xff]
    %v349 = vld [vmem:[#allocation5 + $0x118] sm:$0xff]
    %v350 = vld [vmem:[#allocation5 + $0x120] sm:$0xff]
    %v351 = vld [vmem:[#allocation5 + $0x128] sm:$0xff]
    %v352 = vld [vmem:[#allocation5 + $0x130] sm:$0xff]
    %v353 = vld [vmem:[#allocation5 + $0x138] sm:$0xff]
    %v354 = vld [vmem:[#allocation5 + $0x140] sm:$0xff]
    %v355 = vld [vmem:[#allocation5 + $0x148] sm:$0xff]
    %v356 = vld [vmem:[#allocation5 + $0x150] sm:$0xff]
    %v357 = vld [vmem:[#allocation5 + $0x158] sm:$0xff]
    %v358 = vld [vmem:[#allocation5 + $0x160] sm:$0xff]
    %v359 = vld [vmem:[#allocation5 + $0x168] sm:$0xff]
    %v360 = vld [vmem:[#allocation5 + $0x170] sm:$0xff]
    %v361 = vld [vmem:[#allocation5 + $0x178] sm:$0xff]
    %362 = vmatpush.msra.mxu0 %v359
    %363 = vmatpush.msra.mxu0 %v356
    %364 = vmatpush.msra.mxu0 %v353
    %365 = vmatpush.msra.mxu0 %v350
    %366 = vmatpush.msra.mxu0 %v347
    %367 = vmatpush.msra.mxu0 %v344
    %368 = vmatpush.msra.mxu0 %v341
    %369 = vmatpush.msra.mxu0 %v338
    %370 = vmatpush.msra.mxu0 %v335
    %371 = vmatpush.msra.mxu0 %v332
    %372 = vmatpush.msra.mxu0 %v329
    %373 = vmatpush.msra.mxu0 %v326
    %374 = vmatpush.msra.mxu0 %v323
    %375 = vmatpush.msra.mxu0 %v320
    %376 = vmatpush.msra.mxu0 %v317
    %377 = vmatpush.msra.mxu0 %v314
    %378 = vmatmul.f32.gmra.mxu0 0.0
    %v379 = vpop.f32.mrf.mxu0
    %v380 = vadd.f32 0.0, %v379
    %381 = vdwg.mxu0
    %382 = vmatpush.msra.mxu0 %v360
    %383 = vmatpush.msra.mxu0 %v357
    %384 = vmatpush.msra.mxu0 %v354
    %385 = vmatpush.msra.mxu0 %v351
    %386 = vmatpush.msra.mxu0 %v348
    %387 = vmatpush.msra.mxu0 %v345
    %388 = vmatpush.msra.mxu0 %v342
    %389 = vmatpush.msra.mxu0 %v339
    %390 = vmatpush.msra.mxu0 %v336
    %391 = vmatpush.msra.mxu0 %v333
    %392 = vmatpush.msra.mxu0 %v330
    %393 = vmatpush.msra.mxu0 %v327
    %394 = vmatpush.msra.mxu0 %v324
    %395 = vmatpush.msra.mxu0 %v321
    %396 = vmatpush.msra.mxu0 %v318
    %397 = vmatpush.msra.mxu0 %v315
    %398 = vmatmul.f32.gmra.mxu0 0.0
    %v399 = vpop.f32.mrf.mxu0
    %v400 = vadd.f32 0.0, %v399
    %401 = vdwg.mxu0
    %402 = vmatpush.msra.mxu0 %v361
    %403 = vmatpush.msra.mxu0 %v358
    %404 = vmatpush.msra.mxu0 %v355
    %405 = vmatpush.msra.mxu0 %v352
    %406 = vmatpush.msra.mxu0 %v349
    %407 = vmatpush.msra.mxu0 %v346
    %408 = vmatpush.msra.mxu0 %v343
    %409 = vmatpush.msra.mxu0 %v340
    %410 = vmatpush.msra.mxu0 %v337
    %411 = vmatpush.msra.mxu0 %v334
    %412 = vmatpush.msra.mxu0 %v331
    %413 = vmatpush.msra.mxu0 %v328
    %414 = vmatpush.msra.mxu0 %v325
    %415 = vmatpush.msra.mxu0 %v322
    %416 = vmatpush.msra.mxu0 %v319
    %417 = vmatpush.msra.mxu0 %v316
    %418 = vmatmul.f32.gmra.mxu0 0.0
    %v419 = vpop.f32.mrf.mxu0
    %v420 = vadd.f32 0.0, %v419
    %421 = vdwg.mxu0
    %v422 = vadd.f32 %v311, %v380
    %v423 = vxor.u32 %v422, 2147483648
    %v424 = vmul.f32 %v423, 1.442695
    %v425 = vpow.pop %v424
    %v426 = vadd.f32 %v425, 1.0
    %v427 = vrcp.pop %v426
    %v428 = vmul.f32 %v426, %v427
    %v429 = vsub.f32 1.0, %v428
    %v430 = vmul.f32 %v427, %v429
    %v431 = vadd.f32 %v427, %v430
    %vm432 = vweird.f32 %v426
    %vm433 = vweird.f32 %v427
    %vm434 = vmor %vm432, %vm433
    %v435 = vsel %vm434, %v427, %v431
    %v436 = vand.u32 2147483647, %v426
    %vm437 = vcmp.eq.f32.partialorder %v436, 8.507059e+37
    %v438 = vand.u32 %v426, 2147483648
    %v439 = vor.u32 1.1754944e-38, %v438
    %v440 = vsel %vm437, %v439, %v435
    %v441 = vmul.f32 1.0, %v440
    %v442 = vadd.f32 %v312, %v400
    %v443 = vxor.u32 %v442, 2147483648
    %v444 = vmul.f32 %v443, 1.442695
    %v445 = vpow.pop %v444
    %v446 = vadd.f32 %v445, 1.0
    %v447 = vrcp.pop %v446
    %v448 = vmul.f32 %v446, %v447
    %v449 = vsub.f32 1.0, %v448
    %v450 = vmul.f32 %v447, %v449
    %v451 = vadd.f32 %v447, %v450
    %vm452 = vweird.f32 %v446
    %vm453 = vweird.f32 %v447
    %vm454 = vmor %vm452, %vm453
    %v455 = vsel %vm454, %v447, %v451
    %v456 = vand.u32 2147483647, %v446
    %vm457 = vcmp.eq.f32.partialorder %v456, 8.507059e+37
    %v458 = vand.u32 %v446, 2147483648
    %v459 = vor.u32 1.1754944e-38, %v458
    %v460 = vsel %vm457, %v459, %v455
    %v461 = vmul.f32 1.0, %v460
    %v462 = vld [vmem:[%s4] sm:$0x1]
    %v464 = vperm.slane %v462, 0
    %v466 = vadd.f32 %v420, %v464
    %v467 = vmul.f32 %v441, %v466
    %v468 = vadd.f32 %v313, %v467
    %v469 = vtanh.pop %v468
    %v470 = vsub.f32 1.0, %v461
    %v471 = vmul.f32 %v470, %v469
    %v472 = vmul.f32 %v461, 0.0
    %v473 = vadd.f32 %v471, %v472
    %474 = vst [vmem:[#allocation3] sm:$0xff] %v473
    %v475 = vld [vmem:[#allocation2 + $0x18] sm:$0xff]
    %v476 = vld [vmem:[#allocation2 + $0x20] sm:$0xff]
    %v477 = vld [vmem:[#allocation2 + $0x28] sm:$0xff]
    %v478 = vld [vmem:[#allocation5] sm:$0xff]
    %v479 = vld [vmem:[#allocation5 + $0x8] sm:$0xff]
    %v480 = vld [vmem:[#allocation5 + $0x10] sm:$0xff]
    %v481 = vld [vmem:[#allocation5 + $0x18] sm:$0xff]
    %v482 = vld [vmem:[#allocation5 + $0x20] sm:$0xff]
    %v483 = vld [vmem:[#allocation5 + $0x28] sm:$0xff]
    %v484 = vld [vmem:[#allocation5 + $0x30] sm:$0xff]
    %v485 = vld [vmem:[#allocation5 + $0x38] sm:$0xff]
    %v486 = vld [vmem:[#allocation5 + $0x40] sm:$0xff]
    %v487 = vld [vmem:[#allocation5 + $0x48] sm:$0xff]
    %v488 = vld [vmem:[#allocation5 + $0x50] sm:$0xff]
    %v489 = vld [vmem:[#allocation5 + $0x58] sm:$0xff]
    %v490 = vld [vmem:[#allocation5 + $0x60] sm:$0xff]
    %v491 = vld [vmem:[#allocation5 + $0x68] sm:$0xff]
    %v492 = vld [vmem:[#allocation5 + $0x70] sm:$0xff]
    %v493 = vld [vmem:[#allocation5 + $0x78] sm:$0xff]
    %v494 = vld [vmem:[#allocation5 + $0x80] sm:$0xff]
    %v495 = vld [vmem:[#allocation5 + $0x88] sm:$0xff]
    %v496 = vld [vmem:[#allocation5 + $0x90] sm:$0xff]
    %v497 = vld [vmem:[#allocation5 + $0x98] sm:$0xff]
    %v498 = vld [vmem:[#allocation5 + $0xa0] sm:$0xff]
    %v499 = vld [vmem:[#allocation5 + $0xa8] sm:$0xff]
    %v500 = vld [vmem:[#allocation5 + $0xb0] sm:$0xff]
    %v501 = vld [vmem:[#allocation5 + $0xb8] sm:$0xff]
    %v502 = vld [vmem:[#allocation5 + $0xc0] sm:$0xff]
    %v503 = vld [vmem:[#allocation5 + $0xc8] sm:$0xff]
    %v504 = vld [vmem:[#allocation5 + $0xd0] sm:$0xff]
    %v505 = vld [vmem:[#allocation5 + $0xd8] sm:$0xff]
    %v506 = vld [vmem:[#allocation5 + $0xe0] sm:$0xff]
    %v507 = vld [vmem:[#allocation5 + $0xe8] sm:$0xff]
    %v508 = vld [vmem:[#allocation5 + $0xf0] sm:$0xff]
    %v509 = vld [vmem:[#allocation5 + $0xf8] sm:$0xff]
    %v510 = vld [vmem:[#allocation5 + $0x100] sm:$0xff]
    %v511 = vld [vmem:[#allocation5 + $0x108] sm:$0xff]
    %v512 = vld [vmem:[#allocation5 + $0x110] sm:$0xff]
    %v513 = vld [vmem:[#allocation5 + $0x118] sm:$0xff]
    %v514 = vld [vmem:[#allocation5 + $0x120] sm:$0xff]
    %v515 = vld [vmem:[#allocation5 + $0x128] sm:$0xff]
    %v516 = vld [vmem:[#allocation5 + $0x130] sm:$0xff]
    %v517 = vld [vmem:[#allocation5 + $0x138] sm:$0xff]
    %v518 = vld [vmem:[#allocation5 + $0x140] sm:$0xff]
    %v519 = vld [vmem:[#allocation5 + $0x148] sm:$0xff]
    %v520 = vld [vmem:[#allocation5 + $0x150] sm:$0xff]
    %v521 = vld [vmem:[#allocation5 + $0x158] sm:$0xff]
    %v522 = vld [vmem:[#allocation5 + $0x160] sm:$0xff]
    %v523 = vld [vmem:[#allocation5 + $0x168] sm:$0xff]
    %v524 = vld [vmem:[#allocation5 + $0x170] sm:$0xff]
    %v525 = vld [vmem:[#allocation5 + $0x178] sm:$0xff]
    %526 = vmatpush.msra.mxu0 %v523
    %527 = vmatpush.msra.mxu0 %v520
    %528 = vmatpush.msra.mxu0 %v517
    %529 = vmatpush.msra.mxu0 %v514
    %530 = vmatpush.msra.mxu0 %v511
    %531 = vmatpush.msra.mxu0 %v508
    %532 = vmatpush.msra.mxu0 %v505
    %533 = vmatpush.msra.mxu0 %v502
    %534 = vmatpush.msra.mxu0 %v499
    %535 = vmatpush.msra.mxu0 %v496
    %536 = vmatpush.msra.mxu0 %v493
    %537 = vmatpush.msra.mxu0 %v490
    %538 = vmatpush.msra.mxu0 %v487
    %539 = vmatpush.msra.mxu0 %v484
    %540 = vmatpush.msra.mxu0 %v481
    %541 = vmatpush.msra.mxu0 %v478
    %542 = vmatmul.f32.gmra.mxu0 %v473
    %v543 = vpop.f32.mrf.mxu0
    %v544 = vadd.f32 0.0, %v543
    %545 = vdwg.mxu0
    %546 = vmatpush.msra.mxu0 %v524
    %547 = vmatpush.msra.mxu0 %v521
    %548 = vmatpush.msra.mxu0 %v518
    %549 = vmatpush.msra.mxu0 %v515
    %550 = vmatpush.msra.mxu0 %v512
    %551 = vmatpush.msra.mxu0 %v509
    %552 = vmatpush.msra.mxu0 %v506
    %553 = vmatpush.msra.mxu0 %v503
    %554 = vmatpush.msra.mxu0 %v500
    %555 = vmatpush.msra.mxu0 %v497
    %556 = vmatpush.msra.mxu0 %v494
    %557 = vmatpush.msra.mxu0 %v491
    %558 = vmatpush.msra.mxu0 %v488
    %559 = vmatpush.msra.mxu0 %v485
    %560 = vmatpush.msra.mxu0 %v482
    %561 = vmatpush.msra.mxu0 %v479
    %562 = vmatmul.f32.gmra.mxu0 %v473
    %v563 = vpop.f32.mrf.mxu0
    %v564 = vadd.f32 0.0, %v563
    %565 = vdwg.mxu0
    %566 = vmatpush.msra.mxu0 %v525
    %567 = vmatpush.msra.mxu0 %v522
    %568 = vmatpush.msra.mxu0 %v519
    %569 = vmatpush.msra.mxu0 %v516
    %570 = vmatpush.msra.mxu0 %v513
    %571 = vmatpush.msra.mxu0 %v510
    %572 = vmatpush.msra.mxu0 %v507
    %573 = vmatpush.msra.mxu0 %v504
    %574 = vmatpush.msra.mxu0 %v501
    %575 = vmatpush.msra.mxu0 %v498
    %576 = vmatpush.msra.mxu0 %v495
    %577 = vmatpush.msra.mxu0 %v492
    %578 = vmatpush.msra.mxu0 %v489
    %579 = vmatpush.msra.mxu0 %v486
    %580 = vmatpush.msra.mxu0 %v483
    %581 = vmatpush.msra.mxu0 %v480
    %582 = vmatmul.f32.gmra.mxu0 %v473
    %v583 = vpop.f32.mrf.mxu0
    %v584 = vadd.f32 0.0, %v583
    %585 = vdwg.mxu0
    %v586 = vadd.f32 %v475, %v544
    %v587 = vxor.u32 %v586, 2147483648
    %v588 = vmul.f32 %v587, 1.442695
    %v589 = vpow.pop %v588
    %v590 = vadd.f32 %v589, 1.0
    %v591 = vrcp.pop %v590
    %v592 = vmul.f32 %v590, %v591
    %v593 = vsub.f32 1.0, %v592
    %v594 = vmul.f32 %v591, %v593
    %v595 = vadd.f32 %v591, %v594
    %vm596 = vweird.f32 %v590
    %vm597 = vweird.f32 %v591
    %vm598 = vmor %vm596, %vm597
    %v599 = vsel %vm598, %v591, %v595
    %v600 = vand.u32 2147483647, %v590
    %vm601 = vcmp.eq.f32.partialorder %v600, 8.507059e+37
    %v602 = vand.u32 %v590, 2147483648
    %v603 = vor.u32 1.1754944e-38, %v602
    %v604 = vsel %vm601, %v603, %v599
    %v605 = vmul.f32 1.0, %v604
    %v606 = vadd.f32 %v476, %v564
    %v607 = vxor.u32 %v606, 2147483648
    %v608 = vmul.f32 %v607, 1.442695
    %v609 = vpow.pop %v608
    %v610 = vadd.f32 %v609, 1.0
    %v611 = vrcp.pop %v610
    %v612 = vmul.f32 %v610, %v611
    %v613 = vsub.f32 1.0, %v612
    %v614 = vmul.f32 %v611, %v613
    %v615 = vadd.f32 %v611, %v614
    %vm616 = vweird.f32 %v610
    %vm617 = vweird.f32 %v611
    %vm618 = vmor %vm616, %vm617
    %v619 = vsel %vm618, %v611, %v615
    %v620 = vand.u32 2147483647, %v610
    %vm621 = vcmp.eq.f32.partialorder %v620, 8.507059e+37
    %v622 = vand.u32 %v610, 2147483648
    %v623 = vor.u32 1.1754944e-38, %v622
    %v624 = vsel %vm621, %v623, %v619
    %v625 = vmul.f32 1.0, %v624
    %v626 = vld [vmem:[%s4] sm:$0x1]
    %v628 = vperm.slane %v626, 0
    %v630 = vadd.f32 %v584, %v628
    %v631 = vmul.f32 %v605, %v630
    %v632 = vadd.f32 %v477, %v631
    %v633 = vtanh.pop %v632
    %v634 = vsub.f32 1.0, %v625
    %v635 = vmul.f32 %v634, %v633
    %v636 = vmul.f32 %v625, %v473
    %v637 = vadd.f32 %v635, %v636
    %638 = vst [vmem:[#allocation3 + $0x8] sm:$0xff] %v637
    %v639 = vld [vmem:[#allocation2 + $0x30] sm:$0xff]
    %v640 = vld [vmem:[#allocation2 + $0x38] sm:$0xff]
    %v641 = vld [vmem:[#allocation2 + $0x40] sm:$0xff]
    %v642 = vld [vmem:[#allocation5] sm:$0xff]
    %v643 = vld [vmem:[#allocation5 + $0x8] sm:$0xff]
    %v644 = vld [vmem:[#allocation5 + $0x10] sm:$0xff]
    %v645 = vld [vmem:[#allocation5 + $0x18] sm:$0xff]
    %v646 = vld [vmem:[#allocation5 + $0x20] sm:$0xff]
    %v647 = vld [vmem:[#allocation5 + $0x28] sm:$0xff]
    %v648 = vld [vmem:[#allocation5 + $0x30] sm:$0xff]
    %v649 = vld [vmem:[#allocation5 + $0x38] sm:$0xff]
    %v650 = vld [vmem:[#allocation5 + $0x40] sm:$0xff]
    %v651 = vld [vmem:[#allocation5 + $0x48] sm:$0xff]
    %v652 = vld [vmem:[#allocation5 + $0x50] sm:$0xff]
    %v653 = vld [vmem:[#allocation5 + $0x58] sm:$0xff]
    %v654 = vld [vmem:[#allocation5 + $0x60] sm:$0xff]
    %v655 = vld [vmem:[#allocation5 + $0x68] sm:$0xff]
    %v656 = vld [vmem:[#allocation5 + $0x70] sm:$0xff]
    %v657 = vld [vmem:[#allocation5 + $0x78] sm:$0xff]
    %v658 = vld [vmem:[#allocation5 + $0x80] sm:$0xff]
    %v659 = vld [vmem:[#allocation5 + $0x88] sm:$0xff]
    %v660 = vld [vmem:[#allocation5 + $0x90] sm:$0xff]
    %v661 = vld [vmem:[#allocation5 + $0x98] sm:$0xff]
    %v662 = vld [vmem:[#allocation5 + $0xa0] sm:$0xff]
    %v663 = vld [vmem:[#allocation5 + $0xa8] sm:$0xff]
    %v664 = vld [vmem:[#allocation5 + $0xb0] sm:$0xff]
    %v665 = vld [vmem:[#allocation5 + $0xb8] sm:$0xff]
    %v666 = vld [vmem:[#allocation5 + $0xc0] sm:$0xff]
    %v667 = vld [vmem:[#allocation5 + $0xc8] sm:$0xff]
    %v668 = vld [vmem:[#allocation5 + $0xd0] sm:$0xff]
    %v669 = vld [vmem:[#allocation5 + $0xd8] sm:$0xff]
    %v670 = vld [vmem:[#allocation5 + $0xe0] sm:$0xff]
    %v671 = vld [vmem:[#allocation5 + $0xe8] sm:$0xff]
    %v672 = vld [vmem:[#allocation5 + $0xf0] sm:$0xff]
    %v673 = vld [vmem:[#allocation5 + $0xf8] sm:$0xff]
    %v674 = vld [vmem:[#allocation5 + $0x100] sm:$0xff]
    %v675 = vld [vmem:[#allocation5 + $0x108] sm:$0xff]
    %v676 = vld [vmem:[#allocation5 + $0x110] sm:$0xff]
    %v677 = vld [vmem:[#allocation5 + $0x118] sm:$0xff]
    %v678 = vld [vmem:[#allocation5 + $0x120] sm:$0xff]
    %v679 = vld [vmem:[#allocation5 + $0x128] sm:$0xff]
    %v680 = vld [vmem:[#allocation5 + $0x130] sm:$0xff]
    %v681 = vld [vmem:[#allocation5 + $0x138] sm:$0xff]
    %v682 = vld [vmem:[#allocation5 + $0x140] sm:$0xff]
    %v683 = vld [vmem:[#allocation5 + $0x148] sm:$0xff]
    %v684 = vld [vmem:[#allocation5 + $0x150] sm:$0xff]
    %v685 = vld [vmem:[#allocation5 + $0x158] sm:$0xff]
    %v686 = vld [vmem:[#allocation5 + $0x160] sm:$0xff]
    %v687 = vld [vmem:[#allocation5 + $0x168] sm:$0xff]
    %v688 = vld [vmem:[#allocation5 + $0x170] sm:$0xff]
    %v689 = vld [vmem:[#allocation5 + $0x178] sm:$0xff]
    %690 = vmatpush.msra.mxu0 %v687
    %691 = vmatpush.msra.mxu0 %v684
    %692 = vmatpush.msra.mxu0 %v681
    %693 = vmatpush.msra.mxu0 %v678
    %694 = vmatpush.msra.mxu0 %v675
    %695 = vmatpush.msra.mxu0 %v672
    %696 = vmatpush.msra.mxu0 %v669
    %697 = vmatpush.msra.mxu0 %v666
    %698 = vmatpush.msra.mxu0 %v663
    %699 = vmatpush.msra.mxu0 %v660
    %700 = vmatpush.msra.mxu0 %v657
    %701 = vmatpush.msra.mxu0 %v654
    %702 = vmatpush.msra.mxu0 %v651
    %703 = vmatpush.msra.mxu0 %v648
    %704 = vmatpush.msra.mxu0 %v645
    %705 = vmatpush.msra.mxu0 %v642
    %706 = vmatmul.f32.gmra.mxu0 %v637
    %v707 = vpop.f32.mrf.mxu0
    %v708 = vadd.f32 0.0, %v707
    %709 = vdwg.mxu0
    %710 = vmatpush.msra.mxu0 %v688
    %711 = vmatpush.msra.mxu0 %v685
    %712 = vmatpush.msra.mxu0 %v682
    %713 = vmatpush.msra.mxu0 %v679
    %714 = vmatpush.msra.mxu0 %v676
    %715 = vmatpush.msra.mxu0 %v673
    %716 = vmatpush.msra.mxu0 %v670
    %717 = vmatpush.msra.mxu0 %v667
    %718 = vmatpush.msra.mxu0 %v664
    %719 = vmatpush.msra.mxu0 %v661
    %720 = vmatpush.msra.mxu0 %v658
    %721 = vmatpush.msra.mxu0 %v655
    %722 = vmatpush.msra.mxu0 %v652
    %723 = vmatpush.msra.mxu0 %v649
    %724 = vmatpush.msra.mxu0 %v646
    %725 = vmatpush.msra.mxu0 %v643
    %726 = vmatmul.f32.gmra.mxu0 %v637
    %v727 = vpop.f32.mrf.mxu0
    %v728 = vadd.f32 0.0, %v727
    %729 = vdwg.mxu0
    %730 = vmatpush.msra.mxu0 %v689
    %731 = vmatpush.msra.mxu0 %v686
    %732 = vmatpush.msra.mxu0 %v683
    %733 = vmatpush.msra.mxu0 %v680
    %734 = vmatpush.msra.mxu0 %v677
    %735 = vmatpush.msra.mxu0 %v674
    %736 = vmatpush.msra.mxu0 %v671
    %737 = vmatpush.msra.mxu0 %v668
    %738 = vmatpush.msra.mxu0 %v665
    %739 = vmatpush.msra.mxu0 %v662
    %740 = vmatpush.msra.mxu0 %v659
    %741 = vmatpush.msra.mxu0 %v656
    %742 = vmatpush.msra.mxu0 %v653
    %743 = vmatpush.msra.mxu0 %v650
    %744 = vmatpush.msra.mxu0 %v647
    %745 = vmatpush.msra.mxu0 %v644
    %746 = vmatmul.f32.gmra.mxu0 %v637
    %v747 = vpop.f32.mrf.mxu0
    %v748 = vadd.f32 0.0, %v747
    %749 = vdwg.mxu0
    %v750 = vadd.f32 %v639, %v708
    %v751 = vxor.u32 %v750, 2147483648
    %v752 = vmul.f32 %v751, 1.442695
    %v753 = vpow.pop %v752
    %v754 = vadd.f32 %v753, 1.0
    %v755 = vrcp.pop %v754
    %v756 = vmul.f32 %v754, %v755
    %v757 = vsub.f32 1.0, %v756
    %v758 = vmul.f32 %v755, %v757
    %v759 = vadd.f32 %v755, %v758
    %vm760 = vweird.f32 %v754
    %vm761 = vweird.f32 %v755
    %vm762 = vmor %vm760, %vm761
    %v763 = vsel %vm762, %v755, %v759
    %v764 = vand.u32 2147483647, %v754
    %vm765 = vcmp.eq.f32.partialorder %v764, 8.507059e+37
    %v766 = vand.u32 %v754, 2147483648
    %v767 = vor.u32 1.1754944e-38, %v766
    %v768 = vsel %vm765, %v767, %v763
    %v769 = vmul.f32 1.0, %v768
    %v770 = vadd.f32 %v640, %v728
    %v771 = vxor.u32 %v770, 2147483648
    %v772 = vmul.f32 %v771, 1.442695
    %v773 = vpow.pop %v772
    %v774 = vadd.f32 %v773, 1.0
    %v775 = vrcp.pop %v774
    %v776 = vmul.f32 %v774, %v775
    %v777 = vsub.f32 1.0, %v776
    %v778 = vmul.f32 %v775, %v777
    %v779 = vadd.f32 %v775, %v778
    %vm780 = vweird.f32 %v774
    %vm781 = vweird.f32 %v775
    %vm782 = vmor %vm780, %vm781
    %v783 = vsel %vm782, %v775, %v779
    %v784 = vand.u32 2147483647, %v774
    %vm785 = vcmp.eq.f32.partialorder %v784, 8.507059e+37
    %v786 = vand.u32 %v774, 2147483648
    %v787 = vor.u32 1.1754944e-38, %v786
    %v788 = vsel %vm785, %v787, %v783
    %v789 = vmul.f32 1.0, %v788
    %v790 = vld [vmem:[%s4] sm:$0x1]
    %v792 = vperm.slane %v790, 0
    %v794 = vadd.f32 %v748, %v792
    %v795 = vmul.f32 %v769, %v794
    %v796 = vadd.f32 %v641, %v795
    %v797 = vtanh.pop %v796
    %v798 = vsub.f32 1.0, %v789
    %v799 = vmul.f32 %v798, %v797
    %v800 = vmul.f32 %v789, %v637
    %v801 = vadd.f32 %v799, %v800
    %802 = vst [vmem:[#allocation3 + $0x10] sm:$0xff] %v801
    %v803 = vld [vmem:[#allocation2 + $0x48] sm:$0xff]
    %v804 = vld [vmem:[#allocation2 + $0x50] sm:$0xff]
    %v805 = vld [vmem:[#allocation2 + $0x58] sm:$0xff]
    %v806 = vld [vmem:[#allocation5] sm:$0xff]
    %v807 = vld [vmem:[#allocation5 + $0x8] sm:$0xff]
    %v808 = vld [vmem:[#allocation5 + $0x10] sm:$0xff]
    %v809 = vld [vmem:[#allocation5 + $0x18] sm:$0xff]
    %v810 = vld [vmem:[#allocation5 + $0x20] sm:$0xff]
    %v811 = vld [vmem:[#allocation5 + $0x28] sm:$0xff]
    %v812 = vld [vmem:[#allocation5 + $0x30] sm:$0xff]
    %v813 = vld [vmem:[#allocation5 + $0x38] sm:$0xff]
    %v814 = vld [vmem:[#allocation5 + $0x40] sm:$0xff]
    %v815 = vld [vmem:[#allocation5 + $0x48] sm:$0xff]
    %v816 = vld [vmem:[#allocation5 + $0x50] sm:$0xff]
    %v817 = vld [vmem:[#allocation5 + $0x58] sm:$0xff]
    %v818 = vld [vmem:[#allocation5 + $0x60] sm:$0xff]
    %v819 = vld [vmem:[#allocation5 + $0x68] sm:$0xff]
    %v820 = vld [vmem:[#allocation5 + $0x70] sm:$0xff]
    %v821 = vld [vmem:[#allocation5 + $0x78] sm:$0xff]
    %v822 = vld [vmem:[#allocation5 + $0x80] sm:$0xff]
    %v823 = vld [vmem:[#allocation5 + $0x88] sm:$0xff]
    %v824 = vld [vmem:[#allocation5 + $0x90] sm:$0xff]
    %v825 = vld [vmem:[#allocation5 + $0x98] sm:$0xff]
    %v826 = vld [vmem:[#allocation5 + $0xa0] sm:$0xff]
    %v827 = vld [vmem:[#allocation5 + $0xa8] sm:$0xff]
    %v828 = vld [vmem:[#allocation5 + $0xb0] sm:$0xff]
    %v829 = vld [vmem:[#allocation5 + $0xb8] sm:$0xff]
    %v830 = vld [vmem:[#allocation5 + $0xc0] sm:$0xff]
    %v831 = vld [vmem:[#allocation5 + $0xc8] sm:$0xff]
    %v832 = vld [vmem:[#allocation5 + $0xd0] sm:$0xff]
    %v833 = vld [vmem:[#allocation5 + $0xd8] sm:$0xff]
    %v834 = vld [vmem:[#allocation5 + $0xe0] sm:$0xff]
    %v835 = vld [vmem:[#allocation5 + $0xe8] sm:$0xff]
    %v836 = vld [vmem:[#allocation5 + $0xf0] sm:$0xff]
    %v837 = vld [vmem:[#allocation5 + $0xf8] sm:$0xff]
    %v838 = vld [vmem:[#allocation5 + $0x100] sm:$0xff]
    %v839 = vld [vmem:[#allocation5 + $0x108] sm:$0xff]
    %v840 = vld [vmem:[#allocation5 + $0x110] sm:$0xff]
    %v841 = vld [vmem:[#allocation5 + $0x118] sm:$0xff]
    %v842 = vld [vmem:[#allocation5 + $0x120] sm:$0xff]
    %v843 = vld [vmem:[#allocation5 + $0x128] sm:$0xff]
    %v844 = vld [vmem:[#allocation5 + $0x130] sm:$0xff]
    %v845 = vld [vmem:[#allocation5 + $0x138] sm:$0xff]
    %v846 = vld [vmem:[#allocation5 + $0x140] sm:$0xff]
    %v847 = vld [vmem:[#allocation5 + $0x148] sm:$0xff]
    %v848 = vld [vmem:[#allocation5 + $0x150] sm:$0xff]
    %v849 = vld [vmem:[#allocation5 + $0x158] sm:$0xff]
    %v850 = vld [vmem:[#allocation5 + $0x160] sm:$0xff]
    %v851 = vld [vmem:[#allocation5 + $0x168] sm:$0xff]
    %v852 = vld [vmem:[#allocation5 + $0x170] sm:$0xff]
    %v853 = vld [vmem:[#allocation5 + $0x178] sm:$0xff]
    %854 = vmatpush.msra.mxu0 %v851
    %855 = vmatpush.msra.mxu0 %v848
    %856 = vmatpush.msra.mxu0 %v845
    %857 = vmatpush.msra.mxu0 %v842
    %858 = vmatpush.msra.mxu0 %v839
    %859 = vmatpush.msra.mxu0 %v836
    %860 = vmatpush.msra.mxu0 %v833
    %861 = vmatpush.msra.mxu0 %v830
    %862 = vmatpush.msra.mxu0 %v827
    %863 = vmatpush.msra.mxu0 %v824
    %864 = vmatpush.msra.mxu0 %v821
    %865 = vmatpush.msra.mxu0 %v818
    %866 = vmatpush.msra.mxu0 %v815
    %867 = vmatpush.msra.mxu0 %v812
    %868 = vmatpush.msra.mxu0 %v809
    %869 = vmatpush.msra.mxu0 %v806
    %870 = vmatmul.f32.gmra.mxu0 %v801
    %v871 = vpop.f32.mrf.mxu0
    %v872 = vadd.f32 0.0, %v871
    %873 = vdwg.mxu0
    %874 = vmatpush.msra.mxu0 %v852
    %875 = vmatpush.msra.mxu0 %v849
    %876 = vmatpush.msra.mxu0 %v846
    %877 = vmatpush.msra.mxu0 %v843
    %878 = vmatpush.msra.mxu0 %v840
    %879 = vmatpush.msra.mxu0 %v837
    %880 = vmatpush.msra.mxu0 %v834
    %881 = vmatpush.msra.mxu0 %v831
    %882 = vmatpush.msra.mxu0 %v828
    %883 = vmatpush.msra.mxu0 %v825
    %884 = vmatpush.msra.mxu0 %v822
    %885 = vmatpush.msra.mxu0 %v819
    %886 = vmatpush.msra.mxu0 %v816
    %887 = vmatpush.msra.mxu0 %v813
    %888 = vmatpush.msra.mxu0 %v810
    %889 = vmatpush.msra.mxu0 %v807
    %890 = vmatmul.f32.gmra.mxu0 %v801
    %v891 = vpop.f32.mrf.mxu0
    %v892 = vadd.f32 0.0, %v891
    %893 = vdwg.mxu0
    %894 = vmatpush.msra.mxu0 %v853
    %895 = vmatpush.msra.mxu0 %v850
    %896 = vmatpush.msra.mxu0 %v847
    %897 = vmatpush.msra.mxu0 %v844
    %898 = vmatpush.msra.mxu0 %v841
    %899 = vmatpush.msra.mxu0 %v838
    %900 = vmatpush.msra.mxu0 %v835
    %901 = vmatpush.msra.mxu0 %v832
    %902 = vmatpush.msra.mxu0 %v829
    %903 = vmatpush.msra.mxu0 %v826
    %904 = vmatpush.msra.mxu0 %v823
    %905 = vmatpush.msra.mxu0 %v820
    %906 = vmatpush.msra.mxu0 %v817
    %907 = vmatpush.msra.mxu0 %v814
    %908 = vmatpush.msra.mxu0 %v811
    %909 = vmatpush.msra.mxu0 %v808
    %910 = vmatmul.f32.gmra.mxu0 %v801
    %v911 = vpop.f32.mrf.mxu0
    %v912 = vadd.f32 0.0, %v911
    %913 = vdwg.mxu0
    %v914 = vadd.f32 %v803, %v872
    %v915 = vxor.u32 %v914, 2147483648
    %v916 = vmul.f32 %v915, 1.442695
    %v917 = vpow.pop %v916
    %v918 = vadd.f32 %v917, 1.0
    %v919 = vrcp.pop %v918
    %v920 = vmul.f32 %v918, %v919
    %v921 = vsub.f32 1.0, %v920
    %v922 = vmul.f32 %v919, %v921
    %v923 = vadd.f32 %v919, %v922
    %vm924 = vweird.f32 %v918
    %vm925 = vweird.f32 %v919
    %vm926 = vmor %vm924, %vm925
    %v927 = vsel %vm926, %v919, %v923
    %v928 = vand.u32 2147483647, %v918
    %vm929 = vcmp.eq.f32.partialorder %v928, 8.507059e+37
    %v930 = vand.u32 %v918, 2147483648
    %v931 = vor.u32 1.1754944e-38, %v930
    %v932 = vsel %vm929, %v931, %v927
    %v933 = vmul.f32 1.0, %v932
    %v934 = vadd.f32 %v804, %v892
    %v935 = vxor.u32 %v934, 2147483648
    %v936 = vmul.f32 %v935, 1.442695
    %v937 = vpow.pop %v936
    %v938 = vadd.f32 %v937, 1.0
    %v939 = vrcp.pop %v938
    %v940 = vmul.f32 %v938, %v939
    %v941 = vsub.f32 1.0, %v940
    %v942 = vmul.f32 %v939, %v941
    %v943 = vadd.f32 %v939, %v942
    %vm944 = vweird.f32 %v938
    %vm945 = vweird.f32 %v939
    %vm946 = vmor %vm944, %vm945
    %v947 = vsel %vm946, %v939, %v943
    %v948 = vand.u32 2147483647, %v938
    %vm949 = vcmp.eq.f32.partialorder %v948, 8.507059e+37
    %v950 = vand.u32 %v938, 2147483648
    %v951 = vor.u32 1.1754944e-38, %v950
    %v952 = vsel %vm949, %v951, %v947
    %v953 = vmul.f32 1.0, %v952
    %v954 = vld [vmem:[%s4] sm:$0x1]
    %v956 = vperm.slane %v954, 0
    %v958 = vadd.f32 %v912, %v956
    %v959 = vmul.f32 %v933, %v958
    %v960 = vadd.f32 %v805, %v959
    %v961 = vtanh.pop %v960
    %v962 = vsub.f32 1.0, %v953
    %v963 = vmul.f32 %v962, %v961
    %v964 = vmul.f32 %v953, %v801
    %v965 = vadd.f32 %v963, %v964
    %966 = vst [vmem:[#allocation3 + $0x18] sm:$0xff] %v965
    %v967 = vld [vmem:[#allocation2 + $0x60] sm:$0xff]
    %v968 = vld [vmem:[#allocation2 + $0x68] sm:$0xff]
    %v969 = vld [vmem:[#allocation2 + $0x70] sm:$0xff]
    %v970 = vld [vmem:[#allocation5] sm:$0xff]
    %v971 = vld [vmem:[#allocation5 + $0x8] sm:$0xff]
    %v972 = vld [vmem:[#allocation5 + $0x10] sm:$0xff]
    %v973 = vld [vmem:[#allocation5 + $0x18] sm:$0xff]
    %v974 = vld [vmem:[#allocation5 + $0x20] sm:$0xff]
    %v975 = vld [vmem:[#allocation5 + $0x28] sm:$0xff]
    %v976 = vld [vmem:[#allocation5 + $0x30] sm:$0xff]
    %v977 = vld [vmem:[#allocation5 + $0x38] sm:$0xff]
    %v978 = vld [vmem:[#allocation5 + $0x40] sm:$0xff]
    %v979 = vld [vmem:[#allocation5 + $0x48] sm:$0xff]
    %v980 = vld [vmem:[#allocation5 + $0x50] sm:$0xff]
    %v981 = vld [vmem:[#allocation5 + $0x58] sm:$0xff]
    %v982 = vld [vmem:[#allocation5 + $0x60] sm:$0xff]
    %v983 = vld [vmem:[#allocation5 + $0x68] sm:$0xff]
    %v984 = vld [vmem:[#allocation5 + $0x70] sm:$0xff]
    %v985 = vld [vmem:[#allocation5 + $0x78] sm:$0xff]
    %v986 = vld [vmem:[#allocation5 + $0x80] sm:$0xff]
    %v987 = vld [vmem:[#allocation5 + $0x88] sm:$0xff]
    %v988 = vld [vmem:[#allocation5 + $0x90] sm:$0xff]
    %v989 = vld [vmem:[#allocation5 + $0x98] sm:$0xff]
    %v990 = vld [vmem:[#allocation5 + $0xa0] sm:$0xff]
    %v991 = vld [vmem:[#allocation5 + $0xa8] sm:$0xff]
    %v992 = vld [vmem:[#allocation5 + $0xb0] sm:$0xff]
    %v993 = vld [vmem:[#allocation5 + $0xb8] sm:$0xff]
    %v994 = vld [vmem:[#allocation5 + $0xc0] sm:$0xff]
    %v995 = vld [vmem:[#allocation5 + $0xc8] sm:$0xff]
    %v996 = vld [vmem:[#allocation5 + $0xd0] sm:$0xff]
    %v997 = vld [vmem:[#allocation5 + $0xd8] sm:$0xff]
    %v998 = vld [vmem:[#allocation5 + $0xe0] sm:$0xff]
    %v999 = vld [vmem:[#allocation5 + $0xe8] sm:$0xff]
    %v1000 = vld [vmem:[#allocation5 + $0xf0] sm:$0xff]
    %v1001 = vld [vmem:[#allocation5 + $0xf8] sm:$0xff]
    %v1002 = vld [vmem:[#allocation5 + $0x100] sm:$0xff]
    %v1003 = vld [vmem:[#allocation5 + $0x108] sm:$0xff]
    %v1004 = vld [vmem:[#allocation5 + $0x110] sm:$0xff]
    %v1005 = vld [vmem:[#allocation5 + $0x118] sm:$0xff]
    %v1006 = vld [vmem:[#allocation5 + $0x120] sm:$0xff]
    %v1007 = vld [vmem:[#allocation5 + $0x128] sm:$0xff]
    %v1008 = vld [vmem:[#allocation5 + $0x130] sm:$0xff]
    %v1009 = vld [vmem:[#allocation5 + $0x138] sm:$0xff]
    %v1010 = vld [vmem:[#allocation5 + $0x140] sm:$0xff]
    %v1011 = vld [vmem:[#allocation5 + $0x148] sm:$0xff]
    %v1012 = vld [vmem:[#allocation5 + $0x150] sm:$0xff]
    %v1013 = vld [vmem:[#allocation5 + $0x158] sm:$0xff]
    %v1014 = vld [vmem:[#allocation5 + $0x160] sm:$0xff]
    %v1015 = vld [vmem:[#allocation5 + $0x168] sm:$0xff]
    %v1016 = vld [vmem:[#allocation5 + $0x170] sm:$0xff]
    %v1017 = vld [vmem:[#allocation5 + $0x178] sm:$0xff]
    %1018 = vmatpush.msra.mxu0 %v1015
    %1019 = vmatpush.msra.mxu0 %v1012
    %1020 = vmatpush.msra.mxu0 %v1009
    %1021 = vmatpush.msra.mxu0 %v1006
    %1022 = vmatpush.msra.mxu0 %v1003
    %1023 = vmatpush.msra.mxu0 %v1000
    %1024 = vmatpush.msra.mxu0 %v997
    %1025 = vmatpush.msra.mxu0 %v994
    %1026 = vmatpush.msra.mxu0 %v991
    %1027 = vmatpush.msra.mxu0 %v988
    %1028 = vmatpush.msra.mxu0 %v985
    %1029 = vmatpush.msra.mxu0 %v982
    %1030 = vmatpush.msra.mxu0 %v979
    %1031 = vmatpush.msra.mxu0 %v976
    %1032 = vmatpush.msra.mxu0 %v973
    %1033 = vmatpush.msra.mxu0 %v970
    %1034 = vmatmul.f32.gmra.mxu0 %v965
    %v1035 = vpop.f32.mrf.mxu0
    %v1036 = vadd.f32 0.0, %v1035
    %1037 = vdwg.mxu0
    %1038 = vmatpush.msra.mxu0 %v1016
    %1039 = vmatpush.msra.mxu0 %v1013
    %1040 = vmatpush.msra.mxu0 %v1010
    %1041 = vmatpush.msra.mxu0 %v1007
    %1042 = vmatpush.msra.mxu0 %v1004
    %1043 = vmatpush.msra.mxu0 %v1001
    %1044 = vmatpush.msra.mxu0 %v998
    %1045 = vmatpush.msra.mxu0 %v995
    %1046 = vmatpush.msra.mxu0 %v992
    %1047 = vmatpush.msra.mxu0 %v989
    %1048 = vmatpush.msra.mxu0 %v986
    %1049 = vmatpush.msra.mxu0 %v983
    %1050 = vmatpush.msra.mxu0 %v980
    %1051 = vmatpush.msra.mxu0 %v977
    %1052 = vmatpush.msra.mxu0 %v974
    %1053 = vmatpush.msra.mxu0 %v971
    %1054 = vmatmul.f32.gmra.mxu0 %v965
    %v1055 = vpop.f32.mrf.mxu0
    %v1056 = vadd.f32 0.0, %v1055
    %1057 = vdwg.mxu0
    %1058 = vmatpush.msra.mxu0 %v1017
    %1059 = vmatpush.msra.mxu0 %v1014
    %1060 = vmatpush.msra.mxu0 %v1011
    %1061 = vmatpush.msra.mxu0 %v1008
    %1062 = vmatpush.msra.mxu0 %v1005
    %1063 = vmatpush.msra.mxu0 %v1002
    %1064 = vmatpush.msra.mxu0 %v999
    %1065 = vmatpush.msra.mxu0 %v996
    %1066 = vmatpush.msra.mxu0 %v993
    %1067 = vmatpush.msra.mxu0 %v990
    %1068 = vmatpush.msra.mxu0 %v987
    %1069 = vmatpush.msra.mxu0 %v984
    %1070 = vmatpush.msra.mxu0 %v981
    %1071 = vmatpush.msra.mxu0 %v978
    %1072 = vmatpush.msra.mxu0 %v975
    %1073 = vmatpush.msra.mxu0 %v972
    %1074 = vmatmul.f32.gmra.mxu0 %v965
    %v1075 = vpop.f32.mrf.mxu0
    %v1076 = vadd.f32 0.0, %v1075
    %1077 = vdwg.mxu0
    %v1078 = vadd.f32 %v967, %v1036
    %v1079 = vxor.u32 %v1078, 2147483648
    %v1080 = vmul.f32 %v1079, 1.442695
    %v1081 = vpow.pop %v1080
    %v1082 = vadd.f32 %v1081, 1.0
    %v1083 = vrcp.pop %v1082
    %v1084 = vmul.f32 %v1082, %v1083
    %v1085 = vsub.f32 1.0, %v1084
    %v1086 = vmul.f32 %v1083, %v1085
    %v1087 = vadd.f32 %v1083, %v1086
    %vm1088 = vweird.f32 %v1082
    %vm1089 = vweird.f32 %v1083
    %vm1090 = vmor %vm1088, %vm1089
    %v1091 = vsel %vm1090, %v1083, %v1087
    %v1092 = vand.u32 2147483647, %v1082
    %vm1093 = vcmp.eq.f32.partialorder %v1092, 8.507059e+37
    %v1094 = vand.u32 %v1082, 2147483648
    %v1095 = vor.u32 1.1754944e-38, %v1094
    %v1096 = vsel %vm1093, %v1095, %v1091
    %v1097 = vmul.f32 1.0, %v1096
    %v1098 = vadd.f32 %v968, %v1056
    %v1099 = vxor.u32 %v1098, 2147483648
    %v1100 = vmul.f32 %v1099, 1.442695
    %v1101 = vpow.pop %v1100
    %v1102 = vadd.f32 %v1101, 1.0
    %v1103 = vrcp.pop %v1102
    %v1104 = vmul.f32 %v1102, %v1103
    %v1105 = vsub.f32 1.0, %v1104
    %v1106 = vmul.f32 %v1103, %v1105
    %v1107 = vadd.f32 %v1103, %v1106
    %vm1108 = vweird.f32 %v1102
    %vm1109 = vweird.f32 %v1103
    %vm1110 = vmor %vm1108, %vm1109
    %v1111 = vsel %vm1110, %v1103, %v1107
    %v1112 = vand.u32 2147483647, %v1102
    %vm1113 = vcmp.eq.f32.partialorder %v1112, 8.507059e+37
    %v1114 = vand.u32 %v1102, 2147483648
    %v1115 = vor.u32 1.1754944e-38, %v1114
    %v1116 = vsel %vm1113, %v1115, %v1111
    %v1117 = vmul.f32 1.0, %v1116
    %v1118 = vld [vmem:[%s4] sm:$0x1]
    %v1120 = vperm.slane %v1118, 0
    %v1122 = vadd.f32 %v1076, %v1120
    %v1123 = vmul.f32 %v1097, %v1122
    %v1124 = vadd.f32 %v969, %v1123
    %v1125 = vtanh.pop %v1124
    %v1126 = vsub.f32 1.0, %v1117
    %v1127 = vmul.f32 %v1126, %v1125
    %v1128 = vmul.f32 %v1117, %v965
    %v1129 = vadd.f32 %v1127, %v1128
    %1130 = vst [vmem:[#allocation3 + $0x20] sm:$0xff] %v1129
    %v1131 = vld [vmem:[#allocation2 + $0x78] sm:$0xff]
    %v1132 = vld [vmem:[#allocation2 + $0x80] sm:$0xff]
    %v1133 = vld [vmem:[#allocation2 + $0x88] sm:$0xff]
    %v1134 = vld [vmem:[#allocation5] sm:$0xff]
    %v1135 = vld [vmem:[#allocation5 + $0x8] sm:$0xff]
    %v1136 = vld [vmem:[#allocation5 + $0x10] sm:$0xff]
    %v1137 = vld [vmem:[#allocation5 + $0x18] sm:$0xff]
    %v1138 = vld [vmem:[#allocation5 + $0x20] sm:$0xff]
    %v1139 = vld [vmem:[#allocation5 + $0x28] sm:$0xff]
    %v1140 = vld [vmem:[#allocation5 + $0x30] sm:$0xff]
    %v1141 = vld [vmem:[#allocation5 + $0x38] sm:$0xff]
    %v1142 = vld [vmem:[#allocation5 + $0x40] sm:$0xff]
    %v1143 = vld [vmem:[#allocation5 + $0x48] sm:$0xff]
    %v1144 = vld [vmem:[#allocation5 + $0x50] sm:$0xff]
    %v1145 = vld [vmem:[#allocation5 + $0x58] sm:$0xff]
    %v1146 = vld [vmem:[#allocation5 + $0x60] sm:$0xff]
    %v1147 = vld [vmem:[#allocation5 + $0x68] sm:$0xff]
    %v1148 = vld [vmem:[#allocation5 + $0x70] sm:$0xff]
    %v1149 = vld [vmem:[#allocation5 + $0x78] sm:$0xff]
    %v1150 = vld [vmem:[#allocation5 + $0x80] sm:$0xff]
    %v1151 = vld [vmem:[#allocation5 + $0x88] sm:$0xff]
    %v1152 = vld [vmem:[#allocation5 + $0x90] sm:$0xff]
    %v1153 = vld [vmem:[#allocation5 + $0x98] sm:$0xff]
    %v1154 = vld [vmem:[#allocation5 + $0xa0] sm:$0xff]
    %v1155 = vld [vmem:[#allocation5 + $0xa8] sm:$0xff]
    %v1156 = vld [vmem:[#allocation5 + $0xb0] sm:$0xff]
    %v1157 = vld [vmem:[#allocation5 + $0xb8] sm:$0xff]
    %v1158 = vld [vmem:[#allocation5 + $0xc0] sm:$0xff]
    %v1159 = vld [vmem:[#allocation5 + $0xc8] sm:$0xff]
    %v1160 = vld [vmem:[#allocation5 + $0xd0] sm:$0xff]
    %v1161 = vld [vmem:[#allocation5 + $0xd8] sm:$0xff]
    %v1162 = vld [vmem:[#allocation5 + $0xe0] sm:$0xff]
    %v1163 = vld [vmem:[#allocation5 + $0xe8] sm:$0xff]
    %v1164 = vld [vmem:[#allocation5 + $0xf0] sm:$0xff]
    %v1165 = vld [vmem:[#allocation5 + $0xf8] sm:$0xff]
    %v1166 = vld [vmem:[#allocation5 + $0x100] sm:$0xff]
    %v1167 = vld [vmem:[#allocation5 + $0x108] sm:$0xff]
    %v1168 = vld [vmem:[#allocation5 + $0x110] sm:$0xff]
    %v1169 = vld [vmem:[#allocation5 + $0x118] sm:$0xff]
    %v1170 = vld [vmem:[#allocation5 + $0x120] sm:$0xff]
    %v1171 = vld [vmem:[#allocation5 + $0x128] sm:$0xff]
    %v1172 = vld [vmem:[#allocation5 + $0x130] sm:$0xff]
    %v1173 = vld [vmem:[#allocation5 + $0x138] sm:$0xff]
    %v1174 = vld [vmem:[#allocation5 + $0x140] sm:$0xff]
    %v1175 = vld [vmem:[#allocation5 + $0x148] sm:$0xff]
    %v1176 = vld [vmem:[#allocation5 + $0x150] sm:$0xff]
    %v1177 = vld [vmem:[#allocation5 + $0x158] sm:$0xff]
    %v1178 = vld [vmem:[#allocation5 + $0x160] sm:$0xff]
    %v1179 = vld [vmem:[#allocation5 + $0x168] sm:$0xff]
    %v1180 = vld [vmem:[#allocation5 + $0x170] sm:$0xff]
    %v1181 = vld [vmem:[#allocation5 + $0x178] sm:$0xff]
    %1182 = vmatpush.msra.mxu0 %v1179
    %1183 = vmatpush.msra.mxu0 %v1176
    %1184 = vmatpush.msra.mxu0 %v1173
    %1185 = vmatpush.msra.mxu0 %v1170
    %1186 = vmatpush.msra.mxu0 %v1167
    %1187 = vmatpush.msra.mxu0 %v1164
    %1188 = vmatpush.msra.mxu0 %v1161
    %1189 = vmatpush.msra.mxu0 %v1158
    %1190 = vmatpush.msra.mxu0 %v1155
    %1191 = vmatpush.msra.mxu0 %v1152
    %1192 = vmatpush.msra.mxu0 %v1149
    %1193 = vmatpush.msra.mxu0 %v1146
    %1194 = vmatpush.msra.mxu0 %v1143
    %1195 = vmatpush.msra.mxu0 %v1140
    %1196 = vmatpush.msra.mxu0 %v1137
    %1197 = vmatpush.msra.mxu0 %v1134
    %1198 = vmatmul.f32.gmra.mxu0 %v1129
    %v1199 = vpop.f32.mrf.mxu0
    %v1200 = vadd.f32 0.0, %v1199
    %1201 = vdwg.mxu0
    %1202 = vmatpush.msra.mxu0 %v1180
    %1203 = vmatpush.msra.mxu0 %v1177
    %1204 = vmatpush.msra.mxu0 %v1174
    %1205 = vmatpush.msra.mxu0 %v1171
    %1206 = vmatpush.msra.mxu0 %v1168
    %1207 = vmatpush.msra.mxu0 %v1165
    %1208 = vmatpush.msra.mxu0 %v1162
    %1209 = vmatpush.msra.mxu0 %v1159
    %1210 = vmatpush.msra.mxu0 %v1156
    %1211 = vmatpush.msra.mxu0 %v1153
    %1212 = vmatpush.msra.mxu0 %v1150
    %1213 = vmatpush.msra.mxu0 %v1147
    %1214 = vmatpush.msra.mxu0 %v1144
    %1215 = vmatpush.msra.mxu0 %v1141
    %1216 = vmatpush.msra.mxu0 %v1138
    %1217 = vmatpush.msra.mxu0 %v1135
    %1218 = vmatmul.f32.gmra.mxu0 %v1129
    %v1219 = vpop.f32.mrf.mxu0
    %v1220 = vadd.f32 0.0, %v1219
    %1221 = vdwg.mxu0
    %1222 = vmatpush.msra.mxu0 %v1181
    %1223 = vmatpush.msra.mxu0 %v1178
    %1224 = vmatpush.msra.mxu0 %v1175
    %1225 = vmatpush.msra.mxu0 %v1172
    %1226 = vmatpush.msra.mxu0 %v1169
    %1227 = vmatpush.msra.mxu0 %v1166
    %1228 = vmatpush.msra.mxu0 %v1163
    %1229 = vmatpush.msra.mxu0 %v1160
    %1230 = vmatpush.msra.mxu0 %v1157
    %1231 = vmatpush.msra.mxu0 %v1154
    %1232 = vmatpush.msra.mxu0 %v1151
    %1233 = vmatpush.msra.mxu0 %v1148
    %1234 = vmatpush.msra.mxu0 %v1145
    %1235 = vmatpush.msra.mxu0 %v1142
    %1236 = vmatpush.msra.mxu0 %v1139
    %1237 = vmatpush.msra.mxu0 %v1136
    %1238 = vmatmul.f32.gmra.mxu0 %v1129
    %v1239 = vpop.f32.mrf.mxu0
    %v1240 = vadd.f32 0.0, %v1239
    %1241 = vdwg.mxu0
    %v1242 = vadd.f32 %v1131, %v1200
    %v1243 = vxor.u32 %v1242, 2147483648
    %v1244 = vmul.f32 %v1243, 1.442695
    %v1245 = vpow.pop %v1244
    %v1246 = vadd.f32 %v1245, 1.0
    %v1247 = vrcp.pop %v1246
    %v1248 = vmul.f32 %v1246, %v1247
    %v1249 = vsub.f32 1.0, %v1248
    %v1250 = vmul.f32 %v1247, %v1249
    %v1251 = vadd.f32 %v1247, %v1250
    %vm1252 = vweird.f32 %v1246
    %vm1253 = vweird.f32 %v1247
    %vm1254 = vmor %vm1252, %vm1253
    %v1255 = vsel %vm1254, %v1247, %v1251
    %v1256 = vand.u32 2147483647, %v1246
    %vm1257 = vcmp.eq.f32.partialorder %v1256, 8.507059e+37
    %v1258 = vand.u32 %v1246, 2147483648
    %v1259 = vor.u32 1.1754944e-38, %v1258
    %v1260 = vsel %vm1257, %v1259, %v1255
    %v1261 = vmul.f32 1.0, %v1260
    %v1262 = vadd.f32 %v1132, %v1220
    %v1263 = vxor.u32 %v1262, 2147483648
    %v1264 = vmul.f32 %v1263, 1.442695
    %v1265 = vpow.pop %v1264
    %v1266 = vadd.f32 %v1265, 1.0
    %v1267 = vrcp.pop %v1266
    %v1268 = vmul.f32 %v1266, %v1267
    %v1269 = vsub.f32 1.0, %v1268
    %v1270 = vmul.f32 %v1267, %v1269
    %v1271 = vadd.f32 %v1267, %v1270
    %vm1272 = vweird.f32 %v1266
    %vm1273 = vweird.f32 %v1267
    %vm1274 = vmor %vm1272, %vm1273
    %v1275 = vsel %vm1274, %v1267, %v1271
    %v1276 = vand.u32 2147483647, %v1266
    %vm1277 = vcmp.eq.f32.partialorder %v1276, 8.507059e+37
    %v1278 = vand.u32 %v1266, 2147483648
    %v1279 = vor.u32 1.1754944e-38, %v1278
    %v1280 = vsel %vm1277, %v1279, %v1275
    %v1281 = vmul.f32 1.0, %v1280
    %v1282 = vld [vmem:[%s4] sm:$0x1]
    %v1284 = vperm.slane %v1282, 0
    %v1286 = vadd.f32 %v1240, %v1284
    %v1287 = vmul.f32 %v1261, %v1286
    %v1288 = vadd.f32 %v1133, %v1287
    %v1289 = vtanh.pop %v1288
    %v1290 = vsub.f32 1.0, %v1281
    %v1291 = vmul.f32 %v1290, %v1289
    %v1292 = vmul.f32 %v1281, %v1129
    %v1293 = vadd.f32 %v1291, %v1292
    %1294 = vst [vmem:[#allocation3 + $0x28] sm:$0xff] %v1293
    %v1295 = vld [vmem:[#allocation2 + $0x90] sm:$0xff]
    %v1296 = vld [vmem:[#allocation2 + $0x98] sm:$0xff]
    %v1297 = vld [vmem:[#allocation2 + $0xa0] sm:$0xff]
    %v1298 = vld [vmem:[#allocation5] sm:$0xff]
    %v1299 = vld [vmem:[#allocation5 + $0x8] sm:$0xff]
    %v1300 = vld [vmem:[#allocation5 + $0x10] sm:$0xff]
    %v1301 = vld [vmem:[#allocation5 + $0x18] sm:$0xff]
    %v1302 = vld [vmem:[#allocation5 + $0x20] sm:$0xff]
    %v1303 = vld [vmem:[#allocation5 + $0x28] sm:$0xff]
    %v1304 = vld [vmem:[#allocation5 + $0x30] sm:$0xff]
    %v1305 = vld [vmem:[#allocation5 + $0x38] sm:$0xff]
    %v1306 = vld [vmem:[#allocation5 + $0x40] sm:$0xff]
    %v1307 = vld [vmem:[#allocation5 + $0x48] sm:$0xff]
    %v1308 = vld [vmem:[#allocation5 + $0x50] sm:$0xff]
    %v1309 = vld [vmem:[#allocation5 + $0x58] sm:$0xff]
    %v1310 = vld [vmem:[#allocation5 + $0x60] sm:$0xff]
    %v1311 = vld [vmem:[#allocation5 + $0x68] sm:$0xff]
    %v1312 = vld [vmem:[#allocation5 + $0x70] sm:$0xff]
    %v1313 = vld [vmem:[#allocation5 + $0x78] sm:$0xff]
    %v1314 = vld [vmem:[#allocation5 + $0x80] sm:$0xff]
    %v1315 = vld [vmem:[#allocation5 + $0x88] sm:$0xff]
    %v1316 = vld [vmem:[#allocation5 + $0x90] sm:$0xff]
    %v1317 = vld [vmem:[#allocation5 + $0x98] sm:$0xff]
    %v1318 = vld [vmem:[#allocation5 + $0xa0] sm:$0xff]
    %v1319 = vld [vmem:[#allocation5 + $0xa8] sm:$0xff]
    %v1320 = vld [vmem:[#allocation5 + $0xb0] sm:$0xff]
    %v1321 = vld [vmem:[#allocation5 + $0xb8] sm:$0xff]
    %v1322 = vld [vmem:[#allocation5 + $0xc0] sm:$0xff]
    %v1323 = vld [vmem:[#allocation5 + $0xc8] sm:$0xff]
    %v1324 = vld [vmem:[#allocation5 + $0xd0] sm:$0xff]
    %v1325 = vld [vmem:[#allocation5 + $0xd8] sm:$0xff]
    %v1326 = vld [vmem:[#allocation5 + $0xe0] sm:$0xff]
    %v1327 = vld [vmem:[#allocation5 + $0xe8] sm:$0xff]
    %v1328 = vld [vmem:[#allocation5 + $0xf0] sm:$0xff]
    %v1329 = vld [vmem:[#allocation5 + $0xf8] sm:$0xff]
    %v1330 = vld [vmem:[#allocation5 + $0x100] sm:$0xff]
    %v1331 = vld [vmem:[#allocation5 + $0x108] sm:$0xff]
    %v1332 = vld [vmem:[#allocation5 + $0x110] sm:$0xff]
    %v1333 = vld [vmem:[#allocation5 + $0x118] sm:$0xff]
    %v1334 = vld [vmem:[#allocation5 + $0x120] sm:$0xff]
    %v1335 = vld [vmem:[#allocation5 + $0x128] sm:$0xff]
    %v1336 = vld [vmem:[#allocation5 + $0x130] sm:$0xff]
    %v1337 = vld [vmem:[#allocation5 + $0x138] sm:$0xff]
    %v1338 = vld [vmem:[#allocation5 + $0x140] sm:$0xff]
    %v1339 = vld [vmem:[#allocation5 + $0x148] sm:$0xff]
    %v1340 = vld [vmem:[#allocation5 + $0x150] sm:$0xff]
    %v1341 = vld [vmem:[#allocation5 + $0x158] sm:$0xff]
    %v1342 = vld [vmem:[#allocation5 + $0x160] sm:$0xff]
    %v1343 = vld [vmem:[#allocation5 + $0x168] sm:$0xff]
    %v1344 = vld [vmem:[#allocation5 + $0x170] sm:$0xff]
    %v1345 = vld [vmem:[#allocation5 + $0x178] sm:$0xff]
    %1346 = vmatpush.msra.mxu0 %v1343
    %1347 = vmatpush.msra.mxu0 %v1340
    %1348 = vmatpush.msra.mxu0 %v1337
    %1349 = vmatpush.msra.mxu0 %v1334
    %1350 = vmatpush.msra.mxu0 %v1331
    %1351 = vmatpush.msra.mxu0 %v1328
    %1352 = vmatpush.msra.mxu0 %v1325
    %1353 = vmatpush.msra.mxu0 %v1322
    %1354 = vmatpush.msra.mxu0 %v1319
    %1355 = vmatpush.msra.mxu0 %v1316
    %1356 = vmatpush.msra.mxu0 %v1313
    %1357 = vmatpush.msra.mxu0 %v1310
    %1358 = vmatpush.msra.mxu0 %v1307
    %1359 = vmatpush.msra.mxu0 %v1304
    %1360 = vmatpush.msra.mxu0 %v1301
    %1361 = vmatpush.msra.mxu0 %v1298
    %1362 = vmatmul.f32.gmra.mxu0 %v1293
    %v1363 = vpop.f32.mrf.mxu0
    %v1364 = vadd.f32 0.0, %v1363
    %1365 = vdwg.mxu0
    %1366 = vmatpush.msra.mxu0 %v1344
    %1367 = vmatpush.msra.mxu0 %v1341
    %1368 = vmatpush.msra.mxu0 %v1338
    %1369 = vmatpush.msra.mxu0 %v1335
    %1370 = vmatpush.msra.mxu0 %v1332
    %1371 = vmatpush.msra.mxu0 %v1329
    %1372 = vmatpush.msra.mxu0 %v1326
    %1373 = vmatpush.msra.mxu0 %v1323
    %1374 = vmatpush.msra.mxu0 %v1320
    %1375 = vmatpush.msra.mxu0 %v1317
    %1376 = vmatpush.msra.mxu0 %v1314
    %1377 = vmatpush.msra.mxu0 %v1311
    %1378 = vmatpush.msra.mxu0 %v1308
    %1379 = vmatpush.msra.mxu0 %v1305
    %1380 = vmatpush.msra.mxu0 %v1302
    %1381 = vmatpush.msra.mxu0 %v1299
    %1382 = vmatmul.f32.gmra.mxu0 %v1293
    %v1383 = vpop.f32.mrf.mxu0
    %v1384 = vadd.f32 0.0, %v1383
    %1385 = vdwg.mxu0
    %1386 = vmatpush.msra.mxu0 %v1345
    %1387 = vmatpush.msra.mxu0 %v1342
    %1388 = vmatpush.msra.mxu0 %v1339
    %1389 = vmatpush.msra.mxu0 %v1336
    %1390 = vmatpush.msra.mxu0 %v1333
    %1391 = vmatpush.msra.mxu0 %v1330
    %1392 = vmatpush.msra.mxu0 %v1327
    %1393 = vmatpush.msra.mxu0 %v1324
    %1394 = vmatpush.msra.mxu0 %v1321
    %1395 = vmatpush.msra.mxu0 %v1318
    %1396 = vmatpush.msra.mxu0 %v1315
    %1397 = vmatpush.msra.mxu0 %v1312
    %1398 = vmatpush.msra.mxu0 %v1309
    %1399 = vmatpush.msra.mxu0 %v1306
    %1400 = vmatpush.msra.mxu0 %v1303
    %1401 = vmatpush.msra.mxu0 %v1300
    %1402 = vmatmul.f32.gmra.mxu0 %v1293
    %v1403 = vpop.f32.mrf.mxu0
    %v1404 = vadd.f32 0.0, %v1403
    %1405 = vdwg.mxu0
    %v1406 = vadd.f32 %v1295, %v1364
    %v1407 = vxor.u32 %v1406, 2147483648
    %v1408 = vmul.f32 %v1407, 1.442695
    %v1409 = vpow.pop %v1408
    %v1410 = vadd.f32 %v1409, 1.0
    %v1411 = vrcp.pop %v1410
    %v1412 = vmul.f32 %v1410, %v1411
    %v1413 = vsub.f32 1.0, %v1412
    %v1414 = vmul.f32 %v1411, %v1413
    %v1415 = vadd.f32 %v1411, %v1414
    %vm1416 = vweird.f32 %v1410
    %vm1417 = vweird.f32 %v1411
    %vm1418 = vmor %vm1416, %vm1417
    %v1419 = vsel %vm1418, %v1411, %v1415
    %v1420 = vand.u32 2147483647, %v1410
    %vm1421 = vcmp.eq.f32.partialorder %v1420, 8.507059e+37
    %v1422 = vand.u32 %v1410, 2147483648
    %v1423 = vor.u32 1.1754944e-38, %v1422
    %v1424 = vsel %vm1421, %v1423, %v1419
    %v1425 = vmul.f32 1.0, %v1424
    %v1426 = vadd.f32 %v1296, %v1384
    %v1427 = vxor.u32 %v1426, 2147483648
    %v1428 = vmul.f32 %v1427, 1.442695
    %v1429 = vpow.pop %v1428
    %v1430 = vadd.f32 %v1429, 1.0
    %v1431 = vrcp.pop %v1430
    %v1432 = vmul.f32 %v1430, %v1431
    %v1433 = vsub.f32 1.0, %v1432
    %v1434 = vmul.f32 %v1431, %v1433
    %v1435 = vadd.f32 %v1431, %v1434
    %vm1436 = vweird.f32 %v1430
    %vm1437 = vweird.f32 %v1431
    %vm1438 = vmor %vm1436, %vm1437
    %v1439 = vsel %vm1438, %v1431, %v1435
    %v1440 = vand.u32 2147483647, %v1430
    %vm1441 = vcmp.eq.f32.partialorder %v1440, 8.507059e+37
    %v1442 = vand.u32 %v1430, 2147483648
    %v1443 = vor.u32 1.1754944e-38, %v1442
    %v1444 = vsel %vm1441, %v1443, %v1439
    %v1445 = vmul.f32 1.0, %v1444
    %v1446 = vld [vmem:[%s4] sm:$0x1]
    %v1448 = vperm.slane %v1446, 0
    %v1450 = vadd.f32 %v1404, %v1448
    %v1451 = vmul.f32 %v1425, %v1450
    %v1452 = vadd.f32 %v1297, %v1451
    %v1453 = vtanh.pop %v1452
    %v1454 = vsub.f32 1.0, %v1445
    %v1455 = vmul.f32 %v1454, %v1453
    %v1456 = vmul.f32 %v1445, %v1293
    %v1457 = vadd.f32 %v1455, %v1456
    %1458 = vst [vmem:[#allocation3 + $0x30] sm:$0xff] %v1457
    %v1459 = vld [vmem:[#allocation2 + $0xa8] sm:$0xff]
    %v1460 = vld [vmem:[#allocation2 + $0xb0] sm:$0xff]
    %v1461 = vld [vmem:[#allocation2 + $0xb8] sm:$0xff]
    %v1462 = vld [vmem:[#allocation5] sm:$0xff]
    %v1463 = vld [vmem:[#allocation5 + $0x8] sm:$0xff]
    %v1464 = vld [vmem:[#allocation5 + $0x10] sm:$0xff]
    %v1465 = vld [vmem:[#allocation5 + $0x18] sm:$0xff]
    %v1466 = vld [vmem:[#allocation5 + $0x20] sm:$0xff]
    %v1467 = vld [vmem:[#allocation5 + $0x28] sm:$0xff]
    %v1468 = vld [vmem:[#allocation5 + $0x30] sm:$0xff]
    %v1469 = vld [vmem:[#allocation5 + $0x38] sm:$0xff]
    %v1470 = vld [vmem:[#allocation5 + $0x40] sm:$0xff]
    %v1471 = vld [vmem:[#allocation5 + $0x48] sm:$0xff]
    %v1472 = vld [vmem:[#allocation5 + $0x50] sm:$0xff]
    %v1473 = vld [vmem:[#allocation5 + $0x58] sm:$0xff]
    %v1474 = vld [vmem:[#allocation5 + $0x60] sm:$0xff]
    %v1475 = vld [vmem:[#allocation5 + $0x68] sm:$0xff]
    %v1476 = vld [vmem:[#allocation5 + $0x70] sm:$0xff]
    %v1477 = vld [vmem:[#allocation5 + $0x78] sm:$0xff]
    %v1478 = vld [vmem:[#allocation5 + $0x80] sm:$0xff]
    %v1479 = vld [vmem:[#allocation5 + $0x88] sm:$0xff]
    %v1480 = vld [vmem:[#allocation5 + $0x90] sm:$0xff]
    %v1481 = vld [vmem:[#allocation5 + $0x98] sm:$0xff]
    %v1482 = vld [vmem:[#allocation5 + $0xa0] sm:$0xff]
    %v1483 = vld [vmem:[#allocation5 + $0xa8] sm:$0xff]
    %v1484 = vld [vmem:[#allocation5 + $0xb0] sm:$0xff]
    %v1485 = vld [vmem:[#allocation5 + $0xb8] sm:$0xff]
    %v1486 = vld [vmem:[#allocation5 + $0xc0] sm:$0xff]
    %v1487 = vld [vmem:[#allocation5 + $0xc8] sm:$0xff]
    %v1488 = vld [vmem:[#allocation5 + $0xd0] sm:$0xff]
    %v1489 = vld [vmem:[#allocation5 + $0xd8] sm:$0xff]
    %v1490 = vld [vmem:[#allocation5 + $0xe0] sm:$0xff]
    %v1491 = vld [vmem:[#allocation5 + $0xe8] sm:$0xff]
    %v1492 = vld [vmem:[#allocation5 + $0xf0] sm:$0xff]
    %v1493 = vld [vmem:[#allocation5 + $0xf8] sm:$0xff]
    %v1494 = vld [vmem:[#allocation5 + $0x100] sm:$0xff]
    %v1495 = vld [vmem:[#allocation5 + $0x108] sm:$0xff]
    %v1496 = vld [vmem:[#allocation5 + $0x110] sm:$0xff]
    %v1497 = vld [vmem:[#allocation5 + $0x118] sm:$0xff]
    %v1498 = vld [vmem:[#allocation5 + $0x120] sm:$0xff]
    %v1499 = vld [vmem:[#allocation5 + $0x128] sm:$0xff]
    %v1500 = vld [vmem:[#allocation5 + $0x130] sm:$0xff]
    %v1501 = vld [vmem:[#allocation5 + $0x138] sm:$0xff]
    %v1502 = vld [vmem:[#allocation5 + $0x140] sm:$0xff]
    %v1503 = vld [vmem:[#allocation5 + $0x148] sm:$0xff]
    %v1504 = vld [vmem:[#allocation5 + $0x150] sm:$0xff]
    %v1505 = vld [vmem:[#allocation5 + $0x158] sm:$0xff]
    %v1506 = vld [vmem:[#allocation5 + $0x160] sm:$0xff]
    %v1507 = vld [vmem:[#allocation5 + $0x168] sm:$0xff]
    %v1508 = vld [vmem:[#allocation5 + $0x170] sm:$0xff]
    %v1509 = vld [vmem:[#allocation5 + $0x178] sm:$0xff]
    %1510 = vmatpush.msra.mxu0 %v1507
    %1511 = vmatpush.msra.mxu0 %v1504
    %1512 = vmatpush.msra.mxu0 %v1501
    %1513 = vmatpush.msra.mxu0 %v1498
    %1514 = vmatpush.msra.mxu0 %v1495
    %1515 = vmatpush.msra.mxu0 %v1492
    %1516 = vmatpush.msra.mxu0 %v1489
    %1517 = vmatpush.msra.mxu0 %v1486
    %1518 = vmatpush.msra.mxu0 %v1483
    %1519 = vmatpush.msra.mxu0 %v1480
    %1520 = vmatpush.msra.mxu0 %v1477
    %1521 = vmatpush.msra.mxu0 %v1474
    %1522 = vmatpush.msra.mxu0 %v1471
    %1523 = vmatpush.msra.mxu0 %v1468
    %1524 = vmatpush.msra.mxu0 %v1465
    %1525 = vmatpush.msra.mxu0 %v1462
    %1526 = vmatmul.f32.gmra.mxu0 %v1457
    %v1527 = vpop.f32.mrf.mxu0
    %v1528 = vadd.f32 0.0, %v1527
    %1529 = vdwg.mxu0
    %1530 = vmatpush.msra.mxu0 %v1508
    %1531 = vmatpush.msra.mxu0 %v1505
    %1532 = vmatpush.msra.mxu0 %v1502
    %1533 = vmatpush.msra.mxu0 %v1499
    %1534 = vmatpush.msra.mxu0 %v1496
    %1535 = vmatpush.msra.mxu0 %v1493
    %1536 = vmatpush.msra.mxu0 %v1490
    %1537 = vmatpush.msra.mxu0 %v1487
    %1538 = vmatpush.msra.mxu0 %v1484
    %1539 = vmatpush.msra.mxu0 %v1481
    %1540 = vmatpush.msra.mxu0 %v1478
    %1541 = vmatpush.msra.mxu0 %v1475
    %1542 = vmatpush.msra.mxu0 %v1472
    %1543 = vmatpush.msra.mxu0 %v1469
    %1544 = vmatpush.msra.mxu0 %v1466
    %1545 = vmatpush.msra.mxu0 %v1463
    %1546 = vmatmul.f32.gmra.mxu0 %v1457
    %v1547 = vpop.f32.mrf.mxu0
    %v1548 = vadd.f32 0.0, %v1547
    %1549 = vdwg.mxu0
    %1550 = vmatpush.msra.mxu0 %v1509
    %1551 = vmatpush.msra.mxu0 %v1506
    %1552 = vmatpush.msra.mxu0 %v1503
    %1553 = vmatpush.msra.mxu0 %v1500
    %1554 = vmatpush.msra.mxu0 %v1497
    %1555 = vmatpush.msra.mxu0 %v1494
    %1556 = vmatpush.msra.mxu0 %v1491
    %1557 = vmatpush.msra.mxu0 %v1488
    %1558 = vmatpush.msra.mxu0 %v1485
    %1559 = vmatpush.msra.mxu0 %v1482
    %1560 = vmatpush.msra.mxu0 %v1479
    %1561 = vmatpush.msra.mxu0 %v1476
    %1562 = vmatpush.msra.mxu0 %v1473
    %1563 = vmatpush.msra.mxu0 %v1470
    %1564 = vmatpush.msra.mxu0 %v1467
    %1565 = vmatpush.msra.mxu0 %v1464
    %1566 = vmatmul.f32.gmra.mxu0 %v1457
    %v1567 = vpop.f32.mrf.mxu0
    %v1568 = vadd.f32 0.0, %v1567
    %1569 = vdwg.mxu0
    %v1570 = vadd.f32 %v1459, %v1528
    %v1571 = vxor.u32 %v1570, 2147483648
    %v1572 = vmul.f32 %v1571, 1.442695
    %v1573 = vpow.pop %v1572
    %v1574 = vadd.f32 %v1573, 1.0
    %v1575 = vrcp.pop %v1574
    %v1576 = vmul.f32 %v1574, %v1575
    %v1577 = vsub.f32 1.0, %v1576
    %v1578 = vmul.f32 %v1575, %v1577
    %v1579 = vadd.f32 %v1575, %v1578
    %vm1580 = vweird.f32 %v1574
    %vm1581 = vweird.f32 %v1575
    %vm1582 = vmor %vm1580, %vm1581
    %v1583 = vsel %vm1582, %v1575, %v1579
    %v1584 = vand.u32 2147483647, %v1574
    %vm1585 = vcmp.eq.f32.partialorder %v1584, 8.507059e+37
    %v1586 = vand.u32 %v1574, 2147483648
    %v1587 = vor.u32 1.1754944e-38, %v1586
    %v1588 = vsel %vm1585, %v1587, %v1583
    %v1589 = vmul.f32 1.0, %v1588
    %v1590 = vadd.f32 %v1460, %v1548
    %v1591 = vxor.u32 %v1590, 2147483648
    %v1592 = vmul.f32 %v1591, 1.442695
    %v1593 = vpow.pop %v1592
    %v1594 = vadd.f32 %v1593, 1.0
    %v1595 = vrcp.pop %v1594
    %v1596 = vmul.f32 %v1594, %v1595
    %v1597 = vsub.f32 1.0, %v1596
    %v1598 = vmul.f32 %v1595, %v1597
    %v1599 = vadd.f32 %v1595, %v1598
    %vm1600 = vweird.f32 %v1594
    %vm1601 = vweird.f32 %v1595
    %vm1602 = vmor %vm1600, %vm1601
    %v1603 = vsel %vm1602, %v1595, %v1599
    %v1604 = vand.u32 2147483647, %v1594
    %vm1605 = vcmp.eq.f32.partialorder %v1604, 8.507059e+37
    %v1606 = vand.u32 %v1594, 2147483648
    %v1607 = vor.u32 1.1754944e-38, %v1606
    %v1608 = vsel %vm1605, %v1607, %v1603
    %v1609 = vmul.f32 1.0, %v1608
    %v1610 = vld [vmem:[%s4] sm:$0x1]
    %v1612 = vperm.slane %v1610, 0
    %v1614 = vadd.f32 %v1568, %v1612
    %v1615 = vmul.f32 %v1589, %v1614
    %v1616 = vadd.f32 %v1461, %v1615
    %v1617 = vtanh.pop %v1616
    %v1618 = vsub.f32 1.0, %v1609
    %v1619 = vmul.f32 %v1618, %v1617
    %v1620 = vmul.f32 %v1609, %v1457
    %v1621 = vadd.f32 %v1619, %v1620
    %1622 = vst [vmem:[#allocation3 + $0x38] sm:$0xff] %v1621
    %v1623 = vld [vmem:[#allocation3] sm:$0xff]
    %v1624 = vld [vmem:[#allocation3 + $0x8] sm:$0xff]
    %v1625 = vld [vmem:[#allocation3 + $0x10] sm:$0xff]
    %v1626 = vld [vmem:[#allocation3 + $0x18] sm:$0xff]
    %v1627 = vld [vmem:[#allocation3 + $0x20] sm:$0xff]
    %v1628 = vld [vmem:[#allocation3 + $0x28] sm:$0xff]
    %v1629 = vld [vmem:[#allocation3 + $0x30] sm:$0xff]
    %v1630 = vld [vmem:[#allocation3 + $0x38] sm:$0xff]
    %v1631 = vld [vmem:[#allocation7] sm:$0xff]
    %v1632 = vld [vmem:[#allocation7 + $0x8] sm:$0xff]
    %v1633 = vld [vmem:[#allocation7 + $0x10] sm:$0xff]
    %v1634 = vld [vmem:[#allocation7 + $0x18] sm:$0xff]
    %v1635 = vld [vmem:[#allocation7 + $0x20] sm:$0xff]
    %v1636 = vld [vmem:[#allocation7 + $0x28] sm:$0xff]
    %v1637 = vld [vmem:[#allocation7 + $0x30] sm:$0xff]
    %v1638 = vld [vmem:[#allocation7 + $0x38] sm:$0xff]
    %v1639 = vld [vmem:[#allocation7 + $0x40] sm:$0xff]
    %v1640 = vld [vmem:[#allocation7 + $0x48] sm:$0xff]
    %v1641 = vld [vmem:[#allocation7 + $0x50] sm:$0xff]
    %v1642 = vld [vmem:[#allocation7 + $0x58] sm:$0xff]
    %v1643 = vld [vmem:[#allocation7 + $0x60] sm:$0xff]
    %v1644 = vld [vmem:[#allocation7 + $0x68] sm:$0xff]
    %v1645 = vld [vmem:[#allocation7 + $0x70] sm:$0xff]
    %v1646 = vld [vmem:[#allocation7 + $0x78] sm:$0xff]
    %v1647 = vld [vmem:[#allocation7 + $0x80] sm:$0xff]
    %v1648 = vld [vmem:[#allocation7 + $0x88] sm:$0xff]
    %v1649 = vld [vmem:[#allocation7 + $0x90] sm:$0xff]
    %v1650 = vld [vmem:[#allocation7 + $0x98] sm:$0xff]
    %v1651 = vld [vmem:[#allocation7 + $0xa0] sm:$0xff]
    %v1652 = vld [vmem:[#allocation7 + $0xa8] sm:$0xff]
    %v1653 = vld [vmem:[#allocation7 + $0xb0] sm:$0xff]
    %v1654 = vld [vmem:[#allocation7 + $0xb8] sm:$0xff]
    %v1655 = vld [vmem:[#allocation7 + $0xc0] sm:$0xff]
    %v1656 = vld [vmem:[#allocation7 + $0xc8] sm:$0xff]
    %v1657 = vld [vmem:[#allocation7 + $0xd0] sm:$0xff]
    %v1658 = vld [vmem:[#allocation7 + $0xd8] sm:$0xff]
    %v1659 = vld [vmem:[#allocation7 + $0xe0] sm:$0xff]
    %v1660 = vld [vmem:[#allocation7 + $0xe8] sm:$0xff]
    %v1661 = vld [vmem:[#allocation7 + $0xf0] sm:$0xff]
    %v1662 = vld [vmem:[#allocation7 + $0xf8] sm:$0xff]
    %v1663 = vld [vmem:[#allocation7 + $0x100] sm:$0xff]
    %v1664 = vld [vmem:[#allocation7 + $0x108] sm:$0xff]
    %v1665 = vld [vmem:[#allocation7 + $0x110] sm:$0xff]
    %v1666 = vld [vmem:[#allocation7 + $0x118] sm:$0xff]
    %v1667 = vld [vmem:[#allocation7 + $0x120] sm:$0xff]
    %v1668 = vld [vmem:[#allocation7 + $0x128] sm:$0xff]
    %v1669 = vld [vmem:[#allocation7 + $0x130] sm:$0xff]
    %v1670 = vld [vmem:[#allocation7 + $0x138] sm:$0xff]
    %v1671 = vld [vmem:[#allocation7 + $0x140] sm:$0xff]
    %v1672 = vld [vmem:[#allocation7 + $0x148] sm:$0xff]
    %v1673 = vld [vmem:[#allocation7 + $0x150] sm:$0xff]
    %v1674 = vld [vmem:[#allocation7 + $0x158] sm:$0xff]
    %v1675 = vld [vmem:[#allocation7 + $0x160] sm:$0xff]
    %v1676 = vld [vmem:[#allocation7 + $0x168] sm:$0xff]
    %v1677 = vld [vmem:[#allocation7 + $0x170] sm:$0xff]
    %v1678 = vld [vmem:[#allocation7 + $0x178] sm:$0xff]
    %v1679 = vld [vmem:[%s7] sm:$0x7]
    %v1681 = vperm.slane %v1679, 0
    %v1682 = vperm.slane %v1679, 1
    %v1683 = vperm.slane %v1679, 2
    %1687 = vmatpush.msra.mxu0 %v1676
    %1688 = vmatpush.msra.mxu0 %v1673
    %1689 = vmatpush.msra.mxu0 %v1670
    %1690 = vmatpush.msra.mxu0 %v1667
    %1691 = vmatpush.msra.mxu0 %v1664
    %1692 = vmatpush.msra.mxu0 %v1661
    %1693 = vmatpush.msra.mxu0 %v1658
    %1694 = vmatpush.msra.mxu0 %v1655
    %1695 = vmatpush.msra.mxu0 %v1652
    %1696 = vmatpush.msra.mxu0 %v1649
    %1697 = vmatpush.msra.mxu0 %v1646
    %1698 = vmatpush.msra.mxu0 %v1643
    %1699 = vmatpush.msra.mxu0 %v1640
    %1700 = vmatpush.msra.mxu0 %v1637
    %1701 = vmatpush.msra.mxu0 %v1634
    %1702 = vmatpush.msra.mxu0 %v1631
    %1703 = vmatmul.f32.gmra.mxu0 %v1623
    %v1704 = vpop.f32.mrf.mxu0
    %v1705 = vadd.f32 %v1681, %v1704
    %1706 = vmatmul.f32.gmra.mxu0 %v1624
    %v1707 = vpop.f32.mrf.mxu0
    %v1708 = vadd.f32 %v1681, %v1707
    %1709 = vmatmul.f32.gmra.mxu0 %v1625
    %v1710 = vpop.f32.mrf.mxu0
    %v1711 = vadd.f32 %v1681, %v1710
    %1712 = vmatmul.f32.gmra.mxu0 %v1626
    %v1713 = vpop.f32.mrf.mxu0
    %v1714 = vadd.f32 %v1681, %v1713
    %1715 = vmatmul.f32.gmra.mxu0 %v1627
    %v1716 = vpop.f32.mrf.mxu0
    %v1717 = vadd.f32 %v1681, %v1716
    %1718 = vmatmul.f32.gmra.mxu0 %v1628
    %v1719 = vpop.f32.mrf.mxu0
    %v1720 = vadd.f32 %v1681, %v1719
    %1721 = vmatmul.f32.gmra.mxu0 %v1629
    %v1722 = vpop.f32.mrf.mxu0
    %v1723 = vadd.f32 %v1681, %v1722
    %1724 = vmatmul.f32.gmra.mxu0 %v1630
    %v1725 = vpop.f32.mrf.mxu0
    %v1726 = vadd.f32 %v1681, %v1725
    %1727 = vdwg.mxu0
    %1728 = vmatpush.msra.mxu0 %v1677
    %1729 = vmatpush.msra.mxu0 %v1674
    %1730 = vmatpush.msra.mxu0 %v1671
    %1731 = vmatpush.msra.mxu0 %v1668
    %1732 = vmatpush.msra.mxu0 %v1665
    %1733 = vmatpush.msra.mxu0 %v1662
    %1734 = vmatpush.msra.mxu0 %v1659
    %1735 = vmatpush.msra.mxu0 %v1656
    %1736 = vmatpush.msra.mxu0 %v1653
    %1737 = vmatpush.msra.mxu0 %v1650
    %1738 = vmatpush.msra.mxu0 %v1647
    %1739 = vmatpush.msra.mxu0 %v1644
    %1740 = vmatpush.msra.mxu0 %v1641
    %1741 = vmatpush.msra.mxu0 %v1638
    %1742 = vmatpush.msra.mxu0 %v1635
    %1743 = vmatpush.msra.mxu0 %v1632
    %1744 = vmatmul.f32.gmra.mxu0 %v1623
    %v1745 = vpop.f32.mrf.mxu0
    %v1746 = vadd.f32 %v1682, %v1745
    %1747 = vmatmul.f32.gmra.mxu0 %v1624
    %v1748 = vpop.f32.mrf.mxu0
    %v1749 = vadd.f32 %v1682, %v1748
    %1750 = vmatmul.f32.gmra.mxu0 %v1625
    %v1751 = vpop.f32.mrf.mxu0
    %v1752 = vadd.f32 %v1682, %v1751
    %1753 = vmatmul.f32.gmra.mxu0 %v1626
    %v1754 = vpop.f32.mrf.mxu0
    %v1755 = vadd.f32 %v1682, %v1754
    %1756 = vmatmul.f32.gmra.mxu0 %v1627
    %v1757 = vpop.f32.mrf.mxu0
    %v1758 = vadd.f32 %v1682, %v1757
    %1759 = vmatmul.f32.gmra.mxu0 %v1628
    %v1760 = vpop.f32.mrf.mxu0
    %v1761 = vadd.f32 %v1682, %v1760
    %1762 = vmatmul.f32.gmra.mxu0 %v1629
    %v1763 = vpop.f32.mrf.mxu0
    %v1764 = vadd.f32 %v1682, %v1763
    %1765 = vmatmul.f32.gmra.mxu0 %v1630
    %v1766 = vpop.f32.mrf.mxu0
    %v1767 = vadd.f32 %v1682, %v1766
    %1768 = vdwg.mxu0
    %1769 = vmatpush.msra.mxu0 %v1678
    %1770 = vmatpush.msra.mxu0 %v1675
    %1771 = vmatpush.msra.mxu0 %v1672
    %1772 = vmatpush.msra.mxu0 %v1669
    %1773 = vmatpush.msra.mxu0 %v1666
    %1774 = vmatpush.msra.mxu0 %v1663
    %1775 = vmatpush.msra.mxu0 %v1660
    %1776 = vmatpush.msra.mxu0 %v1657
    %1777 = vmatpush.msra.mxu0 %v1654
    %1778 = vmatpush.msra.mxu0 %v1651
    %1779 = vmatpush.msra.mxu0 %v1648
    %1780 = vmatpush.msra.mxu0 %v1645
    %1781 = vmatpush.msra.mxu0 %v1642
    %1782 = vmatpush.msra.mxu0 %v1639
    %1783 = vmatpush.msra.mxu0 %v1636
    %1784 = vmatpush.msra.mxu0 %v1633
    %1785 = vmatmul.f32.gmra.mxu0 %v1623
    %v1786 = vpop.f32.mrf.mxu0
    %v1787 = vadd.f32 %v1683, %v1786
    %1788 = vmatmul.f32.gmra.mxu0 %v1624
    %v1789 = vpop.f32.mrf.mxu0
    %v1790 = vadd.f32 %v1683, %v1789
    %1791 = vmatmul.f32.gmra.mxu0 %v1625
    %v1792 = vpop.f32.mrf.mxu0
    %v1793 = vadd.f32 %v1683, %v1792
    %1794 = vmatmul.f32.gmra.mxu0 %v1626
    %v1795 = vpop.f32.mrf.mxu0
    %v1796 = vadd.f32 %v1683, %v1795
    %1797 = vmatmul.f32.gmra.mxu0 %v1627
    %v1798 = vpop.f32.mrf.mxu0
    %v1799 = vadd.f32 %v1683, %v1798
    %1800 = vmatmul.f32.gmra.mxu0 %v1628
    %v1801 = vpop.f32.mrf.mxu0
    %v1802 = vadd.f32 %v1683, %v1801
    %1803 = vmatmul.f32.gmra.mxu0 %v1629
    %v1804 = vpop.f32.mrf.mxu0
    %v1805 = vadd.f32 %v1683, %v1804
    %1806 = vmatmul.f32.gmra.mxu0 %v1630
    %v1807 = vpop.f32.mrf.mxu0
    %v1808 = vadd.f32 %v1683, %v1807
    %1809 = vdwg.mxu0
    %1810 = vst [vmem:[#allocation4] sm:$0xff] %v1705
    %1811 = vst [vmem:[#allocation4 + $0x8] sm:$0xff] %v1746
    %1812 = vst [vmem:[#allocation4 + $0x10] sm:$0xff] %v1787
    %1813 = vst [vmem:[#allocation4 + $0x18] sm:$0xff] %v1708
    %1814 = vst [vmem:[#allocation4 + $0x20] sm:$0xff] %v1749
    %1815 = vst [vmem:[#allocation4 + $0x28] sm:$0xff] %v1790
    %1816 = vst [vmem:[#allocation4 + $0x30] sm:$0xff] %v1711
    %1817 = vst [vmem:[#allocation4 + $0x38] sm:$0xff] %v1752
    %1818 = vst [vmem:[#allocation4 + $0x40] sm:$0xff] %v1793
    %1819 = vst [vmem:[#allocation4 + $0x48] sm:$0xff] %v1714
    %1820 = vst [vmem:[#allocation4 + $0x50] sm:$0xff] %v1755
    %1821 = vst [vmem:[#allocation4 + $0x58] sm:$0xff] %v1796
    %1822 = vst [vmem:[#allocation4 + $0x60] sm:$0xff] %v1717
    %1823 = vst [vmem:[#allocation4 + $0x68] sm:$0xff] %v1758
    %1824 = vst [vmem:[#allocation4 + $0x70] sm:$0xff] %v1799
    %1825 = vst [vmem:[#allocation4 + $0x78] sm:$0xff] %v1720
    %1826 = vst [vmem:[#allocation4 + $0x80] sm:$0xff] %v1761
    %1827 = vst [vmem:[#allocation4 + $0x88] sm:$0xff] %v1802
    %1828 = vst [vmem:[#allocation4 + $0x90] sm:$0xff] %v1723
    %1829 = vst [vmem:[#allocation4 + $0x98] sm:$0xff] %v1764
    %1830 = vst [vmem:[#allocation4 + $0xa0] sm:$0xff] %v1805
    %1831 = vst [vmem:[#allocation4 + $0xa8] sm:$0xff] %v1726
    %1832 = vst [vmem:[#allocation4 + $0xb0] sm:$0xff] %v1767
    %1833 = vst [vmem:[#allocation4 + $0xb8] sm:$0xff] %v1808
    %v1834 = vld [vmem:[#allocation4] sm:$0xff]
    %v1835 = vld [vmem:[#allocation4 + $0x8] sm:$0xff]
    %v1836 = vld [vmem:[#allocation4 + $0x10] sm:$0xff]
    %v1837 = vld [vmem:[#allocation9] sm:$0xff]
    %v1838 = vld [vmem:[#allocation9 + $0x8] sm:$0xff]
    %v1839 = vld [vmem:[#allocation9 + $0x10] sm:$0xff]
    %v1840 = vld [vmem:[#allocation9 + $0x18] sm:$0xff]
    %v1841 = vld [vmem:[#allocation9 + $0x20] sm:$0xff]
    %v1842 = vld [vmem:[#allocation9 + $0x28] sm:$0xff]
    %v1843 = vld [vmem:[#allocation9 + $0x30] sm:$0xff]
    %v1844 = vld [vmem:[#allocation9 + $0x38] sm:$0xff]
    %v1845 = vld [vmem:[#allocation9 + $0x40] sm:$0xff]
    %v1846 = vld [vmem:[#allocation9 + $0x48] sm:$0xff]
    %v1847 = vld [vmem:[#allocation9 + $0x50] sm:$0xff]
    %v1848 = vld [vmem:[#allocation9 + $0x58] sm:$0xff]
    %v1849 = vld [vmem:[#allocation9 + $0x60] sm:$0xff]
    %v1850 = vld [vmem:[#allocation9 + $0x68] sm:$0xff]
    %v1851 = vld [vmem:[#allocation9 + $0x70] sm:$0xff]
    %v1852 = vld [vmem:[#allocation9 + $0x78] sm:$0xff]
    %v1853 = vld [vmem:[#allocation9 + $0x80] sm:$0xff]
    %v1854 = vld [vmem:[#allocation9 + $0x88] sm:$0xff]
    %v1855 = vld [vmem:[#allocation9 + $0x90] sm:$0xff]
    %v1856 = vld [vmem:[#allocation9 + $0x98] sm:$0xff]
    %v1857 = vld [vmem:[#allocation9 + $0xa0] sm:$0xff]
    %v1858 = vld [vmem:[#allocation9 + $0xa8] sm:$0xff]
    %v1859 = vld [vmem:[#allocation9 + $0xb0] sm:$0xff]
    %v1860 = vld [vmem:[#allocation9 + $0xb8] sm:$0xff]
    %v1861 = vld [vmem:[#allocation9 + $0xc0] sm:$0xff]
    %v1862 = vld [vmem:[#allocation9 + $0xc8] sm:$0xff]
    %v1863 = vld [vmem:[#allocation9 + $0xd0] sm:$0xff]
    %v1864 = vld [vmem:[#allocation9 + $0xd8] sm:$0xff]
    %v1865 = vld [vmem:[#allocation9 + $0xe0] sm:$0xff]
    %v1866 = vld [vmem:[#allocation9 + $0xe8] sm:$0xff]
    %v1867 = vld [vmem:[#allocation9 + $0xf0] sm:$0xff]
    %v1868 = vld [vmem:[#allocation9 + $0xf8] sm:$0xff]
    %v1869 = vld [vmem:[#allocation9 + $0x100] sm:$0xff]
    %v1870 = vld [vmem:[#allocation9 + $0x108] sm:$0xff]
    %v1871 = vld [vmem:[#allocation9 + $0x110] sm:$0xff]
    %v1872 = vld [vmem:[#allocation9 + $0x118] sm:$0xff]
    %v1873 = vld [vmem:[#allocation9 + $0x120] sm:$0xff]
    %v1874 = vld [vmem:[#allocation9 + $0x128] sm:$0xff]
    %v1875 = vld [vmem:[#allocation9 + $0x130] sm:$0xff]
    %v1876 = vld [vmem:[#allocation9 + $0x138] sm:$0xff]
    %v1877 = vld [vmem:[#allocation9 + $0x140] sm:$0xff]
    %v1878 = vld [vmem:[#allocation9 + $0x148] sm:$0xff]
    %v1879 = vld [vmem:[#allocation9 + $0x150] sm:$0xff]
    %v1880 = vld [vmem:[#allocation9 + $0x158] sm:$0xff]
    %v1881 = vld [vmem:[#allocation9 + $0x160] sm:$0xff]
    %v1882 = vld [vmem:[#allocation9 + $0x168] sm:$0xff]
    %v1883 = vld [vmem:[#allocation9 + $0x170] sm:$0xff]
    %v1884 = vld [vmem:[#allocation9 + $0x178] sm:$0xff]
    %1885 = vmatpush.msra.mxu0 %v1882
    %1886 = vmatpush.msra.mxu0 %v1879
    %1887 = vmatpush.msra.mxu0 %v1876
    %1888 = vmatpush.msra.mxu0 %v1873
    %1889 = vmatpush.msra.mxu0 %v1870
    %1890 = vmatpush.msra.mxu0 %v1867
    %1891 = vmatpush.msra.mxu0 %v1864
    %1892 = vmatpush.msra.mxu0 %v1861
    %1893 = vmatpush.msra.mxu0 %v1858
    %1894 = vmatpush.msra.mxu0 %v1855
    %1895 = vmatpush.msra.mxu0 %v1852
    %1896 = vmatpush.msra.mxu0 %v1849
    %1897 = vmatpush.msra.mxu0 %v1846
    %1898 = vmatpush.msra.mxu0 %v1843
    %1899 = vmatpush.msra.mxu0 %v1840
    %1900 = vmatpush.msra.mxu0 %v1837
    %1901 = vmatmul.f32.gmra.mxu0 0.0
    %v1902 = vpop.f32.mrf.mxu0
    %v1903 = vadd.f32 0.0, %v1902
    %1904 = vdwg.mxu0
    %1905 = vmatpush.msra.mxu0 %v1883
    %1906 = vmatpush.msra.mxu0 %v1880
    %1907 = vmatpush.msra.mxu0 %v1877
    %1908 = vmatpush.msra.mxu0 %v1874
    %1909 = vmatpush.msra.mxu0 %v1871
    %1910 = vmatpush.msra.mxu0 %v1868
    %1911 = vmatpush.msra.mxu0 %v1865
    %1912 = vmatpush.msra.mxu0 %v1862
    %1913 = vmatpush.msra.mxu0 %v1859
    %1914 = vmatpush.msra.mxu0 %v1856
    %1915 = vmatpush.msra.mxu0 %v1853
    %1916 = vmatpush.msra.mxu0 %v1850
    %1917 = vmatpush.msra.mxu0 %v1847
    %1918 = vmatpush.msra.mxu0 %v1844
    %1919 = vmatpush.msra.mxu0 %v1841
    %1920 = vmatpush.msra.mxu0 %v1838
    %1921 = vmatmul.f32.gmra.mxu0 0.0
    %v1922 = vpop.f32.mrf.mxu0
    %v1923 = vadd.f32 0.0, %v1922
    %1924 = vdwg.mxu0
    %1925 = vmatpush.msra.mxu0 %v1884
    %1926 = vmatpush.msra.mxu0 %v1881
    %1927 = vmatpush.msra.mxu0 %v1878
    %1928 = vmatpush.msra.mxu0 %v1875
    %1929 = vmatpush.msra.mxu0 %v1872
    %1930 = vmatpush.msra.mxu0 %v1869
    %1931 = vmatpush.msra.mxu0 %v1866
    %1932 = vmatpush.msra.mxu0 %v1863
    %1933 = vmatpush.msra.mxu0 %v1860
    %1934 = vmatpush.msra.mxu0 %v1857
    %1935 = vmatpush.msra.mxu0 %v1854
    %1936 = vmatpush.msra.mxu0 %v1851
    %1937 = vmatpush.msra.mxu0 %v1848
    %1938 = vmatpush.msra.mxu0 %v1845
    %1939 = vmatpush.msra.mxu0 %v1842
    %1940 = vmatpush.msra.mxu0 %v1839
    %1941 = vmatmul.f32.gmra.mxu0 0.0
    %v1942 = vpop.f32.mrf.mxu0
    %v1943 = vadd.f32 0.0, %v1942
    %1944 = vdwg.mxu0
    %v1945 = vadd.f32 %v1834, %v1903
    %v1946 = vxor.u32 %v1945, 2147483648
    %v1947 = vmul.f32 %v1946, 1.442695
    %v1948 = vpow.pop %v1947
    %v1949 = vadd.f32 %v1948, 1.0
    %v1950 = vrcp.pop %v1949
    %v1951 = vmul.f32 %v1949, %v1950
    %v1952 = vsub.f32 1.0, %v1951
    %v1953 = vmul.f32 %v1950, %v1952
    %v1954 = vadd.f32 %v1950, %v1953
    %vm1955 = vweird.f32 %v1949
    %vm1956 = vweird.f32 %v1950
    %vm1957 = vmor %vm1955, %vm1956
    %v1958 = vsel %vm1957, %v1950, %v1954
    %v1959 = vand.u32 2147483647, %v1949
    %vm1960 = vcmp.eq.f32.partialorder %v1959, 8.507059e+37
    %v1961 = vand.u32 %v1949, 2147483648
    %v1962 = vor.u32 1.1754944e-38, %v1961
    %v1963 = vsel %vm1960, %v1962, %v1958
    %v1964 = vmul.f32 1.0, %v1963
    %v1965 = vadd.f32 %v1835, %v1923
    %v1966 = vxor.u32 %v1965, 2147483648
    %v1967 = vmul.f32 %v1966, 1.442695
    %v1968 = vpow.pop %v1967
    %v1969 = vadd.f32 %v1968, 1.0
    %v1970 = vrcp.pop %v1969
    %v1971 = vmul.f32 %v1969, %v1970
    %v1972 = vsub.f32 1.0, %v1971
    %v1973 = vmul.f32 %v1970, %v1972
    %v1974 = vadd.f32 %v1970, %v1973
    %vm1975 = vweird.f32 %v1969
    %vm1976 = vweird.f32 %v1970
    %vm1977 = vmor %vm1975, %vm1976
    %v1978 = vsel %vm1977, %v1970, %v1974
    %v1979 = vand.u32 2147483647, %v1969
    %vm1980 = vcmp.eq.f32.partialorder %v1979, 8.507059e+37
    %v1981 = vand.u32 %v1969, 2147483648
    %v1982 = vor.u32 1.1754944e-38, %v1981
    %v1983 = vsel %vm1980, %v1982, %v1978
    %v1984 = vmul.f32 1.0, %v1983
    %v1985 = vld [vmem:[%s8] sm:$0x1]
    %v1987 = vperm.slane %v1985, 0
    %v1989 = vadd.f32 %v1943, %v1987
    %v1990 = vmul.f32 %v1964, %v1989
    %v1991 = vadd.f32 %v1836, %v1990
    %v1992 = vtanh.pop %v1991
    %v1993 = vsub.f32 1.0, %v1984
    %v1994 = vmul.f32 %v1993, %v1992
    %v1995 = vmul.f32 %v1984, 0.0
    %v1996 = vadd.f32 %v1994, %v1995
    %v1997 = vld [vmem:[#allocation10] sm:$0xff]
    %v1998 = vld [vmem:[#allocation10 + $0x8] sm:$0xff]
    %v1999 = vld [vmem:[#allocation10 + $0x10] sm:$0xff]
    %v2000 = vld [vmem:[#allocation10 + $0x18] sm:$0xff]
    %v2001 = vld [vmem:[#allocation10 + $0x20] sm:$0xff]
    %v2002 = vld [vmem:[#allocation10 + $0x28] sm:$0xff]
    %v2003 = vld [vmem:[#allocation10 + $0x30] sm:$0xff]
    %v2004 = vld [vmem:[#allocation10 + $0x38] sm:$0xff]
    %v2005 = vld [vmem:[#allocation10 + $0x40] sm:$0xff]
    %v2006 = vld [vmem:[#allocation10 + $0x48] sm:$0xff]
    %v2007 = vld [vmem:[#allocation10 + $0x50] sm:$0xff]
    %v2008 = vld [vmem:[#allocation10 + $0x58] sm:$0xff]
    %v2009 = vld [vmem:[#allocation10 + $0x60] sm:$0xff]
    %v2010 = vld [vmem:[#allocation10 + $0x68] sm:$0xff]
    %v2011 = vld [vmem:[#allocation10 + $0x70] sm:$0xff]
    %v2012 = vld [vmem:[#allocation10 + $0x78] sm:$0xff]
    %v2013 = vld [vmem:[#allocation4 + $0x18] sm:$0xff]
    %v2014 = vld [vmem:[#allocation4 + $0x20] sm:$0xff]
    %v2015 = vld [vmem:[#allocation4 + $0x28] sm:$0xff]
    %2016 = vmatpush.msra.mxu0 %v1882
    %2017 = vmatpush.msra.mxu0 %v1879
    %2018 = vmatpush.msra.mxu0 %v1876
    %2019 = vmatpush.msra.mxu0 %v1873
    %2020 = vmatpush.msra.mxu0 %v1870
    %2021 = vmatpush.msra.mxu0 %v1867
    %2022 = vmatpush.msra.mxu0 %v1864
    %2023 = vmatpush.msra.mxu0 %v1861
    %2024 = vmatpush.msra.mxu0 %v1858
    %2025 = vmatpush.msra.mxu0 %v1855
    %2026 = vmatpush.msra.mxu0 %v1852
    %2027 = vmatpush.msra.mxu0 %v1849
    %2028 = vmatpush.msra.mxu0 %v1846
    %2029 = vmatpush.msra.mxu0 %v1843
    %2030 = vmatpush.msra.mxu0 %v1840
    %2031 = vmatpush.msra.mxu0 %v1837
    %2032 = vmatmul.f32.gmra.mxu0 %v1996
    %v2033 = vpop.f32.mrf.mxu0
    %v2034 = vadd.f32 0.0, %v2033
    %2035 = vdwg.mxu0
    %2036 = vmatpush.msra.mxu0 %v1883
    %2037 = vmatpush.msra.mxu0 %v1880
    %2038 = vmatpush.msra.mxu0 %v1877
    %2039 = vmatpush.msra.mxu0 %v1874
    %2040 = vmatpush.msra.mxu0 %v1871
    %2041 = vmatpush.msra.mxu0 %v1868
    %2042 = vmatpush.msra.mxu0 %v1865
    %2043 = vmatpush.msra.mxu0 %v1862
    %2044 = vmatpush.msra.mxu0 %v1859
    %2045 = vmatpush.msra.mxu0 %v1856
    %2046 = vmatpush.msra.mxu0 %v1853
    %2047 = vmatpush.msra.mxu0 %v1850
    %2048 = vmatpush.msra.mxu0 %v1847
    %2049 = vmatpush.msra.mxu0 %v1844
    %2050 = vmatpush.msra.mxu0 %v1841
    %2051 = vmatpush.msra.mxu0 %v1838
    %2052 = vmatmul.f32.gmra.mxu0 %v1996
    %v2053 = vpop.f32.mrf.mxu0
    %v2054 = vadd.f32 0.0, %v2053
    %2055 = vdwg.mxu0
    %2056 = vmatpush.msra.mxu0 %v1884
    %2057 = vmatpush.msra.mxu0 %v1881
    %2058 = vmatpush.msra.mxu0 %v1878
    %2059 = vmatpush.msra.mxu0 %v1875
    %2060 = vmatpush.msra.mxu0 %v1872
    %2061 = vmatpush.msra.mxu0 %v1869
    %2062 = vmatpush.msra.mxu0 %v1866
    %2063 = vmatpush.msra.mxu0 %v1863
    %2064 = vmatpush.msra.mxu0 %v1860
    %2065 = vmatpush.msra.mxu0 %v1857
    %2066 = vmatpush.msra.mxu0 %v1854
    %2067 = vmatpush.msra.mxu0 %v1851
    %2068 = vmatpush.msra.mxu0 %v1848
    %2069 = vmatpush.msra.mxu0 %v1845
    %2070 = vmatpush.msra.mxu0 %v1842
    %2071 = vmatpush.msra.mxu0 %v1839
    %2072 = vmatmul.f32.gmra.mxu0 %v1996
    %v2073 = vpop.f32.mrf.mxu0
    %v2074 = vadd.f32 0.0, %v2073
    %2075 = vdwg.mxu0
    %v2076 = vadd.f32 %v2013, %v2034
    %v2077 = vxor.u32 %v2076, 2147483648
    %v2078 = vmul.f32 %v2077, 1.442695
    %v2079 = vpow.pop %v2078
    %v2080 = vadd.f32 %v2079, 1.0
    %v2081 = vrcp.pop %v2080
    %v2082 = vmul.f32 %v2080, %v2081
    %v2083 = vsub.f32 1.0, %v2082
    %v2084 = vmul.f32 %v2081, %v2083
    %v2085 = vadd.f32 %v2081, %v2084
    %vm2086 = vweird.f32 %v2080
    %vm2087 = vweird.f32 %v2081
    %vm2088 = vmor %vm2086, %vm2087
    %v2089 = vsel %vm2088, %v2081, %v2085
    %v2090 = vand.u32 2147483647, %v2080
    %vm2091 = vcmp.eq.f32.partialorder %v2090, 8.507059e+37
    %v2092 = vand.u32 %v2080, 2147483648
    %v2093 = vor.u32 1.1754944e-38, %v2092
    %v2094 = vsel %vm2091, %v2093, %v2089
    %v2095 = vmul.f32 1.0, %v2094
    %v2096 = vadd.f32 %v2014, %v2054
    %v2097 = vxor.u32 %v2096, 2147483648
    %v2098 = vmul.f32 %v2097, 1.442695
    %v2099 = vpow.pop %v2098
    %v2100 = vadd.f32 %v2099, 1.0
    %v2101 = vrcp.pop %v2100
    %v2102 = vmul.f32 %v2100, %v2101
    %v2103 = vsub.f32 1.0, %v2102
    %v2104 = vmul.f32 %v2101, %v2103
    %v2105 = vadd.f32 %v2101, %v2104
    %vm2106 = vweird.f32 %v2100
    %vm2107 = vweird.f32 %v2101
    %vm2108 = vmor %vm2106, %vm2107
    %v2109 = vsel %vm2108, %v2101, %v2105
    %v2110 = vand.u32 2147483647, %v2100
    %vm2111 = vcmp.eq.f32.partialorder %v2110, 8.507059e+37
    %v2112 = vand.u32 %v2100, 2147483648
    %v2113 = vor.u32 1.1754944e-38, %v2112
    %v2114 = vsel %vm2111, %v2113, %v2109
    %v2115 = vmul.f32 1.0, %v2114
    %v2116 = vadd.f32 %v2074, %v1987
    %v2117 = vmul.f32 %v2095, %v2116
    %v2118 = vadd.f32 %v2015, %v2117
    %v2119 = vtanh.pop %v2118
    %v2120 = vsub.f32 1.0, %v2115
    %v2121 = vmul.f32 %v2120, %v2119
    %v2122 = vmul.f32 %v2115, %v1996
    %v2123 = vadd.f32 %v2121, %v2122
    %s2124 = scalar_lea.vmem [#allocation10], 128
    %v2125 = vld [vmem:[%s2124] sm:$0xff]
    %v2126 = vld [vmem:[%s2124 + $0x8] sm:$0xff]
    %v2127 = vld [vmem:[%s2124 + $0x10] sm:$0xff]
    %v2128 = vld [vmem:[%s2124 + $0x18] sm:$0xff]
    %v2129 = vld [vmem:[%s2124 + $0x20] sm:$0xff]
    %v2130 = vld [vmem:[%s2124 + $0x28] sm:$0xff]
    %v2131 = vld [vmem:[%s2124 + $0x30] sm:$0xff]
    %v2132 = vld [vmem:[%s2124 + $0x38] sm:$0xff]
    %v2133 = vld [vmem:[%s2124 + $0x40] sm:$0xff]
    %v2134 = vld [vmem:[%s2124 + $0x48] sm:$0xff]
    %v2135 = vld [vmem:[%s2124 + $0x50] sm:$0xff]
    %v2136 = vld [vmem:[%s2124 + $0x58] sm:$0xff]
    %v2137 = vld [vmem:[%s2124 + $0x60] sm:$0xff]
    %v2138 = vld [vmem:[%s2124 + $0x68] sm:$0xff]
    %v2139 = vld [vmem:[%s2124 + $0x70] sm:$0xff]
    %v2140 = vld [vmem:[%s2124 + $0x78] sm:$0xff]
    %2141 = vmatpush.msra.mxu0 %v2140
    %2142 = vmatpush.msra.mxu0 %v2139
    %2143 = vmatpush.msra.mxu0 %v2138
    %2144 = vmatpush.msra.mxu0 %v2137
    %2145 = vmatpush.msra.mxu0 %v2136
    %2146 = vmatpush.msra.mxu0 %v2135
    %2147 = vmatpush.msra.mxu0 %v2134
    %2148 = vmatpush.msra.mxu0 %v2133
    %2149 = vmatpush.msra.mxu0 %v2132
    %2150 = vmatpush.msra.mxu0 %v2131
    %2151 = vmatpush.msra.mxu0 %v2130
    %2152 = vmatpush.msra.mxu0 %v2129
    %2153 = vmatpush.msra.mxu0 %v2128
    %2154 = vmatpush.msra.mxu0 %v2127
    %2155 = vmatpush.msra.mxu0 %v2126
    %2156 = vmatpush.msra.mxu0 %v2125
    %2157 = vmatmul.f32.gmra.mxu0 %v2123
    %v2158 = vpop.f32.mrf.mxu0
    %v2159 = vadd.f32 0.0, %v2158
    %2160 = vdwg.mxu0
    %2161 = vmatpush.msra.mxu0 %v2012
    %2162 = vmatpush.msra.mxu0 %v2011
    %2163 = vmatpush.msra.mxu0 %v2010
    %2164 = vmatpush.msra.mxu0 %v2009
    %2165 = vmatpush.msra.mxu0 %v2008
    %2166 = vmatpush.msra.mxu0 %v2007
    %2167 = vmatpush.msra.mxu0 %v2006
    %2168 = vmatpush.msra.mxu0 %v2005
    %2169 = vmatpush.msra.mxu0 %v2004
    %2170 = vmatpush.msra.mxu0 %v2003
    %2171 = vmatpush.msra.mxu0 %v2002
    %2172 = vmatpush.msra.mxu0 %v2001
    %2173 = vmatpush.msra.mxu0 %v2000
    %2174 = vmatpush.msra.mxu0 %v1999
    %2175 = vmatpush.msra.mxu0 %v1998
    %2176 = vmatpush.msra.mxu0 %v1997
    %2177 = vmatmul.f32.gmra.mxu0 %v1996
    %v2178 = vpop.f32.mrf.mxu0
    %v2179 = vadd.f32 %v2159, %v2178
    %2180 = vdwg.mxu0
    %v2181 = vld [vmem:[#allocation4 + $0x30] sm:$0xff]
    %v2182 = vld [vmem:[#allocation4 + $0x38] sm:$0xff]
    %v2183 = vld [vmem:[#allocation4 + $0x40] sm:$0xff]
    %2184 = vmatpush.msra.mxu0 %v1882
    %2185 = vmatpush.msra.mxu0 %v1879
    %2186 = vmatpush.msra.mxu0 %v1876
    %2187 = vmatpush.msra.mxu0 %v1873
    %2188 = vmatpush.msra.mxu0 %v1870
    %2189 = vmatpush.msra.mxu0 %v1867
    %2190 = vmatpush.msra.mxu0 %v1864
    %2191 = vmatpush.msra.mxu0 %v1861
    %2192 = vmatpush.msra.mxu0 %v1858
    %2193 = vmatpush.msra.mxu0 %v1855
    %2194 = vmatpush.msra.mxu0 %v1852
    %2195 = vmatpush.msra.mxu0 %v1849
    %2196 = vmatpush.msra.mxu0 %v1846
    %2197 = vmatpush.msra.mxu0 %v1843
    %2198 = vmatpush.msra.mxu0 %v1840
    %2199 = vmatpush.msra.mxu0 %v1837
    %2200 = vmatmul.f32.gmra.mxu0 %v2123
    %v2201 = vpop.f32.mrf.mxu0
    %v2202 = vadd.f32 0.0, %v2201
    %2203 = vdwg.mxu0
    %2204 = vmatpush.msra.mxu0 %v1883
    %2205 = vmatpush.msra.mxu0 %v1880
    %2206 = vmatpush.msra.mxu0 %v1877
    %2207 = vmatpush.msra.mxu0 %v1874
    %2208 = vmatpush.msra.mxu0 %v1871
    %2209 = vmatpush.msra.mxu0 %v1868
    %2210 = vmatpush.msra.mxu0 %v1865
    %2211 = vmatpush.msra.mxu0 %v1862
    %2212 = vmatpush.msra.mxu0 %v1859
    %2213 = vmatpush.msra.mxu0 %v1856
    %2214 = vmatpush.msra.mxu0 %v1853
    %2215 = vmatpush.msra.mxu0 %v1850
    %2216 = vmatpush.msra.mxu0 %v1847
    %2217 = vmatpush.msra.mxu0 %v1844
    %2218 = vmatpush.msra.mxu0 %v1841
    %2219 = vmatpush.msra.mxu0 %v1838
    %2220 = vmatmul.f32.gmra.mxu0 %v2123
    %v2221 = vpop.f32.mrf.mxu0
    %v2222 = vadd.f32 0.0, %v2221
    %2223 = vdwg.mxu0
    %2224 = vmatpush.msra.mxu0 %v1884
    %2225 = vmatpush.msra.mxu0 %v1881
    %2226 = vmatpush.msra.mxu0 %v1878
    %2227 = vmatpush.msra.mxu0 %v1875
    %2228 = vmatpush.msra.mxu0 %v1872
    %2229 = vmatpush.msra.mxu0 %v1869
    %2230 = vmatpush.msra.mxu0 %v1866
    %2231 = vmatpush.msra.mxu0 %v1863
    %2232 = vmatpush.msra.mxu0 %v1860
    %2233 = vmatpush.msra.mxu0 %v1857
    %2234 = vmatpush.msra.mxu0 %v1854
    %2235 = vmatpush.msra.mxu0 %v1851
    %2236 = vmatpush.msra.mxu0 %v1848
    %2237 = vmatpush.msra.mxu0 %v1845
    %2238 = vmatpush.msra.mxu0 %v1842
    %2239 = vmatpush.msra.mxu0 %v1839
    %2240 = vmatmul.f32.gmra.mxu0 %v2123
    %v2241 = vpop.f32.mrf.mxu0
    %v2242 = vadd.f32 0.0, %v2241
    %2243 = vdwg.mxu0
    %v2244 = vadd.f32 %v2181, %v2202
    %v2245 = vxor.u32 %v2244, 2147483648
    %v2246 = vmul.f32 %v2245, 1.442695
    %v2247 = vpow.pop %v2246
    %v2248 = vadd.f32 %v2247, 1.0
    %v2249 = vrcp.pop %v2248
    %v2250 = vmul.f32 %v2248, %v2249
    %v2251 = vsub.f32 1.0, %v2250
    %v2252 = vmul.f32 %v2249, %v2251
    %v2253 = vadd.f32 %v2249, %v2252
    %vm2254 = vweird.f32 %v2248
    %vm2255 = vweird.f32 %v2249
    %vm2256 = vmor %vm2254, %vm2255
    %v2257 = vsel %vm2256, %v2249, %v2253
    %v2258 = vand.u32 2147483647, %v2248
    %vm2259 = vcmp.eq.f32.partialorder %v2258, 8.507059e+37
    %v2260 = vand.u32 %v2248, 2147483648
    %v2261 = vor.u32 1.1754944e-38, %v2260
    %v2262 = vsel %vm2259, %v2261, %v2257
    %v2263 = vmul.f32 1.0, %v2262
    %v2264 = vadd.f32 %v2182, %v2222
    %v2265 = vxor.u32 %v2264, 2147483648
    %v2266 = vmul.f32 %v2265, 1.442695
    %v2267 = vpow.pop %v2266
    %v2268 = vadd.f32 %v2267, 1.0
    %v2269 = vrcp.pop %v2268
    %v2270 = vmul.f32 %v2268, %v2269
    %v2271 = vsub.f32 1.0, %v2270
    %v2272 = vmul.f32 %v2269, %v2271
    %v2273 = vadd.f32 %v2269, %v2272
    %vm2274 = vweird.f32 %v2268
    %vm2275 = vweird.f32 %v2269
    %vm2276 = vmor %vm2274, %vm2275
    %v2277 = vsel %vm2276, %v2269, %v2273
    %v2278 = vand.u32 2147483647, %v2268
    %vm2279 = vcmp.eq.f32.partialorder %v2278, 8.507059e+37
    %v2280 = vand.u32 %v2268, 2147483648
    %v2281 = vor.u32 1.1754944e-38, %v2280
    %v2282 = vsel %vm2279, %v2281, %v2277
    %v2283 = vmul.f32 1.0, %v2282
    %v2284 = vadd.f32 %v2242, %v1987
    %v2285 = vmul.f32 %v2263, %v2284
    %v2286 = vadd.f32 %v2183, %v2285
    %v2287 = vtanh.pop %v2286
    %v2288 = vsub.f32 1.0, %v2283
    %v2289 = vmul.f32 %v2288, %v2287
    %v2290 = vmul.f32 %v2283, %v2123
    %v2291 = vadd.f32 %v2289, %v2290
    %s2292 = scalar_lea.vmem [#allocation10], 256
    %v2293 = vld [vmem:[%s2292] sm:$0xff]
    %v2294 = vld [vmem:[%s2292 + $0x8] sm:$0xff]
    %v2295 = vld [vmem:[%s2292 + $0x10] sm:$0xff]
    %v2296 = vld [vmem:[%s2292 + $0x18] sm:$0xff]
    %v2297 = vld [vmem:[%s2292 + $0x20] sm:$0xff]
    %v2298 = vld [vmem:[%s2292 + $0x28] sm:$0xff]
    %v2299 = vld [vmem:[%s2292 + $0x30] sm:$0xff]
    %v2300 = vld [vmem:[%s2292 + $0x38] sm:$0xff]
    %v2301 = vld [vmem:[%s2292 + $0x40] sm:$0xff]
    %v2302 = vld [vmem:[%s2292 + $0x48] sm:$0xff]
    %v2303 = vld [vmem:[%s2292 + $0x50] sm:$0xff]
    %v2304 = vld [vmem:[%s2292 + $0x58] sm:$0xff]
    %v2305 = vld [vmem:[%s2292 + $0x60] sm:$0xff]
    %v2306 = vld [vmem:[%s2292 + $0x68] sm:$0xff]
    %v2307 = vld [vmem:[%s2292 + $0x70] sm:$0xff]
    %v2308 = vld [vmem:[%s2292 + $0x78] sm:$0xff]
    %2309 = vmatpush.msra.mxu0 %v2308
    %2310 = vmatpush.msra.mxu0 %v2307
    %2311 = vmatpush.msra.mxu0 %v2306
    %2312 = vmatpush.msra.mxu0 %v2305
    %2313 = vmatpush.msra.mxu0 %v2304
    %2314 = vmatpush.msra.mxu0 %v2303
    %2315 = vmatpush.msra.mxu0 %v2302
    %2316 = vmatpush.msra.mxu0 %v2301
    %2317 = vmatpush.msra.mxu0 %v2300
    %2318 = vmatpush.msra.mxu0 %v2299
    %2319 = vmatpush.msra.mxu0 %v2298
    %2320 = vmatpush.msra.mxu0 %v2297
    %2321 = vmatpush.msra.mxu0 %v2296
    %2322 = vmatpush.msra.mxu0 %v2295
    %2323 = vmatpush.msra.mxu0 %v2294
    %2324 = vmatpush.msra.mxu0 %v2293
    %2325 = vmatmul.f32.gmra.mxu0 %v2291
    %v2326 = vpop.f32.mrf.mxu0
    %v2327 = vadd.f32 0.0, %v2326
    %2328 = vdwg.mxu0
    %v2329 = vadd.f32 %v2179, %v2327
    %v2330 = vld [vmem:[#allocation4 + $0x48] sm:$0xff]
    %v2331 = vld [vmem:[#allocation4 + $0x50] sm:$0xff]
    %v2332 = vld [vmem:[#allocation4 + $0x58] sm:$0xff]
    %2333 = vmatpush.msra.mxu0 %v1882
    %2334 = vmatpush.msra.mxu0 %v1879
    %2335 = vmatpush.msra.mxu0 %v1876
    %2336 = vmatpush.msra.mxu0 %v1873
    %2337 = vmatpush.msra.mxu0 %v1870
    %2338 = vmatpush.msra.mxu0 %v1867
    %2339 = vmatpush.msra.mxu0 %v1864
    %2340 = vmatpush.msra.mxu0 %v1861
    %2341 = vmatpush.msra.mxu0 %v1858
    %2342 = vmatpush.msra.mxu0 %v1855
    %2343 = vmatpush.msra.mxu0 %v1852
    %2344 = vmatpush.msra.mxu0 %v1849
    %2345 = vmatpush.msra.mxu0 %v1846
    %2346 = vmatpush.msra.mxu0 %v1843
    %2347 = vmatpush.msra.mxu0 %v1840
    %2348 = vmatpush.msra.mxu0 %v1837
    %2349 = vmatmul.f32.gmra.mxu0 %v2291
    %v2350 = vpop.f32.mrf.mxu0
    %v2351 = vadd.f32 0.0, %v2350
    %2352 = vdwg.mxu0
    %2353 = vmatpush.msra.mxu0 %v1883
    %2354 = vmatpush.msra.mxu0 %v1880
    %2355 = vmatpush.msra.mxu0 %v1877
    %2356 = vmatpush.msra.mxu0 %v1874
    %2357 = vmatpush.msra.mxu0 %v1871
    %2358 = vmatpush.msra.mxu0 %v1868
    %2359 = vmatpush.msra.mxu0 %v1865
    %2360 = vmatpush.msra.mxu0 %v1862
    %2361 = vmatpush.msra.mxu0 %v1859
    %2362 = vmatpush.msra.mxu0 %v1856
    %2363 = vmatpush.msra.mxu0 %v1853
    %2364 = vmatpush.msra.mxu0 %v1850
    %2365 = vmatpush.msra.mxu0 %v1847
    %2366 = vmatpush.msra.mxu0 %v1844
    %2367 = vmatpush.msra.mxu0 %v1841
    %2368 = vmatpush.msra.mxu0 %v1838
    %2369 = vmatmul.f32.gmra.mxu0 %v2291
    %v2370 = vpop.f32.mrf.mxu0
    %v2371 = vadd.f32 0.0, %v2370
    %2372 = vdwg.mxu0
    %2373 = vmatpush.msra.mxu0 %v1884
    %2374 = vmatpush.msra.mxu0 %v1881
    %2375 = vmatpush.msra.mxu0 %v1878
    %2376 = vmatpush.msra.mxu0 %v1875
    %2377 = vmatpush.msra.mxu0 %v1872
    %2378 = vmatpush.msra.mxu0 %v1869
    %2379 = vmatpush.msra.mxu0 %v1866
    %2380 = vmatpush.msra.mxu0 %v1863
    %2381 = vmatpush.msra.mxu0 %v1860
    %2382 = vmatpush.msra.mxu0 %v1857
    %2383 = vmatpush.msra.mxu0 %v1854
    %2384 = vmatpush.msra.mxu0 %v1851
    %2385 = vmatpush.msra.mxu0 %v1848
    %2386 = vmatpush.msra.mxu0 %v1845
    %2387 = vmatpush.msra.mxu0 %v1842
    %2388 = vmatpush.msra.mxu0 %v1839
    %2389 = vmatmul.f32.gmra.mxu0 %v2291
    %v2390 = vpop.f32.mrf.mxu0
    %v2391 = vadd.f32 0.0, %v2390
    %2392 = vdwg.mxu0
    %v2393 = vadd.f32 %v2330, %v2351
    %v2394 = vxor.u32 %v2393, 2147483648
    %v2395 = vmul.f32 %v2394, 1.442695
    %v2396 = vpow.pop %v2395
    %v2397 = vadd.f32 %v2396, 1.0
    %v2398 = vrcp.pop %v2397
    %v2399 = vmul.f32 %v2397, %v2398
    %v2400 = vsub.f32 1.0, %v2399
    %v2401 = vmul.f32 %v2398, %v2400
    %v2402 = vadd.f32 %v2398, %v2401
    %vm2403 = vweird.f32 %v2397
    %vm2404 = vweird.f32 %v2398
    %vm2405 = vmor %vm2403, %vm2404
    %v2406 = vsel %vm2405, %v2398, %v2402
    %v2407 = vand.u32 2147483647, %v2397
    %vm2408 = vcmp.eq.f32.partialorder %v2407, 8.507059e+37
    %v2409 = vand.u32 %v2397, 2147483648
    %v2410 = vor.u32 1.1754944e-38, %v2409
    %v2411 = vsel %vm2408, %v2410, %v2406
    %v2412 = vmul.f32 1.0, %v2411
    %v2413 = vadd.f32 %v2331, %v2371
    %v2414 = vxor.u32 %v2413, 2147483648
    %v2415 = vmul.f32 %v2414, 1.442695
    %v2416 = vpow.pop %v2415
    %v2417 = vadd.f32 %v2416, 1.0
    %v2418 = vrcp.pop %v2417
    %v2419 = vmul.f32 %v2417, %v2418
    %v2420 = vsub.f32 1.0, %v2419
    %v2421 = vmul.f32 %v2418, %v2420
    %v2422 = vadd.f32 %v2418, %v2421
    %vm2423 = vweird.f32 %v2417
    %vm2424 = vweird.f32 %v2418
    %vm2425 = vmor %vm2423, %vm2424
    %v2426 = vsel %vm2425, %v2418, %v2422
    %v2427 = vand.u32 2147483647, %v2417
    %vm2428 = vcmp.eq.f32.partialorder %v2427, 8.507059e+37
    %v2429 = vand.u32 %v2417, 2147483648
    %v2430 = vor.u32 1.1754944e-38, %v2429
    %v2431 = vsel %vm2428, %v2430, %v2426
    %v2432 = vmul.f32 1.0, %v2431
    %v2433 = vadd.f32 %v2391, %v1987
    %v2434 = vmul.f32 %v2412, %v2433
    %v2435 = vadd.f32 %v2332, %v2434
    %v2436 = vtanh.pop %v2435
    %v2437 = vsub.f32 1.0, %v2432
    %v2438 = vmul.f32 %v2437, %v2436
    %v2439 = vmul.f32 %v2432, %v2291
    %v2440 = vadd.f32 %v2438, %v2439
    %s2441 = scalar_lea.vmem [#allocation10], 384
    %v2442 = vld [vmem:[%s2441] sm:$0xff]
    %v2443 = vld [vmem:[%s2441 + $0x8] sm:$0xff]
    %v2444 = vld [vmem:[%s2441 + $0x10] sm:$0xff]
    %v2445 = vld [vmem:[%s2441 + $0x18] sm:$0xff]
    %v2446 = vld [vmem:[%s2441 + $0x20] sm:$0xff]
    %v2447 = vld [vmem:[%s2441 + $0x28] sm:$0xff]
    %v2448 = vld [vmem:[%s2441 + $0x30] sm:$0xff]
    %v2449 = vld [vmem:[%s2441 + $0x38] sm:$0xff]
    %v2450 = vld [vmem:[%s2441 + $0x40] sm:$0xff]
    %v2451 = vld [vmem:[%s2441 + $0x48] sm:$0xff]
    %v2452 = vld [vmem:[%s2441 + $0x50] sm:$0xff]
    %v2453 = vld [vmem:[%s2441 + $0x58] sm:$0xff]
    %v2454 = vld [vmem:[%s2441 + $0x60] sm:$0xff]
    %v2455 = vld [vmem:[%s2441 + $0x68] sm:$0xff]
    %v2456 = vld [vmem:[%s2441 + $0x70] sm:$0xff]
    %v2457 = vld [vmem:[%s2441 + $0x78] sm:$0xff]
    %2458 = vmatpush.msra.mxu0 %v2457
    %2459 = vmatpush.msra.mxu0 %v2456
    %2460 = vmatpush.msra.mxu0 %v2455
    %2461 = vmatpush.msra.mxu0 %v2454
    %2462 = vmatpush.msra.mxu0 %v2453
    %2463 = vmatpush.msra.mxu0 %v2452
    %2464 = vmatpush.msra.mxu0 %v2451
    %2465 = vmatpush.msra.mxu0 %v2450
    %2466 = vmatpush.msra.mxu0 %v2449
    %2467 = vmatpush.msra.mxu0 %v2448
    %2468 = vmatpush.msra.mxu0 %v2447
    %2469 = vmatpush.msra.mxu0 %v2446
    %2470 = vmatpush.msra.mxu0 %v2445
    %2471 = vmatpush.msra.mxu0 %v2444
    %2472 = vmatpush.msra.mxu0 %v2443
    %2473 = vmatpush.msra.mxu0 %v2442
    %2474 = vmatmul.f32.gmra.mxu0 %v2440
    %v2475 = vpop.f32.mrf.mxu0
    %v2476 = vadd.f32 0.0, %v2475
    %2477 = vdwg.mxu0
    %v2478 = vadd.f32 %v2329, %v2476
    %v2479 = vld [vmem:[#allocation4 + $0x60] sm:$0xff]
    %v2480 = vld [vmem:[#allocation4 + $0x68] sm:$0xff]
    %v2481 = vld [vmem:[#allocation4 + $0x70] sm:$0xff]
    %2482 = vmatpush.msra.mxu0 %v1882
    %2483 = vmatpush.msra.mxu0 %v1879
    %2484 = vmatpush.msra.mxu0 %v1876
    %2485 = vmatpush.msra.mxu0 %v1873
    %2486 = vmatpush.msra.mxu0 %v1870
    %2487 = vmatpush.msra.mxu0 %v1867
    %2488 = vmatpush.msra.mxu0 %v1864
    %2489 = vmatpush.msra.mxu0 %v1861
    %2490 = vmatpush.msra.mxu0 %v1858
    %2491 = vmatpush.msra.mxu0 %v1855
    %2492 = vmatpush.msra.mxu0 %v1852
    %2493 = vmatpush.msra.mxu0 %v1849
    %2494 = vmatpush.msra.mxu0 %v1846
    %2495 = vmatpush.msra.mxu0 %v1843
    %2496 = vmatpush.msra.mxu0 %v1840
    %2497 = vmatpush.msra.mxu0 %v1837
    %2498 = vmatmul.f32.gmra.mxu0 %v2440
    %v2499 = vpop.f32.mrf.mxu0
    %v2500 = vadd.f32 0.0, %v2499
    %2501 = vdwg.mxu0
    %2502 = vmatpush.msra.mxu0 %v1883
    %2503 = vmatpush.msra.mxu0 %v1880
    %2504 = vmatpush.msra.mxu0 %v1877
    %2505 = vmatpush.msra.mxu0 %v1874
    %2506 = vmatpush.msra.mxu0 %v1871
    %2507 = vmatpush.msra.mxu0 %v1868
    %2508 = vmatpush.msra.mxu0 %v1865
    %2509 = vmatpush.msra.mxu0 %v1862
    %2510 = vmatpush.msra.mxu0 %v1859
    %2511 = vmatpush.msra.mxu0 %v1856
    %2512 = vmatpush.msra.mxu0 %v1853
    %2513 = vmatpush.msra.mxu0 %v1850
    %2514 = vmatpush.msra.mxu0 %v1847
    %2515 = vmatpush.msra.mxu0 %v1844
    %2516 = vmatpush.msra.mxu0 %v1841
    %2517 = vmatpush.msra.mxu0 %v1838
    %2518 = vmatmul.f32.gmra.mxu0 %v2440
    %v2519 = vpop.f32.mrf.mxu0
    %v2520 = vadd.f32 0.0, %v2519
    %2521 = vdwg.mxu0
    %2522 = vmatpush.msra.mxu0 %v1884
    %2523 = vmatpush.msra.mxu0 %v1881
    %2524 = vmatpush.msra.mxu0 %v1878
    %2525 = vmatpush.msra.mxu0 %v1875
    %2526 = vmatpush.msra.mxu0 %v1872
    %2527 = vmatpush.msra.mxu0 %v1869
    %2528 = vmatpush.msra.mxu0 %v1866
    %2529 = vmatpush.msra.mxu0 %v1863
    %2530 = vmatpush.msra.mxu0 %v1860
    %2531 = vmatpush.msra.mxu0 %v1857
    %2532 = vmatpush.msra.mxu0 %v1854
    %2533 = vmatpush.msra.mxu0 %v1851
    %2534 = vmatpush.msra.mxu0 %v1848
    %2535 = vmatpush.msra.mxu0 %v1845
    %2536 = vmatpush.msra.mxu0 %v1842
    %2537 = vmatpush.msra.mxu0 %v1839
    %2538 = vmatmul.f32.gmra.mxu0 %v2440
    %v2539 = vpop.f32.mrf.mxu0
    %v2540 = vadd.f32 0.0, %v2539
    %2541 = vdwg.mxu0
    %v2542 = vadd.f32 %v2479, %v2500
    %v2543 = vxor.u32 %v2542, 2147483648
    %v2544 = vmul.f32 %v2543, 1.442695
    %v2545 = vpow.pop %v2544
    %v2546 = vadd.f32 %v2545, 1.0
    %v2547 = vrcp.pop %v2546
    %v2548 = vmul.f32 %v2546, %v2547
    %v2549 = vsub.f32 1.0, %v2548
    %v2550 = vmul.f32 %v2547, %v2549
    %v2551 = vadd.f32 %v2547, %v2550
    %vm2552 = vweird.f32 %v2546
    %vm2553 = vweird.f32 %v2547
    %vm2554 = vmor %vm2552, %vm2553
    %v2555 = vsel %vm2554, %v2547, %v2551
    %v2556 = vand.u32 2147483647, %v2546
    %vm2557 = vcmp.eq.f32.partialorder %v2556, 8.507059e+37
    %v2558 = vand.u32 %v2546, 2147483648
    %v2559 = vor.u32 1.1754944e-38, %v2558
    %v2560 = vsel %vm2557, %v2559, %v2555
    %v2561 = vmul.f32 1.0, %v2560
    %v2562 = vadd.f32 %v2480, %v2520
    %v2563 = vxor.u32 %v2562, 2147483648
    %v2564 = vmul.f32 %v2563, 1.442695
    %v2565 = vpow.pop %v2564
    %v2566 = vadd.f32 %v2565, 1.0
    %v2567 = vrcp.pop %v2566
    %v2568 = vmul.f32 %v2566, %v2567
    %v2569 = vsub.f32 1.0, %v2568
    %v2570 = vmul.f32 %v2567, %v2569
    %v2571 = vadd.f32 %v2567, %v2570
    %vm2572 = vweird.f32 %v2566
    %vm2573 = vweird.f32 %v2567
    %vm2574 = vmor %vm2572, %vm2573
    %v2575 = vsel %vm2574, %v2567, %v2571
    %v2576 = vand.u32 2147483647, %v2566
    %vm2577 = vcmp.eq.f32.partialorder %v2576, 8.507059e+37
    %v2578 = vand.u32 %v2566, 2147483648
    %v2579 = vor.u32 1.1754944e-38, %v2578
    %v2580 = vsel %vm2577, %v2579, %v2575
    %v2581 = vmul.f32 1.0, %v2580
    %v2582 = vadd.f32 %v2540, %v1987
    %v2583 = vmul.f32 %v2561, %v2582
    %v2584 = vadd.f32 %v2481, %v2583
    %v2585 = vtanh.pop %v2584
    %v2586 = vsub.f32 1.0, %v2581
    %v2587 = vmul.f32 %v2586, %v2585
    %v2588 = vmul.f32 %v2581, %v2440
    %v2589 = vadd.f32 %v2587, %v2588
    %s2590 = scalar_lea.vmem [#allocation10], 512
    %v2591 = vld [vmem:[%s2590] sm:$0xff]
    %v2592 = vld [vmem:[%s2590 + $0x8] sm:$0xff]
    %v2593 = vld [vmem:[%s2590 + $0x10] sm:$0xff]
    %v2594 = vld [vmem:[%s2590 + $0x18] sm:$0xff]
    %v2595 = vld [vmem:[%s2590 + $0x20] sm:$0xff]
    %v2596 = vld [vmem:[%s2590 + $0x28] sm:$0xff]
    %v2597 = vld [vmem:[%s2590 + $0x30] sm:$0xff]
    %v2598 = vld [vmem:[%s2590 + $0x38] sm:$0xff]
    %v2599 = vld [vmem:[%s2590 + $0x40] sm:$0xff]
    %v2600 = vld [vmem:[%s2590 + $0x48] sm:$0xff]
    %v2601 = vld [vmem:[%s2590 + $0x50] sm:$0xff]
    %v2602 = vld [vmem:[%s2590 + $0x58] sm:$0xff]
    %v2603 = vld [vmem:[%s2590 + $0x60] sm:$0xff]
    %v2604 = vld [vmem:[%s2590 + $0x68] sm:$0xff]
    %v2605 = vld [vmem:[%s2590 + $0x70] sm:$0xff]
    %v2606 = vld [vmem:[%s2590 + $0x78] sm:$0xff]
    %2607 = vmatpush.msra.mxu0 %v2606
    %2608 = vmatpush.msra.mxu0 %v2605
    %2609 = vmatpush.msra.mxu0 %v2604
    %2610 = vmatpush.msra.mxu0 %v2603
    %2611 = vmatpush.msra.mxu0 %v2602
    %2612 = vmatpush.msra.mxu0 %v2601
    %2613 = vmatpush.msra.mxu0 %v2600
    %2614 = vmatpush.msra.mxu0 %v2599
    %2615 = vmatpush.msra.mxu0 %v2598
    %2616 = vmatpush.msra.mxu0 %v2597
    %2617 = vmatpush.msra.mxu0 %v2596
    %2618 = vmatpush.msra.mxu0 %v2595
    %2619 = vmatpush.msra.mxu0 %v2594
    %2620 = vmatpush.msra.mxu0 %v2593
    %2621 = vmatpush.msra.mxu0 %v2592
    %2622 = vmatpush.msra.mxu0 %v2591
    %2623 = vmatmul.f32.gmra.mxu0 %v2589
    %v2624 = vpop.f32.mrf.mxu0
    %v2625 = vadd.f32 0.0, %v2624
    %2626 = vdwg.mxu0
    %v2627 = vadd.f32 %v2478, %v2625
    %v2628 = vld [vmem:[#allocation4 + $0x78] sm:$0xff]
    %v2629 = vld [vmem:[#allocation4 + $0x80] sm:$0xff]
    %v2630 = vld [vmem:[#allocation4 + $0x88] sm:$0xff]
    %2631 = vmatpush.msra.mxu0 %v1882
    %2632 = vmatpush.msra.mxu0 %v1879
    %2633 = vmatpush.msra.mxu0 %v1876
    %2634 = vmatpush.msra.mxu0 %v1873
    %2635 = vmatpush.msra.mxu0 %v1870
    %2636 = vmatpush.msra.mxu0 %v1867
    %2637 = vmatpush.msra.mxu0 %v1864
    %2638 = vmatpush.msra.mxu0 %v1861
    %2639 = vmatpush.msra.mxu0 %v1858
    %2640 = vmatpush.msra.mxu0 %v1855
    %2641 = vmatpush.msra.mxu0 %v1852
    %2642 = vmatpush.msra.mxu0 %v1849
    %2643 = vmatpush.msra.mxu0 %v1846
    %2644 = vmatpush.msra.mxu0 %v1843
    %2645 = vmatpush.msra.mxu0 %v1840
    %2646 = vmatpush.msra.mxu0 %v1837
    %2647 = vmatmul.f32.gmra.mxu0 %v2589
    %v2648 = vpop.f32.mrf.mxu0
    %v2649 = vadd.f32 0.0, %v2648
    %2650 = vdwg.mxu0
    %2651 = vmatpush.msra.mxu0 %v1883
    %2652 = vmatpush.msra.mxu0 %v1880
    %2653 = vmatpush.msra.mxu0 %v1877
    %2654 = vmatpush.msra.mxu0 %v1874
    %2655 = vmatpush.msra.mxu0 %v1871
    %2656 = vmatpush.msra.mxu0 %v1868
    %2657 = vmatpush.msra.mxu0 %v1865
    %2658 = vmatpush.msra.mxu0 %v1862
    %2659 = vmatpush.msra.mxu0 %v1859
    %2660 = vmatpush.msra.mxu0 %v1856
    %2661 = vmatpush.msra.mxu0 %v1853
    %2662 = vmatpush.msra.mxu0 %v1850
    %2663 = vmatpush.msra.mxu0 %v1847
    %2664 = vmatpush.msra.mxu0 %v1844
    %2665 = vmatpush.msra.mxu0 %v1841
    %2666 = vmatpush.msra.mxu0 %v1838
    %2667 = vmatmul.f32.gmra.mxu0 %v2589
    %v2668 = vpop.f32.mrf.mxu0
    %v2669 = vadd.f32 0.0, %v2668
    %2670 = vdwg.mxu0
    %2671 = vmatpush.msra.mxu0 %v1884
    %2672 = vmatpush.msra.mxu0 %v1881
    %2673 = vmatpush.msra.mxu0 %v1878
    %2674 = vmatpush.msra.mxu0 %v1875
    %2675 = vmatpush.msra.mxu0 %v1872
    %2676 = vmatpush.msra.mxu0 %v1869
    %2677 = vmatpush.msra.mxu0 %v1866
    %2678 = vmatpush.msra.mxu0 %v1863
    %2679 = vmatpush.msra.mxu0 %v1860
    %2680 = vmatpush.msra.mxu0 %v1857
    %2681 = vmatpush.msra.mxu0 %v1854
    %2682 = vmatpush.msra.mxu0 %v1851
    %2683 = vmatpush.msra.mxu0 %v1848
    %2684 = vmatpush.msra.mxu0 %v1845
    %2685 = vmatpush.msra.mxu0 %v1842
    %2686 = vmatpush.msra.mxu0 %v1839
    %2687 = vmatmul.f32.gmra.mxu0 %v2589
    %v2688 = vpop.f32.mrf.mxu0
    %v2689 = vadd.f32 0.0, %v2688
    %2690 = vdwg.mxu0
    %v2691 = vadd.f32 %v2628, %v2649
    %v2692 = vxor.u32 %v2691, 2147483648
    %v2693 = vmul.f32 %v2692, 1.442695
    %v2694 = vpow.pop %v2693
    %v2695 = vadd.f32 %v2694, 1.0
    %v2696 = vrcp.pop %v2695
    %v2697 = vmul.f32 %v2695, %v2696
    %v2698 = vsub.f32 1.0, %v2697
    %v2699 = vmul.f32 %v2696, %v2698
    %v2700 = vadd.f32 %v2696, %v2699
    %vm2701 = vweird.f32 %v2695
    %vm2702 = vweird.f32 %v2696
    %vm2703 = vmor %vm2701, %vm2702
    %v2704 = vsel %vm2703, %v2696, %v2700
    %v2705 = vand.u32 2147483647, %v2695
    %vm2706 = vcmp.eq.f32.partialorder %v2705, 8.507059e+37
    %v2707 = vand.u32 %v2695, 2147483648
    %v2708 = vor.u32 1.1754944e-38, %v2707
    %v2709 = vsel %vm2706, %v2708, %v2704
    %v2710 = vmul.f32 1.0, %v2709
    %v2711 = vadd.f32 %v2629, %v2669
    %v2712 = vxor.u32 %v2711, 2147483648
    %v2713 = vmul.f32 %v2712, 1.442695
    %v2714 = vpow.pop %v2713
    %v2715 = vadd.f32 %v2714, 1.0
    %v2716 = vrcp.pop %v2715
    %v2717 = vmul.f32 %v2715, %v2716
    %v2718 = vsub.f32 1.0, %v2717
    %v2719 = vmul.f32 %v2716, %v2718
    %v2720 = vadd.f32 %v2716, %v2719
    %vm2721 = vweird.f32 %v2715
    %vm2722 = vweird.f32 %v2716
    %vm2723 = vmor %vm2721, %vm2722
    %v2724 = vsel %vm2723, %v2716, %v2720
    %v2725 = vand.u32 2147483647, %v2715
    %vm2726 = vcmp.eq.f32.partialorder %v2725, 8.507059e+37
    %v2727 = vand.u32 %v2715, 2147483648
    %v2728 = vor.u32 1.1754944e-38, %v2727
    %v2729 = vsel %vm2726, %v2728, %v2724
    %v2730 = vmul.f32 1.0, %v2729
    %v2731 = vadd.f32 %v2689, %v1987
    %v2732 = vmul.f32 %v2710, %v2731
    %v2733 = vadd.f32 %v2630, %v2732
    %v2734 = vtanh.pop %v2733
    %v2735 = vsub.f32 1.0, %v2730
    %v2736 = vmul.f32 %v2735, %v2734
    %v2737 = vmul.f32 %v2730, %v2589
    %v2738 = vadd.f32 %v2736, %v2737
    %s2739 = scalar_lea.vmem [#allocation10], 640
    %v2740 = vld [vmem:[%s2739] sm:$0xff]
    %v2741 = vld [vmem:[%s2739 + $0x8] sm:$0xff]
    %v2742 = vld [vmem:[%s2739 + $0x10] sm:$0xff]
    %v2743 = vld [vmem:[%s2739 + $0x18] sm:$0xff]
    %v2744 = vld [vmem:[%s2739 + $0x20] sm:$0xff]
    %v2745 = vld [vmem:[%s2739 + $0x28] sm:$0xff]
    %v2746 = vld [vmem:[%s2739 + $0x30] sm:$0xff]
    %v2747 = vld [vmem:[%s2739 + $0x38] sm:$0xff]
    %v2748 = vld [vmem:[%s2739 + $0x40] sm:$0xff]
    %v2749 = vld [vmem:[%s2739 + $0x48] sm:$0xff]
    %v2750 = vld [vmem:[%s2739 + $0x50] sm:$0xff]
    %v2751 = vld [vmem:[%s2739 + $0x58] sm:$0xff]
    %v2752 = vld [vmem:[%s2739 + $0x60] sm:$0xff]
    %v2753 = vld [vmem:[%s2739 + $0x68] sm:$0xff]
    %v2754 = vld [vmem:[%s2739 + $0x70] sm:$0xff]
    %v2755 = vld [vmem:[%s2739 + $0x78] sm:$0xff]
    %2756 = vmatpush.msra.mxu0 %v2755
    %2757 = vmatpush.msra.mxu0 %v2754
    %2758 = vmatpush.msra.mxu0 %v2753
    %2759 = vmatpush.msra.mxu0 %v2752
    %2760 = vmatpush.msra.mxu0 %v2751
    %2761 = vmatpush.msra.mxu0 %v2750
    %2762 = vmatpush.msra.mxu0 %v2749
    %2763 = vmatpush.msra.mxu0 %v2748
    %2764 = vmatpush.msra.mxu0 %v2747
    %2765 = vmatpush.msra.mxu0 %v2746
    %2766 = vmatpush.msra.mxu0 %v2745
    %2767 = vmatpush.msra.mxu0 %v2744
    %2768 = vmatpush.msra.mxu0 %v2743
    %2769 = vmatpush.msra.mxu0 %v2742
    %2770 = vmatpush.msra.mxu0 %v2741
    %2771 = vmatpush.msra.mxu0 %v2740
    %2772 = vmatmul.f32.gmra.mxu0 %v2738
    %v2773 = vpop.f32.mrf.mxu0
    %v2774 = vadd.f32 0.0, %v2773
    %2775 = vdwg.mxu0
    %v2776 = vadd.f32 %v2627, %v2774
    %v2777 = vld [vmem:[#allocation4 + $0x90] sm:$0xff]
    %v2778 = vld [vmem:[#allocation4 + $0x98] sm:$0xff]
    %v2779 = vld [vmem:[#allocation4 + $0xa0] sm:$0xff]
    %2780 = vmatpush.msra.mxu0 %v1882
    %2781 = vmatpush.msra.mxu0 %v1879
    %2782 = vmatpush.msra.mxu0 %v1876
    %2783 = vmatpush.msra.mxu0 %v1873
    %2784 = vmatpush.msra.mxu0 %v1870
    %2785 = vmatpush.msra.mxu0 %v1867
    %2786 = vmatpush.msra.mxu0 %v1864
    %2787 = vmatpush.msra.mxu0 %v1861
    %2788 = vmatpush.msra.mxu0 %v1858
    %2789 = vmatpush.msra.mxu0 %v1855
    %2790 = vmatpush.msra.mxu0 %v1852
    %2791 = vmatpush.msra.mxu0 %v1849
    %2792 = vmatpush.msra.mxu0 %v1846
    %2793 = vmatpush.msra.mxu0 %v1843
    %2794 = vmatpush.msra.mxu0 %v1840
    %2795 = vmatpush.msra.mxu0 %v1837
    %2796 = vmatmul.f32.gmra.mxu0 %v2738
    %v2797 = vpop.f32.mrf.mxu0
    %v2798 = vadd.f32 0.0, %v2797
    %2799 = vdwg.mxu0
    %2800 = vmatpush.msra.mxu0 %v1883
    %2801 = vmatpush.msra.mxu0 %v1880
    %2802 = vmatpush.msra.mxu0 %v1877
    %2803 = vmatpush.msra.mxu0 %v1874
    %2804 = vmatpush.msra.mxu0 %v1871
    %2805 = vmatpush.msra.mxu0 %v1868
    %2806 = vmatpush.msra.mxu0 %v1865
    %2807 = vmatpush.msra.mxu0 %v1862
    %2808 = vmatpush.msra.mxu0 %v1859
    %2809 = vmatpush.msra.mxu0 %v1856
    %2810 = vmatpush.msra.mxu0 %v1853
    %2811 = vmatpush.msra.mxu0 %v1850
    %2812 = vmatpush.msra.mxu0 %v1847
    %2813 = vmatpush.msra.mxu0 %v1844
    %2814 = vmatpush.msra.mxu0 %v1841
    %2815 = vmatpush.msra.mxu0 %v1838
    %2816 = vmatmul.f32.gmra.mxu0 %v2738
    %v2817 = vpop.f32.mrf.mxu0
    %v2818 = vadd.f32 0.0, %v2817
    %2819 = vdwg.mxu0
    %2820 = vmatpush.msra.mxu0 %v1884
    %2821 = vmatpush.msra.mxu0 %v1881
    %2822 = vmatpush.msra.mxu0 %v1878
    %2823 = vmatpush.msra.mxu0 %v1875
    %2824 = vmatpush.msra.mxu0 %v1872
    %2825 = vmatpush.msra.mxu0 %v1869
    %2826 = vmatpush.msra.mxu0 %v1866
    %2827 = vmatpush.msra.mxu0 %v1863
    %2828 = vmatpush.msra.mxu0 %v1860
    %2829 = vmatpush.msra.mxu0 %v1857
    %2830 = vmatpush.msra.mxu0 %v1854
    %2831 = vmatpush.msra.mxu0 %v1851
    %2832 = vmatpush.msra.mxu0 %v1848
    %2833 = vmatpush.msra.mxu0 %v1845
    %2834 = vmatpush.msra.mxu0 %v1842
    %2835 = vmatpush.msra.mxu0 %v1839
    %2836 = vmatmul.f32.gmra.mxu0 %v2738
    %v2837 = vpop.f32.mrf.mxu0
    %v2838 = vadd.f32 0.0, %v2837
    %2839 = vdwg.mxu0
    %v2840 = vadd.f32 %v2777, %v2798
    %v2841 = vxor.u32 %v2840, 2147483648
    %v2842 = vmul.f32 %v2841, 1.442695
    %v2843 = vpow.pop %v2842
    %v2844 = vadd.f32 %v2843, 1.0
    %v2845 = vrcp.pop %v2844
    %v2846 = vmul.f32 %v2844, %v2845
    %v2847 = vsub.f32 1.0, %v2846
    %v2848 = vmul.f32 %v2845, %v2847
    %v2849 = vadd.f32 %v2845, %v2848
    %vm2850 = vweird.f32 %v2844
    %vm2851 = vweird.f32 %v2845
    %vm2852 = vmor %vm2850, %vm2851
    %v2853 = vsel %vm2852, %v2845, %v2849
    %v2854 = vand.u32 2147483647, %v2844
    %vm2855 = vcmp.eq.f32.partialorder %v2854, 8.507059e+37
    %v2856 = vand.u32 %v2844, 2147483648
    %v2857 = vor.u32 1.1754944e-38, %v2856
    %v2858 = vsel %vm2855, %v2857, %v2853
    %v2859 = vmul.f32 1.0, %v2858
    %v2860 = vadd.f32 %v2778, %v2818
    %v2861 = vxor.u32 %v2860, 2147483648
    %v2862 = vmul.f32 %v2861, 1.442695
    %v2863 = vpow.pop %v2862
    %v2864 = vadd.f32 %v2863, 1.0
    %v2865 = vrcp.pop %v2864
    %v2866 = vmul.f32 %v2864, %v2865
    %v2867 = vsub.f32 1.0, %v2866
    %v2868 = vmul.f32 %v2865, %v2867
    %v2869 = vadd.f32 %v2865, %v2868
    %vm2870 = vweird.f32 %v2864
    %vm2871 = vweird.f32 %v2865
    %vm2872 = vmor %vm2870, %vm2871
    %v2873 = vsel %vm2872, %v2865, %v2869
    %v2874 = vand.u32 2147483647, %v2864
    %vm2875 = vcmp.eq.f32.partialorder %v2874, 8.507059e+37
    %v2876 = vand.u32 %v2864, 2147483648
    %v2877 = vor.u32 1.1754944e-38, %v2876
    %v2878 = vsel %vm2875, %v2877, %v2873
    %v2879 = vmul.f32 1.0, %v2878
    %v2880 = vadd.f32 %v2838, %v1987
    %v2881 = vmul.f32 %v2859, %v2880
    %v2882 = vadd.f32 %v2779, %v2881
    %v2883 = vtanh.pop %v2882
    %v2884 = vsub.f32 1.0, %v2879
    %v2885 = vmul.f32 %v2884, %v2883
    %v2886 = vmul.f32 %v2879, %v2738
    %v2887 = vadd.f32 %v2885, %v2886
    %s2888 = scalar_lea.vmem [#allocation10], 768
    %v2889 = vld [vmem:[%s2888] sm:$0xff]
    %v2890 = vld [vmem:[%s2888 + $0x8] sm:$0xff]
    %v2891 = vld [vmem:[%s2888 + $0x10] sm:$0xff]
    %v2892 = vld [vmem:[%s2888 + $0x18] sm:$0xff]
    %v2893 = vld [vmem:[%s2888 + $0x20] sm:$0xff]
    %v2894 = vld [vmem:[%s2888 + $0x28] sm:$0xff]
    %v2895 = vld [vmem:[%s2888 + $0x30] sm:$0xff]
    %v2896 = vld [vmem:[%s2888 + $0x38] sm:$0xff]
    %v2897 = vld [vmem:[%s2888 + $0x40] sm:$0xff]
    %v2898 = vld [vmem:[%s2888 + $0x48] sm:$0xff]
    %v2899 = vld [vmem:[%s2888 + $0x50] sm:$0xff]
    %v2900 = vld [vmem:[%s2888 + $0x58] sm:$0xff]
    %v2901 = vld [vmem:[%s2888 + $0x60] sm:$0xff]
    %v2902 = vld [vmem:[%s2888 + $0x68] sm:$0xff]
    %v2903 = vld [vmem:[%s2888 + $0x70] sm:$0xff]
    %v2904 = vld [vmem:[%s2888 + $0x78] sm:$0xff]
    %2905 = vmatpush.msra.mxu0 %v2904
    %2906 = vmatpush.msra.mxu0 %v2903
    %2907 = vmatpush.msra.mxu0 %v2902
    %2908 = vmatpush.msra.mxu0 %v2901
    %2909 = vmatpush.msra.mxu0 %v2900
    %2910 = vmatpush.msra.mxu0 %v2899
    %2911 = vmatpush.msra.mxu0 %v2898
    %2912 = vmatpush.msra.mxu0 %v2897
    %2913 = vmatpush.msra.mxu0 %v2896
    %2914 = vmatpush.msra.mxu0 %v2895
    %2915 = vmatpush.msra.mxu0 %v2894
    %2916 = vmatpush.msra.mxu0 %v2893
    %2917 = vmatpush.msra.mxu0 %v2892
    %2918 = vmatpush.msra.mxu0 %v2891
    %2919 = vmatpush.msra.mxu0 %v2890
    %2920 = vmatpush.msra.mxu0 %v2889
    %2921 = vmatmul.f32.gmra.mxu0 %v2887
    %v2922 = vpop.f32.mrf.mxu0
    %v2923 = vadd.f32 0.0, %v2922
    %2924 = vdwg.mxu0
    %v2925 = vadd.f32 %v2776, %v2923
    %v2926 = vld [vmem:[#allocation4 + $0xa8] sm:$0xff]
    %v2927 = vld [vmem:[#allocation4 + $0xb0] sm:$0xff]
    %v2928 = vld [vmem:[#allocation4 + $0xb8] sm:$0xff]
    %2929 = vmatpush.msra.mxu0 %v1882
    %2930 = vmatpush.msra.mxu0 %v1879
    %2931 = vmatpush.msra.mxu0 %v1876
    %2932 = vmatpush.msra.mxu0 %v1873
    %2933 = vmatpush.msra.mxu0 %v1870
    %2934 = vmatpush.msra.mxu0 %v1867
    %2935 = vmatpush.msra.mxu0 %v1864
    %2936 = vmatpush.msra.mxu0 %v1861
    %2937 = vmatpush.msra.mxu0 %v1858
    %2938 = vmatpush.msra.mxu0 %v1855
    %2939 = vmatpush.msra.mxu0 %v1852
    %2940 = vmatpush.msra.mxu0 %v1849
    %2941 = vmatpush.msra.mxu0 %v1846
    %2942 = vmatpush.msra.mxu0 %v1843
    %2943 = vmatpush.msra.mxu0 %v1840
    %2944 = vmatpush.msra.mxu0 %v1837
    %2945 = vmatmul.f32.gmra.mxu0 %v2887
    %v2946 = vpop.f32.mrf.mxu0
    %v2947 = vadd.f32 0.0, %v2946
    %2948 = vdwg.mxu0
    %2949 = vmatpush.msra.mxu0 %v1883
    %2950 = vmatpush.msra.mxu0 %v1880
    %2951 = vmatpush.msra.mxu0 %v1877
    %2952 = vmatpush.msra.mxu0 %v1874
    %2953 = vmatpush.msra.mxu0 %v1871
    %2954 = vmatpush.msra.mxu0 %v1868
    %2955 = vmatpush.msra.mxu0 %v1865
    %2956 = vmatpush.msra.mxu0 %v1862
    %2957 = vmatpush.msra.mxu0 %v1859
    %2958 = vmatpush.msra.mxu0 %v1856
    %2959 = vmatpush.msra.mxu0 %v1853
    %2960 = vmatpush.msra.mxu0 %v1850
    %2961 = vmatpush.msra.mxu0 %v1847
    %2962 = vmatpush.msra.mxu0 %v1844
    %2963 = vmatpush.msra.mxu0 %v1841
    %2964 = vmatpush.msra.mxu0 %v1838
    %2965 = vmatmul.f32.gmra.mxu0 %v2887
    %v2966 = vpop.f32.mrf.mxu0
    %v2967 = vadd.f32 0.0, %v2966
    %2968 = vdwg.mxu0
    %2969 = vmatpush.msra.mxu0 %v1884
    %2970 = vmatpush.msra.mxu0 %v1881
    %2971 = vmatpush.msra.mxu0 %v1878
    %2972 = vmatpush.msra.mxu0 %v1875
    %2973 = vmatpush.msra.mxu0 %v1872
    %2974 = vmatpush.msra.mxu0 %v1869
    %2975 = vmatpush.msra.mxu0 %v1866
    %2976 = vmatpush.msra.mxu0 %v1863
    %2977 = vmatpush.msra.mxu0 %v1860
    %2978 = vmatpush.msra.mxu0 %v1857
    %2979 = vmatpush.msra.mxu0 %v1854
    %2980 = vmatpush.msra.mxu0 %v1851
    %2981 = vmatpush.msra.mxu0 %v1848
    %2982 = vmatpush.msra.mxu0 %v1845
    %2983 = vmatpush.msra.mxu0 %v1842
    %2984 = vmatpush.msra.mxu0 %v1839
    %2985 = vmatmul.f32.gmra.mxu0 %v2887
    %v2986 = vpop.f32.mrf.mxu0
    %v2987 = vadd.f32 0.0, %v2986
    %2988 = vdwg.mxu0
    %v2989 = vadd.f32 %v2926, %v2947
    %v2990 = vxor.u32 %v2989, 2147483648
    %v2991 = vmul.f32 %v2990, 1.442695
    %v2992 = vpow.pop %v2991
    %v2993 = vadd.f32 %v2992, 1.0
    %v2994 = vrcp.pop %v2993
    %v2995 = vmul.f32 %v2993, %v2994
    %v2996 = vsub.f32 1.0, %v2995
    %v2997 = vmul.f32 %v2994, %v2996
    %v2998 = vadd.f32 %v2994, %v2997
    %vm2999 = vweird.f32 %v2993
    %vm3000 = vweird.f32 %v2994
    %vm3001 = vmor %vm2999, %vm3000
    %v3002 = vsel %vm3001, %v2994, %v2998
    %v3003 = vand.u32 2147483647, %v2993
    %vm3004 = vcmp.eq.f32.partialorder %v3003, 8.507059e+37
    %v3005 = vand.u32 %v2993, 2147483648
    %v3006 = vor.u32 1.1754944e-38, %v3005
    %v3007 = vsel %vm3004, %v3006, %v3002
    %v3008 = vmul.f32 1.0, %v3007
    %v3009 = vadd.f32 %v2927, %v2967
    %v3010 = vxor.u32 %v3009, 2147483648
    %v3011 = vmul.f32 %v3010, 1.442695
    %v3012 = vpow.pop %v3011
    %v3013 = vadd.f32 %v3012, 1.0
    %v3014 = vrcp.pop %v3013
    %v3015 = vmul.f32 %v3013, %v3014
    %v3016 = vsub.f32 1.0, %v3015
    %v3017 = vmul.f32 %v3014, %v3016
    %v3018 = vadd.f32 %v3014, %v3017
    %vm3019 = vweird.f32 %v3013
    %vm3020 = vweird.f32 %v3014
    %vm3021 = vmor %vm3019, %vm3020
    %v3022 = vsel %vm3021, %v3014, %v3018
    %v3023 = vand.u32 2147483647, %v3013
    %vm3024 = vcmp.eq.f32.partialorder %v3023, 8.507059e+37
    %v3025 = vand.u32 %v3013, 2147483648
    %v3026 = vor.u32 1.1754944e-38, %v3025
    %v3027 = vsel %vm3024, %v3026, %v3022
    %v3028 = vmul.f32 1.0, %v3027
    %v3029 = vadd.f32 %v2987, %v1987
    %v3030 = vmul.f32 %v3008, %v3029
    %v3031 = vadd.f32 %v2928, %v3030
    %v3032 = vtanh.pop %v3031
    %v3033 = vsub.f32 1.0, %v3028
    %v3034 = vmul.f32 %v3033, %v3032
    %v3035 = vmul.f32 %v3028, %v2887
    %v3036 = vadd.f32 %v3034, %v3035
    %s3037 = scalar_lea.vmem [#allocation10], 896
    %v3038 = vld [vmem:[%s3037] sm:$0xff]
    %v3039 = vld [vmem:[%s3037 + $0x8] sm:$0xff]
    %v3040 = vld [vmem:[%s3037 + $0x10] sm:$0xff]
    %v3041 = vld [vmem:[%s3037 + $0x18] sm:$0xff]
    %v3042 = vld [vmem:[%s3037 + $0x20] sm:$0xff]
    %v3043 = vld [vmem:[%s3037 + $0x28] sm:$0xff]
    %v3044 = vld [vmem:[%s3037 + $0x30] sm:$0xff]
    %v3045 = vld [vmem:[%s3037 + $0x38] sm:$0xff]
    %v3046 = vld [vmem:[%s3037 + $0x40] sm:$0xff]
    %v3047 = vld [vmem:[%s3037 + $0x48] sm:$0xff]
    %v3048 = vld [vmem:[%s3037 + $0x50] sm:$0xff]
    %v3049 = vld [vmem:[%s3037 + $0x58] sm:$0xff]
    %v3050 = vld [vmem:[%s3037 + $0x60] sm:$0xff]
    %v3051 = vld [vmem:[%s3037 + $0x68] sm:$0xff]
    %v3052 = vld [vmem:[%s3037 + $0x70] sm:$0xff]
    %v3053 = vld [vmem:[%s3037 + $0x78] sm:$0xff]
    %3054 = vmatpush.msra.mxu0 %v3053
    %3055 = vmatpush.msra.mxu0 %v3052
    %3056 = vmatpush.msra.mxu0 %v3051
    %3057 = vmatpush.msra.mxu0 %v3050
    %3058 = vmatpush.msra.mxu0 %v3049
    %3059 = vmatpush.msra.mxu0 %v3048
    %3060 = vmatpush.msra.mxu0 %v3047
    %3061 = vmatpush.msra.mxu0 %v3046
    %3062 = vmatpush.msra.mxu0 %v3045
    %3063 = vmatpush.msra.mxu0 %v3044
    %3064 = vmatpush.msra.mxu0 %v3043
    %3065 = vmatpush.msra.mxu0 %v3042
    %3066 = vmatpush.msra.mxu0 %v3041
    %3067 = vmatpush.msra.mxu0 %v3040
    %3068 = vmatpush.msra.mxu0 %v3039
    %3069 = vmatpush.msra.mxu0 %v3038
    %3070 = vmatmul.f32.gmra.mxu0 %v3036
    %v3071 = vpop.f32.mrf.mxu0
    %v3072 = vadd.f32 0.0, %v3071
    %3073 = vdwg.mxu0
    %v3074 = vadd.f32 %v2925, %v3072
    %v3075 = vld [vmem:[%s10] sm:$0x1]
    %v3077 = vperm.slane %v3075, 0
    %v3079 = vadd.f32 %v3074, %v3077
    %3080 = vst [vmem:[%s11] sm:$0xff] %v3079
    // Predicated region
    $region62: #{rnn_gru_forward.1} parent=1 // pred_check
      _
    $region63: #{rnn_gru_forward.1} parent=1 // pred_check_branch
      %3082 = sbr.rel (0) target = $region65
    $region64: #{rnn_gru_forward.1} parent=1 // pred_region
      _
    $region65: #{rnn_gru_forward.1} parent=1 // pred_fallthru
      _
    // Predicated region
    $region66: #{rnn_gru_forward.1} parent=1 // pred_check
      _
    $region67: #{rnn_gru_forward.1} parent=1 // pred_check_branch
      %3084 = sbr.rel (0) target = $region69
    $region68: #{rnn_gru_forward.1} parent=1 // pred_region
      _
    $region69: #{rnn_gru_forward.1} parent=1 // pred_fallthru
      _
    %3085 = vsyncpa [#allocation6], 1
    %3086 = vsyncpa [#allocation8], 1
    %3087 = vsyncpa [#allocation11], 1

</llo_original>
